<compile_context>
chip_gen: v7x
topology: tpu7x:2x2x1
jax: 0.10.0
libtpu: 0.0.40
codegen_flags: <defaults>
</compile_context>

<pallas_src>
import numpy as np
import jax
import jax.numpy as jnp
from jax import lax
from jax.experimental import pallas as pl
from jax.experimental.pallas import tpu as pltpu

WINDOW_SIZE = 11
SIGMA = 1.5
_MXU_MIN_DIM = 128  # switch the conv passes to Toeplitz/MXU when output is this big


def _gaussian_1d(window_size: int, sigma: float) -> np.ndarray:
    """Matches torch `gaussian` (1-D Gaussian, sum=1)."""
    x = np.arange(window_size, dtype=np.float64)
    g = np.exp(-((x - window_size // 2) ** 2) / (2.0 * sigma ** 2))
    return (g / g.sum()).astype(np.float32)


def _gaussian_window_2d(window_size: int, sigma: float) -> np.ndarray:
    g = _gaussian_1d(window_size, sigma)
    return np.outer(g, g).astype(np.float32)


def _make_ssim_kernel(NB: int, H: int, W: int, K: int, n_valid: int, use_mxu: bool):
    OH, OW = H - K + 1, W - K + 1
    g = [float(v) for v in _gaussian_1d(K, SIGMA)]  # compile-time taps

    def kernel(c_ref, x1_ref, x2_ref, *rest):
        if use_mxu:
            tv_ref, th_ref, out_ref = rest
        else:
            (out_ref,) = rest

        gi = pl.program_id(0)
        a = x1_ref[...].astype(jnp.float32)   # (NB, H, W)
        b = x2_ref[...].astype(jnp.float32)
        C1 = c_ref[0]
        C2 = c_ref[1]

        # products computed once, then convolved (separability)
        aa = a * a
        bb = b * b
        ab = a * b

        if use_mxu:
            tv = tv_ref[...]   # (OH, H) banded Toeplitz of the vertical taps
            th = th_ref[...]   # (W, OW) banded Toeplitz of the horizontal taps

            def conv(x):  # (NB, H, W) -> (NB, OH, OW) on the MXU
                planes = []
                for n in range(NB):
                    t = jnp.dot(x[n], th, preferred_element_type=jnp.float32)
                    planes.append(jnp.dot(tv, t, preferred_element_type=jnp.float32))
                return jnp.stack(planes, axis=0)
        else:
            def conv(x):  # separable 1-D passes on the VPU (exact f32)
                v = g[0] * x[:, 0:OH, :]
                for p in range(1, K):
                    v = v + g[p] * x[:, p:p + OH, :]
                out = g[0] * v[:, :, 0:OW]
                for q in range(1, K):
                    out = out + g[q] * v[:, :, q:q + OW]
                return out

        mu1 = conv(a)
        mu2 = conv(b)
        s11 = conv(aa)
        s22 = conv(bb)
        s12 = conv(ab)

        mu1_sq = mu1 * mu1
        mu2_sq = mu2 * mu2
        mu1_mu2 = mu1 * mu2
        sigma1_sq = s11 - mu1_sq
        sigma2_sq = s22 - mu2_sq
        sigma12 = s12 - mu1_mu2

        v1 = 2.0 * sigma12 + C2
        v2 = sigma1_sq + sigma2_sq + C2
        ssim_map = (2.0 * mu1_mu2 + C1) * v1 / ((mu1_sq + mu2_sq + C1) * v2)

        # Mask planes that only exist due to padding N up to a multiple of NB.
        plane_idx = gi * NB + lax.broadcasted_iota(jnp.int32, (NB, 1, 1), 0)
        mask = (plane_idx < n_valid).astype(jnp.float32)
        total = jnp.sum(ssim_map * mask)

        # Lane-dense store of this block's partial sum; wrapper reads [:, 0, 0].
        out_ref[...] = jnp.full((1, 8, 128), total, jnp.float32)

    return kernel


def ssim_pallas(img1: jax.Array, img2: jax.Array,
                window_size: int = WINDOW_SIZE, val_range=None) -> jax.Array:
    """Equivalent of SSIM(window_size=11, size_average=True).forward(img1, img2)."""
    B, C, H, W = img1.shape
    K = window_size
    if H < K or W < K:
        raise ValueError("spatial dims must be >= window_size (matches SSIM.forward)")
    OH, OW = H - K + 1, W - K + 1
    N = B * C

    # Dynamic range L (same rule as the torch code), computed in plain-JAX glue.
    if val_range is None:
        max_val = jnp.where(jnp.max(img1) > 128, 255.0, 1.0)
        min_val = jnp.where(jnp.min(img1) < -0.5, -1.0, 0.0)
        L = max_val - min_val
    else:
        L = jnp.float32(val_range)
    C1 = (0.01 * L) ** 2
    C2 = (0.03 * L) ** 2
    consts = jnp.stack([C1, C2]).astype(jnp.float32)  # scalar-prefetched to SMEM

    # Keep native dtype (bf16/f16/u8 halves HBM traffic); kernel casts to f32.
    x1 = img1.reshape(N, H, W)
    x2 = img2.reshape(N, H, W)

    # Batch NB planes per grid step so each input block is ~<= 1 MiB.
    itemsize = jnp.dtype(img1.dtype).itemsize
    plane_bytes = H * W * itemsize
    NB = int(max(1, min(N, (1 << 20) // max(plane_bytes, 1))))
    G = int(pl.cdiv(N, NB))
    n_pad = G * NB
    if n_pad != N:
        pad = n_pad - N
        x1 = jnp.concatenate([x1, jnp.zeros((pad, H, W), x1.dtype)], axis=0)
        x2 = jnp.concatenate([x2, jnp.zeros((pad, H, W), x2.dtype)], axis=0)

    use_mxu = min(OH, OW) >= _MXU_MIN_DIM
    kernel = _make_ssim_kernel(NB, H, W, K, N, use_mxu)

    img_spec = pl.BlockSpec((NB, H, W), lambda n, c: (n, 0, 0))
    in_specs = [img_spec, img_spec]
    args = [consts, x1, x2]
    if use_mxu:
        g1 = _gaussian_1d(K, SIGMA)
        tv = np.zeros((OH, H), np.float32)
        for o in range(OH):
            tv[o, o:o + K] = g1
        th = np.zeros((W, OW), np.float32)
        for o in range(OW):
            th[o:o + K, o] = g1
        in_specs += [pl.BlockSpec((OH, H), lambda n, c: (0, 0)),
                     pl.BlockSpec((W, OW), lambda n, c: (0, 0))]
        args += [jnp.asarray(tv), jnp.asarray(th)]

    # VMEM budget: 2 inputs x 2 pipeline buffers + ~16 f32-sized working arrays.
    blk_in = NB * H * W * itemsize
    work_f32 = NB * H * W * 4
    est_vmem = 2 * 2 * blk_in + 16 * work_f32 + (2 << 20)
    vmem_limit = int(min(max(est_vmem, 32 << 20), 64 << 20))
    # TODO(synk): very large single planes should additionally be strip-tiled over
    # rows with a (K-1)-row halo so double-buffered blocks fit v7x's 64 MiB VMEM.

    out = pl.pallas_call(
        kernel,
        out_shape=jax.ShapeDtypeStruct((G, 8, 128), jnp.float32),
        grid_spec=pltpu.PrefetchScalarGridSpec(
            num_scalar_prefetch=1,
            grid=(G,),
            in_specs=in_specs,
            out_specs=pl.BlockSpec((1, 8, 128), lambda n, c: (n, 0, 0)),
        ),
        compiler_params=pltpu.CompilerParams(
            dimension_semantics=("parallel",),
            vmem_limit_bytes=vmem_limit),
    )(*args)

    partials = out[:, 0, 0]                    # per-block partial sums
    return jnp.sum(partials) / jnp.float32(N * OH * OW)


def _ssim_reference(img1, img2, window_size=WINDOW_SIZE):
    """Pure-JAX reference using lax conv (depthwise), mirroring the torch code."""
    B, C, H, W = img1.shape
    w2d = jnp.asarray(_gaussian_window_2d(window_size, SIGMA))
    window = jnp.broadcast_to(w2d[None, None], (C, 1, window_size, window_size))

    def dconv(x):
        return lax.conv_general_dilated(
            x, window, window_strides=(1, 1), padding="VALID",
            dimension_numbers=("NCHW", "OIHW", "NCHW"), feature_group_count=C,
            precision=lax.Precision.HIGHEST)

    max_val = jnp.where(jnp.max(img1) > 128, 255.0, 1.0)
    min_val = jnp.where(jnp.min(img1) < -0.5, -1.0, 0.0)
    L = max_val - min_val
    C1 = (0.01 * L) ** 2
    C2 = (0.03 * L) ** 2
    mu1, mu2 = dconv(img1), dconv(img2)
    mu1_sq, mu2_sq, mu1_mu2 = mu1 ** 2, mu2 ** 2, mu1 * mu2
    sigma1_sq = dconv(img1 * img1) - mu1_sq
    sigma2_sq = dconv(img2 * img2) - mu2_sq
    sigma12 = dconv(img1 * img2) - mu1_mu2
    v1 = 2.0 * sigma12 + C2
    v2 = sigma1_sq + sigma2_sq + C2
    ssim_map = (2 * mu1_mu2 + C1) * v1 / ((mu1_sq + mu2_sq + C1) * v2)
    return jnp.mean(ssim_map)


if __name__ == "__main__":
    key = jax.random.PRNGKey(0)
    k1, k2 = jax.random.split(key)
    # Small NCHW inputs; spatial must be >= window_size (11) for valid conv.
    img1 = jax.random.uniform(k1, (2, 4, 16, 16), dtype=jnp.float32)
    img2 = jax.random.uniform(k2, (2, 4, 16, 16), dtype=jnp.float32)

    result = ssim_pallas(img1, img2)
    jax.block_until_ready(result)

    ref = _ssim_reference(img1, img2)
    assert jnp.allclose(result, ref, atol=1e-4), (result, ref)

    print("KERNEL_OK")
</pallas_src>

<mosaic_0001>
module attributes {stable_mosaic.version = 11 : i64} {
  func.func @kernel(%arg0: i32, %arg1: memref<2xf32, #tpu.memory_space<smem>>, %arg2: memref<8x16x16xf32, #tpu.memory_space<vmem>>, %arg3: memref<8x16x16xf32, #tpu.memory_space<vmem>>, %arg4: memref<1x8x128xf32, #tpu.memory_space<vmem>>) attributes {dimension_semantics = [#tpu.dimension_semantics<parallel>], iteration_bounds = array<i64: 1>, scalar_prefetch = 1 : i64, scratch_operands = 0 : i64, tpu.core_type = #tpu.core_type<tc>, window_params = [{transform_indices = @transform_0, window_bounds = array<i64: 8, 16, 16>}, {transform_indices = @transform_1, window_bounds = array<i64: 8, 16, 16>}, {transform_indices = @transform_2, window_bounds = array<i64: 1, 8, 128>}]} {
    %c0 = arith.constant 0 : index
    %c0_0 = arith.constant 0 : index
    %c0_1 = arith.constant 0 : index
    %0 = vector.load %arg2[%c0, %c0_0, %c0_1] : memref<8x16x16xf32, #tpu.memory_space<vmem>>, vector<8x16x16xf32>
    %c0_2 = arith.constant 0 : index
    %c0_3 = arith.constant 0 : index
    %c0_4 = arith.constant 0 : index
    %1 = vector.load %arg3[%c0_2, %c0_3, %c0_4] : memref<8x16x16xf32, #tpu.memory_space<vmem>>, vector<8x16x16xf32>
    %c0_5 = arith.constant 0 : index
    %2 = memref.load %arg1[%c0_5] : memref<2xf32, #tpu.memory_space<smem>>
    %c1 = arith.constant 1 : index
    %3 = memref.load %arg1[%c1] : memref<2xf32, #tpu.memory_space<smem>>
    %4 = arith.mulf %0, %0 : vector<8x16x16xf32>
    %5 = arith.mulf %1, %1 : vector<8x16x16xf32>
    %6 = arith.mulf %0, %1 : vector<8x16x16xf32>
    %7 = vector.extract_strided_slice %0 {offsets = [0, 0, 0], sizes = [8, 6, 16], strides = [1, 1, 1]} : vector<8x16x16xf32> to vector<8x6x16xf32>
    %cst = arith.constant 0.00102838012 : f32
    %8 = vector.broadcast %cst : f32 to vector<8x6x16xf32>
    %9 = arith.mulf %8, %7 : vector<8x6x16xf32>
    %10 = vector.extract_strided_slice %0 {offsets = [0, 1, 0], sizes = [8, 6, 16], strides = [1, 1, 1]} : vector<8x16x16xf32> to vector<8x6x16xf32>
    %cst_6 = arith.constant 0.00759875821 : f32
    %11 = vector.broadcast %cst_6 : f32 to vector<8x6x16xf32>
    %12 = arith.mulf %11, %10 : vector<8x6x16xf32>
    %13 = arith.addf %9, %12 : vector<8x6x16xf32>
    %14 = vector.extract_strided_slice %0 {offsets = [0, 2, 0], sizes = [8, 6, 16], strides = [1, 1, 1]} : vector<8x16x16xf32> to vector<8x6x16xf32>
    %cst_7 = arith.constant 0.0360007733 : f32
    %15 = vector.broadcast %cst_7 : f32 to vector<8x6x16xf32>
    %16 = arith.mulf %15, %14 : vector<8x6x16xf32>
    %17 = arith.addf %13, %16 : vector<8x6x16xf32>
    %18 = vector.extract_strided_slice %0 {offsets = [0, 3, 0], sizes = [8, 6, 16], strides = [1, 1, 1]} : vector<8x16x16xf32> to vector<8x6x16xf32>
    %cst_8 = arith.constant 0.109360687 : f32
    %19 = vector.broadcast %cst_8 : f32 to vector<8x6x16xf32>
    %20 = arith.mulf %19, %18 : vector<8x6x16xf32>
    %21 = arith.addf %17, %20 : vector<8x6x16xf32>
    %22 = vector.extract_strided_slice %0 {offsets = [0, 4, 0], sizes = [8, 6, 16], strides = [1, 1, 1]} : vector<8x16x16xf32> to vector<8x6x16xf32>
    %cst_9 = arith.constant 0.213005543 : f32
    %23 = vector.broadcast %cst_9 : f32 to vector<8x6x16xf32>
    %24 = arith.mulf %23, %22 : vector<8x6x16xf32>
    %25 = arith.addf %21, %24 : vector<8x6x16xf32>
    %26 = vector.extract_strided_slice %0 {offsets = [0, 5, 0], sizes = [8, 6, 16], strides = [1, 1, 1]} : vector<8x16x16xf32> to vector<8x6x16xf32>
    %cst_10 = arith.constant 0.266011715 : f32
    %27 = vector.broadcast %cst_10 : f32 to vector<8x6x16xf32>
    %28 = arith.mulf %27, %26 : vector<8x6x16xf32>
    %29 = arith.addf %25, %28 : vector<8x6x16xf32>
    %30 = vector.extract_strided_slice %0 {offsets = [0, 6, 0], sizes = [8, 6, 16], strides = [1, 1, 1]} : vector<8x16x16xf32> to vector<8x6x16xf32>
    %cst_11 = arith.constant 0.213005543 : f32
    %31 = vector.broadcast %cst_11 : f32 to vector<8x6x16xf32>
    %32 = arith.mulf %31, %30 : vector<8x6x16xf32>
    %33 = arith.addf %29, %32 : vector<8x6x16xf32>
    %34 = vector.extract_strided_slice %0 {offsets = [0, 7, 0], sizes = [8, 6, 16], strides = [1, 1, 1]} : vector<8x16x16xf32> to vector<8x6x16xf32>
    %cst_12 = arith.constant 0.109360687 : f32
    %35 = vector.broadcast %cst_12 : f32 to vector<8x6x16xf32>
    %36 = arith.mulf %35, %34 : vector<8x6x16xf32>
    %37 = arith.addf %33, %36 : vector<8x6x16xf32>
    %38 = vector.extract_strided_slice %0 {offsets = [0, 8, 0], sizes = [8, 6, 16], strides = [1, 1, 1]} : vector<8x16x16xf32> to vector<8x6x16xf32>
    %cst_13 = arith.constant 0.0360007733 : f32
    %39 = vector.broadcast %cst_13 : f32 to vector<8x6x16xf32>
    %40 = arith.mulf %39, %38 : vector<8x6x16xf32>
    %41 = arith.addf %37, %40 : vector<8x6x16xf32>
    %42 = vector.extract_strided_slice %0 {offsets = [0, 9, 0], sizes = [8, 6, 16], strides = [1, 1, 1]} : vector<8x16x16xf32> to vector<8x6x16xf32>
    %cst_14 = arith.constant 0.00759875821 : f32
    %43 = vector.broadcast %cst_14 : f32 to vector<8x6x16xf32>
    %44 = arith.mulf %43, %42 : vector<8x6x16xf32>
    %45 = arith.addf %41, %44 : vector<8x6x16xf32>
    %46 = vector.extract_strided_slice %0 {offsets = [0, 10, 0], sizes = [8, 6, 16], strides = [1, 1, 1]} : vector<8x16x16xf32> to vector<8x6x16xf32>
    %cst_15 = arith.constant 0.00102838012 : f32
    %47 = vector.broadcast %cst_15 : f32 to vector<8x6x16xf32>
    %48 = arith.mulf %47, %46 : vector<8x6x16xf32>
    %49 = arith.addf %45, %48 : vector<8x6x16xf32>
    %50 = vector.extract_strided_slice %49 {offsets = [0, 0, 0], sizes = [8, 6, 6], strides = [1, 1, 1]} : vector<8x6x16xf32> to vector<8x6x6xf32>
    %cst_16 = arith.constant 0.00102838012 : f32
    %51 = vector.broadcast %cst_16 : f32 to vector<8x6x6xf32>
    %52 = arith.mulf %51, %50 : vector<8x6x6xf32>
    %53 = vector.extract_strided_slice %49 {offsets = [0, 0, 1], sizes = [8, 6, 6], strides = [1, 1, 1]} : vector<8x6x16xf32> to vector<8x6x6xf32>
    %cst_17 = arith.constant 0.00759875821 : f32
    %54 = vector.broadcast %cst_17 : f32 to vector<8x6x6xf32>
    %55 = arith.mulf %54, %53 : vector<8x6x6xf32>
    %56 = arith.addf %52, %55 : vector<8x6x6xf32>
    %57 = vector.extract_strided_slice %49 {offsets = [0, 0, 2], sizes = [8, 6, 6], strides = [1, 1, 1]} : vector<8x6x16xf32> to vector<8x6x6xf32>
    %cst_18 = arith.constant 0.0360007733 : f32
    %58 = vector.broadcast %cst_18 : f32 to vector<8x6x6xf32>
    %59 = arith.mulf %58, %57 : vector<8x6x6xf32>
    %60 = arith.addf %56, %59 : vector<8x6x6xf32>
    %61 = vector.extract_strided_slice %49 {offsets = [0, 0, 3], sizes = [8, 6, 6], strides = [1, 1, 1]} : vector<8x6x16xf32> to vector<8x6x6xf32>
    %cst_19 = arith.constant 0.109360687 : f32
    %62 = vector.broadcast %cst_19 : f32 to vector<8x6x6xf32>
    %63 = arith.mulf %62, %61 : vector<8x6x6xf32>
    %64 = arith.addf %60, %63 : vector<8x6x6xf32>
    %65 = vector.extract_strided_slice %49 {offsets = [0, 0, 4], sizes = [8, 6, 6], strides = [1, 1, 1]} : vector<8x6x16xf32> to vector<8x6x6xf32>
    %cst_20 = arith.constant 0.213005543 : f32
    %66 = vector.broadcast %cst_20 : f32 to vector<8x6x6xf32>
    %67 = arith.mulf %66, %65 : vector<8x6x6xf32>
    %68 = arith.addf %64, %67 : vector<8x6x6xf32>
    %69 = vector.extract_strided_slice %49 {offsets = [0, 0, 5], sizes = [8, 6, 6], strides = [1, 1, 1]} : vector<8x6x16xf32> to vector<8x6x6xf32>
    %cst_21 = arith.constant 0.266011715 : f32
    %70 = vector.broadcast %cst_21 : f32 to vector<8x6x6xf32>
    %71 = arith.mulf %70, %69 : vector<8x6x6xf32>
    %72 = arith.addf %68, %71 : vector<8x6x6xf32>
    %73 = vector.extract_strided_slice %49 {offsets = [0, 0, 6], sizes = [8, 6, 6], strides = [1, 1, 1]} : vector<8x6x16xf32> to vector<8x6x6xf32>
    %cst_22 = arith.constant 0.213005543 : f32
    %74 = vector.broadcast %cst_22 : f32 to vector<8x6x6xf32>
    %75 = arith.mulf %74, %73 : vector<8x6x6xf32>
    %76 = arith.addf %72, %75 : vector<8x6x6xf32>
    %77 = vector.extract_strided_slice %49 {offsets = [0, 0, 7], sizes = [8, 6, 6], strides = [1, 1, 1]} : vector<8x6x16xf32> to vector<8x6x6xf32>
    %cst_23 = arith.constant 0.109360687 : f32
    %78 = vector.broadcast %cst_23 : f32 to vector<8x6x6xf32>
    %79 = arith.mulf %78, %77 : vector<8x6x6xf32>
    %80 = arith.addf %76, %79 : vector<8x6x6xf32>
    %81 = vector.extract_strided_slice %49 {offsets = [0, 0, 8], sizes = [8, 6, 6], strides = [1, 1, 1]} : vector<8x6x16xf32> to vector<8x6x6xf32>
    %cst_24 = arith.constant 0.0360007733 : f32
    %82 = vector.broadcast %cst_24 : f32 to vector<8x6x6xf32>
    %83 = arith.mulf %82, %81 : vector<8x6x6xf32>
    %84 = arith.addf %80, %83 : vector<8x6x6xf32>
    %85 = vector.extract_strided_slice %49 {offsets = [0, 0, 9], sizes = [8, 6, 6], strides = [1, 1, 1]} : vector<8x6x16xf32> to vector<8x6x6xf32>
    %cst_25 = arith.constant 0.00759875821 : f32
    %86 = vector.broadcast %cst_25 : f32 to vector<8x6x6xf32>
    %87 = arith.mulf %86, %85 : vector<8x6x6xf32>
    %88 = arith.addf %84, %87 : vector<8x6x6xf32>
    %89 = vector.extract_strided_slice %49 {offsets = [0, 0, 10], sizes = [8, 6, 6], strides = [1, 1, 1]} : vector<8x6x16xf32> to vector<8x6x6xf32>
    %cst_26 = arith.constant 0.00102838012 : f32
    %90 = vector.broadcast %cst_26 : f32 to vector<8x6x6xf32>
    %91 = arith.mulf %90, %89 : vector<8x6x6xf32>
    %92 = arith.addf %88, %91 : vector<8x6x6xf32>
    %93 = vector.extract_strided_slice %1 {offsets = [0, 0, 0], sizes = [8, 6, 16], strides = [1, 1, 1]} : vector<8x16x16xf32> to vector<8x6x16xf32>
    %cst_27 = arith.constant 0.00102838012 : f32
    %94 = vector.broadcast %cst_27 : f32 to vector<8x6x16xf32>
    %95 = arith.mulf %94, %93 : vector<8x6x16xf32>
    %96 = vector.extract_strided_slice %1 {offsets = [0, 1, 0], sizes = [8, 6, 16], strides = [1, 1, 1]} : vector<8x16x16xf32> to vector<8x6x16xf32>
    %cst_28 = arith.constant 0.00759875821 : f32
    %97 = vector.broadcast %cst_28 : f32 to vector<8x6x16xf32>
    %98 = arith.mulf %97, %96 : vector<8x6x16xf32>
    %99 = arith.addf %95, %98 : vector<8x6x16xf32>
    %100 = vector.extract_strided_slice %1 {offsets = [0, 2, 0], sizes = [8, 6, 16], strides = [1, 1, 1]} : vector<8x16x16xf32> to vector<8x6x16xf32>
    %cst_29 = arith.constant 0.0360007733 : f32
    %101 = vector.broadcast %cst_29 : f32 to vector<8x6x16xf32>
    %102 = arith.mulf %101, %100 : vector<8x6x16xf32>
    %103 = arith.addf %99, %102 : vector<8x6x16xf32>
    %104 = vector.extract_strided_slice %1 {offsets = [0, 3, 0], sizes = [8, 6, 16], strides = [1, 1, 1]} : vector<8x16x16xf32> to vector<8x6x16xf32>
    %cst_30 = arith.constant 0.109360687 : f32
    %105 = vector.broadcast %cst_30 : f32 to vector<8x6x16xf32>
    %106 = arith.mulf %105, %104 : vector<8x6x16xf32>
    %107 = arith.addf %103, %106 : vector<8x6x16xf32>
    %108 = vector.extract_strided_slice %1 {offsets = [0, 4, 0], sizes = [8, 6, 16], strides = [1, 1, 1]} : vector<8x16x16xf32> to vector<8x6x16xf32>
    %cst_31 = arith.constant 0.213005543 : f32
    %109 = vector.broadcast %cst_31 : f32 to vector<8x6x16xf32>
    %110 = arith.mulf %109, %108 : vector<8x6x16xf32>
    %111 = arith.addf %107, %110 : vector<8x6x16xf32>
    %112 = vector.extract_strided_slice %1 {offsets = [0, 5, 0], sizes = [8, 6, 16], strides = [1, 1, 1]} : vector<8x16x16xf32> to vector<8x6x16xf32>
    %cst_32 = arith.constant 0.266011715 : f32
    %113 = vector.broadcast %cst_32 : f32 to vector<8x6x16xf32>
    %114 = arith.mulf %113, %112 : vector<8x6x16xf32>
    %115 = arith.addf %111, %114 : vector<8x6x16xf32>
    %116 = vector.extract_strided_slice %1 {offsets = [0, 6, 0], sizes = [8, 6, 16], strides = [1, 1, 1]} : vector<8x16x16xf32> to vector<8x6x16xf32>
    %cst_33 = arith.constant 0.213005543 : f32
    %117 = vector.broadcast %cst_33 : f32 to vector<8x6x16xf32>
    %118 = arith.mulf %117, %116 : vector<8x6x16xf32>
    %119 = arith.addf %115, %118 : vector<8x6x16xf32>
    %120 = vector.extract_strided_slice %1 {offsets = [0, 7, 0], sizes = [8, 6, 16], strides = [1, 1, 1]} : vector<8x16x16xf32> to vector<8x6x16xf32>
    %cst_34 = arith.constant 0.109360687 : f32
    %121 = vector.broadcast %cst_34 : f32 to vector<8x6x16xf32>
    %122 = arith.mulf %121, %120 : vector<8x6x16xf32>
    %123 = arith.addf %119, %122 : vector<8x6x16xf32>
    %124 = vector.extract_strided_slice %1 {offsets = [0, 8, 0], sizes = [8, 6, 16], strides = [1, 1, 1]} : vector<8x16x16xf32> to vector<8x6x16xf32>
    %cst_35 = arith.constant 0.0360007733 : f32
    %125 = vector.broadcast %cst_35 : f32 to vector<8x6x16xf32>
    %126 = arith.mulf %125, %124 : vector<8x6x16xf32>
    %127 = arith.addf %123, %126 : vector<8x6x16xf32>
    %128 = vector.extract_strided_slice %1 {offsets = [0, 9, 0], sizes = [8, 6, 16], strides = [1, 1, 1]} : vector<8x16x16xf32> to vector<8x6x16xf32>
    %cst_36 = arith.constant 0.00759875821 : f32
    %129 = vector.broadcast %cst_36 : f32 to vector<8x6x16xf32>
    %130 = arith.mulf %129, %128 : vector<8x6x16xf32>
    %131 = arith.addf %127, %130 : vector<8x6x16xf32>
    %132 = vector.extract_strided_slice %1 {offsets = [0, 10, 0], sizes = [8, 6, 16], strides = [1, 1, 1]} : vector<8x16x16xf32> to vector<8x6x16xf32>
    %cst_37 = arith.constant 0.00102838012 : f32
    %133 = vector.broadcast %cst_37 : f32 to vector<8x6x16xf32>
    %134 = arith.mulf %133, %132 : vector<8x6x16xf32>
    %135 = arith.addf %131, %134 : vector<8x6x16xf32>
    %136 = vector.extract_strided_slice %135 {offsets = [0, 0, 0], sizes = [8, 6, 6], strides = [1, 1, 1]} : vector<8x6x16xf32> to vector<8x6x6xf32>
    %cst_38 = arith.constant 0.00102838012 : f32
    %137 = vector.broadcast %cst_38 : f32 to vector<8x6x6xf32>
    %138 = arith.mulf %137, %136 : vector<8x6x6xf32>
    %139 = vector.extract_strided_slice %135 {offsets = [0, 0, 1], sizes = [8, 6, 6], strides = [1, 1, 1]} : vector<8x6x16xf32> to vector<8x6x6xf32>
    %cst_39 = arith.constant 0.00759875821 : f32
    %140 = vector.broadcast %cst_39 : f32 to vector<8x6x6xf32>
    %141 = arith.mulf %140, %139 : vector<8x6x6xf32>
    %142 = arith.addf %138, %141 : vector<8x6x6xf32>
    %143 = vector.extract_strided_slice %135 {offsets = [0, 0, 2], sizes = [8, 6, 6], strides = [1, 1, 1]} : vector<8x6x16xf32> to vector<8x6x6xf32>
    %cst_40 = arith.constant 0.0360007733 : f32
    %144 = vector.broadcast %cst_40 : f32 to vector<8x6x6xf32>
    %145 = arith.mulf %144, %143 : vector<8x6x6xf32>
    %146 = arith.addf %142, %145 : vector<8x6x6xf32>
    %147 = vector.extract_strided_slice %135 {offsets = [0, 0, 3], sizes = [8, 6, 6], strides = [1, 1, 1]} : vector<8x6x16xf32> to vector<8x6x6xf32>
    %cst_41 = arith.constant 0.109360687 : f32
    %148 = vector.broadcast %cst_41 : f32 to vector<8x6x6xf32>
    %149 = arith.mulf %148, %147 : vector<8x6x6xf32>
    %150 = arith.addf %146, %149 : vector<8x6x6xf32>
    %151 = vector.extract_strided_slice %135 {offsets = [0, 0, 4], sizes = [8, 6, 6], strides = [1, 1, 1]} : vector<8x6x16xf32> to vector<8x6x6xf32>
    %cst_42 = arith.constant 0.213005543 : f32
    %152 = vector.broadcast %cst_42 : f32 to vector<8x6x6xf32>
    %153 = arith.mulf %152, %151 : vector<8x6x6xf32>
    %154 = arith.addf %150, %153 : vector<8x6x6xf32>
    %155 = vector.extract_strided_slice %135 {offsets = [0, 0, 5], sizes = [8, 6, 6], strides = [1, 1, 1]} : vector<8x6x16xf32> to vector<8x6x6xf32>
    %cst_43 = arith.constant 0.266011715 : f32
    %156 = vector.broadcast %cst_43 : f32 to vector<8x6x6xf32>
    %157 = arith.mulf %156, %155 : vector<8x6x6xf32>
    %158 = arith.addf %154, %157 : vector<8x6x6xf32>
    %159 = vector.extract_strided_slice %135 {offsets = [0, 0, 6], sizes = [8, 6, 6], strides = [1, 1, 1]} : vector<8x6x16xf32> to vector<8x6x6xf32>
    %cst_44 = arith.constant 0.213005543 : f32
    %160 = vector.broadcast %cst_44 : f32 to vector<8x6x6xf32>
    %161 = arith.mulf %160, %159 : vector<8x6x6xf32>
    %162 = arith.addf %158, %161 : vector<8x6x6xf32>
    %163 = vector.extract_strided_slice %135 {offsets = [0, 0, 7], sizes = [8, 6, 6], strides = [1, 1, 1]} : vector<8x6x16xf32> to vector<8x6x6xf32>
    %cst_45 = arith.constant 0.109360687 : f32
    %164 = vector.broadcast %cst_45 : f32 to vector<8x6x6xf32>
    %165 = arith.mulf %164, %163 : vector<8x6x6xf32>
    %166 = arith.addf %162, %165 : vector<8x6x6xf32>
    %167 = vector.extract_strided_slice %135 {offsets = [0, 0, 8], sizes = [8, 6, 6], strides = [1, 1, 1]} : vector<8x6x16xf32> to vector<8x6x6xf32>
    %cst_46 = arith.constant 0.0360007733 : f32
    %168 = vector.broadcast %cst_46 : f32 to vector<8x6x6xf32>
    %169 = arith.mulf %168, %167 : vector<8x6x6xf32>
    %170 = arith.addf %166, %169 : vector<8x6x6xf32>
    %171 = vector.extract_strided_slice %135 {offsets = [0, 0, 9], sizes = [8, 6, 6], strides = [1, 1, 1]} : vector<8x6x16xf32> to vector<8x6x6xf32>
    %cst_47 = arith.constant 0.00759875821 : f32
    %172 = vector.broadcast %cst_47 : f32 to vector<8x6x6xf32>
    %173 = arith.mulf %172, %171 : vector<8x6x6xf32>
    %174 = arith.addf %170, %173 : vector<8x6x6xf32>
    %175 = vector.extract_strided_slice %135 {offsets = [0, 0, 10], sizes = [8, 6, 6], strides = [1, 1, 1]} : vector<8x6x16xf32> to vector<8x6x6xf32>
    %cst_48 = arith.constant 0.00102838012 : f32
    %176 = vector.broadcast %cst_48 : f32 to vector<8x6x6xf32>
    %177 = arith.mulf %176, %175 : vector<8x6x6xf32>
    %178 = arith.addf %174, %177 : vector<8x6x6xf32>
    %179 = vector.extract_strided_slice %4 {offsets = [0, 0, 0], sizes = [8, 6, 16], strides = [1, 1, 1]} : vector<8x16x16xf32> to vector<8x6x16xf32>
    %cst_49 = arith.constant 0.00102838012 : f32
    %180 = vector.broadcast %cst_49 : f32 to vector<8x6x16xf32>
    %181 = arith.mulf %180, %179 : vector<8x6x16xf32>
    %182 = vector.extract_strided_slice %4 {offsets = [0, 1, 0], sizes = [8, 6, 16], strides = [1, 1, 1]} : vector<8x16x16xf32> to vector<8x6x16xf32>
    %cst_50 = arith.constant 0.00759875821 : f32
    %183 = vector.broadcast %cst_50 : f32 to vector<8x6x16xf32>
    %184 = arith.mulf %183, %182 : vector<8x6x16xf32>
    %185 = arith.addf %181, %184 : vector<8x6x16xf32>
    %186 = vector.extract_strided_slice %4 {offsets = [0, 2, 0], sizes = [8, 6, 16], strides = [1, 1, 1]} : vector<8x16x16xf32> to vector<8x6x16xf32>
    %cst_51 = arith.constant 0.0360007733 : f32
    %187 = vector.broadcast %cst_51 : f32 to vector<8x6x16xf32>
    %188 = arith.mulf %187, %186 : vector<8x6x16xf32>
    %189 = arith.addf %185, %188 : vector<8x6x16xf32>
    %190 = vector.extract_strided_slice %4 {offsets = [0, 3, 0], sizes = [8, 6, 16], strides = [1, 1, 1]} : vector<8x16x16xf32> to vector<8x6x16xf32>
    %cst_52 = arith.constant 0.109360687 : f32
    %191 = vector.broadcast %cst_52 : f32 to vector<8x6x16xf32>
    %192 = arith.mulf %191, %190 : vector<8x6x16xf32>
    %193 = arith.addf %189, %192 : vector<8x6x16xf32>
    %194 = vector.extract_strided_slice %4 {offsets = [0, 4, 0], sizes = [8, 6, 16], strides = [1, 1, 1]} : vector<8x16x16xf32> to vector<8x6x16xf32>
    %cst_53 = arith.constant 0.213005543 : f32
    %195 = vector.broadcast %cst_53 : f32 to vector<8x6x16xf32>
    %196 = arith.mulf %195, %194 : vector<8x6x16xf32>
    %197 = arith.addf %193, %196 : vector<8x6x16xf32>
    %198 = vector.extract_strided_slice %4 {offsets = [0, 5, 0], sizes = [8, 6, 16], strides = [1, 1, 1]} : vector<8x16x16xf32> to vector<8x6x16xf32>
    %cst_54 = arith.constant 0.266011715 : f32
    %199 = vector.broadcast %cst_54 : f32 to vector<8x6x16xf32>
    %200 = arith.mulf %199, %198 : vector<8x6x16xf32>
    %201 = arith.addf %197, %200 : vector<8x6x16xf32>
    %202 = vector.extract_strided_slice %4 {offsets = [0, 6, 0], sizes = [8, 6, 16], strides = [1, 1, 1]} : vector<8x16x16xf32> to vector<8x6x16xf32>
    %cst_55 = arith.constant 0.213005543 : f32
    %203 = vector.broadcast %cst_55 : f32 to vector<8x6x16xf32>
    %204 = arith.mulf %203, %202 : vector<8x6x16xf32>
    %205 = arith.addf %201, %204 : vector<8x6x16xf32>
    %206 = vector.extract_strided_slice %4 {offsets = [0, 7, 0], sizes = [8, 6, 16], strides = [1, 1, 1]} : vector<8x16x16xf32> to vector<8x6x16xf32>
    %cst_56 = arith.constant 0.109360687 : f32
    %207 = vector.broadcast %cst_56 : f32 to vector<8x6x16xf32>
    %208 = arith.mulf %207, %206 : vector<8x6x16xf32>
    %209 = arith.addf %205, %208 : vector<8x6x16xf32>
    %210 = vector.extract_strided_slice %4 {offsets = [0, 8, 0], sizes = [8, 6, 16], strides = [1, 1, 1]} : vector<8x16x16xf32> to vector<8x6x16xf32>
    %cst_57 = arith.constant 0.0360007733 : f32
    %211 = vector.broadcast %cst_57 : f32 to vector<8x6x16xf32>
    %212 = arith.mulf %211, %210 : vector<8x6x16xf32>
    %213 = arith.addf %209, %212 : vector<8x6x16xf32>
    %214 = vector.extract_strided_slice %4 {offsets = [0, 9, 0], sizes = [8, 6, 16], strides = [1, 1, 1]} : vector<8x16x16xf32> to vector<8x6x16xf32>
    %cst_58 = arith.constant 0.00759875821 : f32
    %215 = vector.broadcast %cst_58 : f32 to vector<8x6x16xf32>
    %216 = arith.mulf %215, %214 : vector<8x6x16xf32>
    %217 = arith.addf %213, %216 : vector<8x6x16xf32>
    %218 = vector.extract_strided_slice %4 {offsets = [0, 10, 0], sizes = [8, 6, 16], strides = [1, 1, 1]} : vector<8x16x16xf32> to vector<8x6x16xf32>
    %cst_59 = arith.constant 0.00102838012 : f32
    %219 = vector.broadcast %cst_59 : f32 to vector<8x6x16xf32>
    %220 = arith.mulf %219, %218 : vector<8x6x16xf32>
    %221 = arith.addf %217, %220 : vector<8x6x16xf32>
    %222 = vector.extract_strided_slice %221 {offsets = [0, 0, 0], sizes = [8, 6, 6], strides = [1, 1, 1]} : vector<8x6x16xf32> to vector<8x6x6xf32>
    %cst_60 = arith.constant 0.00102838012 : f32
    %223 = vector.broadcast %cst_60 : f32 to vector<8x6x6xf32>
    %224 = arith.mulf %223, %222 : vector<8x6x6xf32>
    %225 = vector.extract_strided_slice %221 {offsets = [0, 0, 1], sizes = [8, 6, 6], strides = [1, 1, 1]} : vector<8x6x16xf32> to vector<8x6x6xf32>
    %cst_61 = arith.constant 0.00759875821 : f32
    %226 = vector.broadcast %cst_61 : f32 to vector<8x6x6xf32>
    %227 = arith.mulf %226, %225 : vector<8x6x6xf32>
    %228 = arith.addf %224, %227 : vector<8x6x6xf32>
    %229 = vector.extract_strided_slice %221 {offsets = [0, 0, 2], sizes = [8, 6, 6], strides = [1, 1, 1]} : vector<8x6x16xf32> to vector<8x6x6xf32>
    %cst_62 = arith.constant 0.0360007733 : f32
    %230 = vector.broadcast %cst_62 : f32 to vector<8x6x6xf32>
    %231 = arith.mulf %230, %229 : vector<8x6x6xf32>
    %232 = arith.addf %228, %231 : vector<8x6x6xf32>
    %233 = vector.extract_strided_slice %221 {offsets = [0, 0, 3], sizes = [8, 6, 6], strides = [1, 1, 1]} : vector<8x6x16xf32> to vector<8x6x6xf32>
    %cst_63 = arith.constant 0.109360687 : f32
    %234 = vector.broadcast %cst_63 : f32 to vector<8x6x6xf32>
    %235 = arith.mulf %234, %233 : vector<8x6x6xf32>
    %236 = arith.addf %232, %235 : vector<8x6x6xf32>
    %237 = vector.extract_strided_slice %221 {offsets = [0, 0, 4], sizes = [8, 6, 6], strides = [1, 1, 1]} : vector<8x6x16xf32> to vector<8x6x6xf32>
    %cst_64 = arith.constant 0.213005543 : f32
    %238 = vector.broadcast %cst_64 : f32 to vector<8x6x6xf32>
    %239 = arith.mulf %238, %237 : vector<8x6x6xf32>
    %240 = arith.addf %236, %239 : vector<8x6x6xf32>
    %241 = vector.extract_strided_slice %221 {offsets = [0, 0, 5], sizes = [8, 6, 6], strides = [1, 1, 1]} : vector<8x6x16xf32> to vector<8x6x6xf32>
    %cst_65 = arith.constant 0.266011715 : f32
    %242 = vector.broadcast %cst_65 : f32 to vector<8x6x6xf32>
    %243 = arith.mulf %242, %241 : vector<8x6x6xf32>
    %244 = arith.addf %240, %243 : vector<8x6x6xf32>
    %245 = vector.extract_strided_slice %221 {offsets = [0, 0, 6], sizes = [8, 6, 6], strides = [1, 1, 1]} : vector<8x6x16xf32> to vector<8x6x6xf32>
    %cst_66 = arith.constant 0.213005543 : f32
    %246 = vector.broadcast %cst_66 : f32 to vector<8x6x6xf32>
    %247 = arith.mulf %246, %245 : vector<8x6x6xf32>
    %248 = arith.addf %244, %247 : vector<8x6x6xf32>
    %249 = vector.extract_strided_slice %221 {offsets = [0, 0, 7], sizes = [8, 6, 6], strides = [1, 1, 1]} : vector<8x6x16xf32> to vector<8x6x6xf32>
    %cst_67 = arith.constant 0.109360687 : f32
    %250 = vector.broadcast %cst_67 : f32 to vector<8x6x6xf32>
    %251 = arith.mulf %250, %249 : vector<8x6x6xf32>
    %252 = arith.addf %248, %251 : vector<8x6x6xf32>
    %253 = vector.extract_strided_slice %221 {offsets = [0, 0, 8], sizes = [8, 6, 6], strides = [1, 1, 1]} : vector<8x6x16xf32> to vector<8x6x6xf32>
    %cst_68 = arith.constant 0.0360007733 : f32
    %254 = vector.broadcast %cst_68 : f32 to vector<8x6x6xf32>
    %255 = arith.mulf %254, %253 : vector<8x6x6xf32>
    %256 = arith.addf %252, %255 : vector<8x6x6xf32>
    %257 = vector.extract_strided_slice %221 {offsets = [0, 0, 9], sizes = [8, 6, 6], strides = [1, 1, 1]} : vector<8x6x16xf32> to vector<8x6x6xf32>
    %cst_69 = arith.constant 0.00759875821 : f32
    %258 = vector.broadcast %cst_69 : f32 to vector<8x6x6xf32>
    %259 = arith.mulf %258, %257 : vector<8x6x6xf32>
    %260 = arith.addf %256, %259 : vector<8x6x6xf32>
    %261 = vector.extract_strided_slice %221 {offsets = [0, 0, 10], sizes = [8, 6, 6], strides = [1, 1, 1]} : vector<8x6x16xf32> to vector<8x6x6xf32>
    %cst_70 = arith.constant 0.00102838012 : f32
    %262 = vector.broadcast %cst_70 : f32 to vector<8x6x6xf32>
    %263 = arith.mulf %262, %261 : vector<8x6x6xf32>
    %264 = arith.addf %260, %263 : vector<8x6x6xf32>
    %265 = vector.extract_strided_slice %5 {offsets = [0, 0, 0], sizes = [8, 6, 16], strides = [1, 1, 1]} : vector<8x16x16xf32> to vector<8x6x16xf32>
    %cst_71 = arith.constant 0.00102838012 : f32
    %266 = vector.broadcast %cst_71 : f32 to vector<8x6x16xf32>
    %267 = arith.mulf %266, %265 : vector<8x6x16xf32>
    %268 = vector.extract_strided_slice %5 {offsets = [0, 1, 0], sizes = [8, 6, 16], strides = [1, 1, 1]} : vector<8x16x16xf32> to vector<8x6x16xf32>
    %cst_72 = arith.constant 0.00759875821 : f32
    %269 = vector.broadcast %cst_72 : f32 to vector<8x6x16xf32>
    %270 = arith.mulf %269, %268 : vector<8x6x16xf32>
    %271 = arith.addf %267, %270 : vector<8x6x16xf32>
    %272 = vector.extract_strided_slice %5 {offsets = [0, 2, 0], sizes = [8, 6, 16], strides = [1, 1, 1]} : vector<8x16x16xf32> to vector<8x6x16xf32>
    %cst_73 = arith.constant 0.0360007733 : f32
    %273 = vector.broadcast %cst_73 : f32 to vector<8x6x16xf32>
    %274 = arith.mulf %273, %272 : vector<8x6x16xf32>
    %275 = arith.addf %271, %274 : vector<8x6x16xf32>
    %276 = vector.extract_strided_slice %5 {offsets = [0, 3, 0], sizes = [8, 6, 16], strides = [1, 1, 1]} : vector<8x16x16xf32> to vector<8x6x16xf32>
    %cst_74 = arith.constant 0.109360687 : f32
    %277 = vector.broadcast %cst_74 : f32 to vector<8x6x16xf32>
    %278 = arith.mulf %277, %276 : vector<8x6x16xf32>
    %279 = arith.addf %275, %278 : vector<8x6x16xf32>
    %280 = vector.extract_strided_slice %5 {offsets = [0, 4, 0], sizes = [8, 6, 16], strides = [1, 1, 1]} : vector<8x16x16xf32> to vector<8x6x16xf32>
    %cst_75 = arith.constant 0.213005543 : f32
    %281 = vector.broadcast %cst_75 : f32 to vector<8x6x16xf32>
    %282 = arith.mulf %281, %280 : vector<8x6x16xf32>
    %283 = arith.addf %279, %282 : vector<8x6x16xf32>
    %284 = vector.extract_strided_slice %5 {offsets = [0, 5, 0], sizes = [8, 6, 16], strides = [1, 1, 1]} : vector<8x16x16xf32> to vector<8x6x16xf32>
    %cst_76 = arith.constant 0.266011715 : f32
    %285 = vector.broadcast %cst_76 : f32 to vector<8x6x16xf32>
    %286 = arith.mulf %285, %284 : vector<8x6x16xf32>
    %287 = arith.addf %283, %286 : vector<8x6x16xf32>
    %288 = vector.extract_strided_slice %5 {offsets = [0, 6, 0], sizes = [8, 6, 16], strides = [1, 1, 1]} : vector<8x16x16xf32> to vector<8x6x16xf32>
    %cst_77 = arith.constant 0.213005543 : f32
    %289 = vector.broadcast %cst_77 : f32 to vector<8x6x16xf32>
    %290 = arith.mulf %289, %288 : vector<8x6x16xf32>
    %291 = arith.addf %287, %290 : vector<8x6x16xf32>
    %292 = vector.extract_strided_slice %5 {offsets = [0, 7, 0], sizes = [8, 6, 16], strides = [1, 1, 1]} : vector<8x16x16xf32> to vector<8x6x16xf32>
    %cst_78 = arith.constant 0.109360687 : f32
    %293 = vector.broadcast %cst_78 : f32 to vector<8x6x16xf32>
    %294 = arith.mulf %293, %292 : vector<8x6x16xf32>
    %295 = arith.addf %291, %294 : vector<8x6x16xf32>
    %296 = vector.extract_strided_slice %5 {offsets = [0, 8, 0], sizes = [8, 6, 16], strides = [1, 1, 1]} : vector<8x16x16xf32> to vector<8x6x16xf32>
    %cst_79 = arith.constant 0.0360007733 : f32
    %297 = vector.broadcast %cst_79 : f32 to vector<8x6x16xf32>
    %298 = arith.mulf %297, %296 : vector<8x6x16xf32>
    %299 = arith.addf %295, %298 : vector<8x6x16xf32>
    %300 = vector.extract_strided_slice %5 {offsets = [0, 9, 0], sizes = [8, 6, 16], strides = [1, 1, 1]} : vector<8x16x16xf32> to vector<8x6x16xf32>
    %cst_80 = arith.constant 0.00759875821 : f32
    %301 = vector.broadcast %cst_80 : f32 to vector<8x6x16xf32>
    %302 = arith.mulf %301, %300 : vector<8x6x16xf32>
    %303 = arith.addf %299, %302 : vector<8x6x16xf32>
    %304 = vector.extract_strided_slice %5 {offsets = [0, 10, 0], sizes = [8, 6, 16], strides = [1, 1, 1]} : vector<8x16x16xf32> to vector<8x6x16xf32>
    %cst_81 = arith.constant 0.00102838012 : f32
    %305 = vector.broadcast %cst_81 : f32 to vector<8x6x16xf32>
    %306 = arith.mulf %305, %304 : vector<8x6x16xf32>
    %307 = arith.addf %303, %306 : vector<8x6x16xf32>
    %308 = vector.extract_strided_slice %307 {offsets = [0, 0, 0], sizes = [8, 6, 6], strides = [1, 1, 1]} : vector<8x6x16xf32> to vector<8x6x6xf32>
    %cst_82 = arith.constant 0.00102838012 : f32
    %309 = vector.broadcast %cst_82 : f32 to vector<8x6x6xf32>
    %310 = arith.mulf %309, %308 : vector<8x6x6xf32>
    %311 = vector.extract_strided_slice %307 {offsets = [0, 0, 1], sizes = [8, 6, 6], strides = [1, 1, 1]} : vector<8x6x16xf32> to vector<8x6x6xf32>
    %cst_83 = arith.constant 0.00759875821 : f32
    %312 = vector.broadcast %cst_83 : f32 to vector<8x6x6xf32>
    %313 = arith.mulf %312, %311 : vector<8x6x6xf32>
    %314 = arith.addf %310, %313 : vector<8x6x6xf32>
    %315 = vector.extract_strided_slice %307 {offsets = [0, 0, 2], sizes = [8, 6, 6], strides = [1, 1, 1]} : vector<8x6x16xf32> to vector<8x6x6xf32>
    %cst_84 = arith.constant 0.0360007733 : f32
    %316 = vector.broadcast %cst_84 : f32 to vector<8x6x6xf32>
    %317 = arith.mulf %316, %315 : vector<8x6x6xf32>
    %318 = arith.addf %314, %317 : vector<8x6x6xf32>
    %319 = vector.extract_strided_slice %307 {offsets = [0, 0, 3], sizes = [8, 6, 6], strides = [1, 1, 1]} : vector<8x6x16xf32> to vector<8x6x6xf32>
    %cst_85 = arith.constant 0.109360687 : f32
    %320 = vector.broadcast %cst_85 : f32 to vector<8x6x6xf32>
    %321 = arith.mulf %320, %319 : vector<8x6x6xf32>
    %322 = arith.addf %318, %321 : vector<8x6x6xf32>
    %323 = vector.extract_strided_slice %307 {offsets = [0, 0, 4], sizes = [8, 6, 6], strides = [1, 1, 1]} : vector<8x6x16xf32> to vector<8x6x6xf32>
    %cst_86 = arith.constant 0.213005543 : f32
    %324 = vector.broadcast %cst_86 : f32 to vector<8x6x6xf32>
    %325 = arith.mulf %324, %323 : vector<8x6x6xf32>
    %326 = arith.addf %322, %325 : vector<8x6x6xf32>
    %327 = vector.extract_strided_slice %307 {offsets = [0, 0, 5], sizes = [8, 6, 6], strides = [1, 1, 1]} : vector<8x6x16xf32> to vector<8x6x6xf32>
    %cst_87 = arith.constant 0.266011715 : f32
    %328 = vector.broadcast %cst_87 : f32 to vector<8x6x6xf32>
    %329 = arith.mulf %328, %327 : vector<8x6x6xf32>
    %330 = arith.addf %326, %329 : vector<8x6x6xf32>
    %331 = vector.extract_strided_slice %307 {offsets = [0, 0, 6], sizes = [8, 6, 6], strides = [1, 1, 1]} : vector<8x6x16xf32> to vector<8x6x6xf32>
    %cst_88 = arith.constant 0.213005543 : f32
    %332 = vector.broadcast %cst_88 : f32 to vector<8x6x6xf32>
    %333 = arith.mulf %332, %331 : vector<8x6x6xf32>
    %334 = arith.addf %330, %333 : vector<8x6x6xf32>
    %335 = vector.extract_strided_slice %307 {offsets = [0, 0, 7], sizes = [8, 6, 6], strides = [1, 1, 1]} : vector<8x6x16xf32> to vector<8x6x6xf32>
    %cst_89 = arith.constant 0.109360687 : f32
    %336 = vector.broadcast %cst_89 : f32 to vector<8x6x6xf32>
    %337 = arith.mulf %336, %335 : vector<8x6x6xf32>
    %338 = arith.addf %334, %337 : vector<8x6x6xf32>
    %339 = vector.extract_strided_slice %307 {offsets = [0, 0, 8], sizes = [8, 6, 6], strides = [1, 1, 1]} : vector<8x6x16xf32> to vector<8x6x6xf32>
    %cst_90 = arith.constant 0.0360007733 : f32
    %340 = vector.broadcast %cst_90 : f32 to vector<8x6x6xf32>
    %341 = arith.mulf %340, %339 : vector<8x6x6xf32>
    %342 = arith.addf %338, %341 : vector<8x6x6xf32>
    %343 = vector.extract_strided_slice %307 {offsets = [0, 0, 9], sizes = [8, 6, 6], strides = [1, 1, 1]} : vector<8x6x16xf32> to vector<8x6x6xf32>
    %cst_91 = arith.constant 0.00759875821 : f32
    %344 = vector.broadcast %cst_91 : f32 to vector<8x6x6xf32>
    %345 = arith.mulf %344, %343 : vector<8x6x6xf32>
    %346 = arith.addf %342, %345 : vector<8x6x6xf32>
    %347 = vector.extract_strided_slice %307 {offsets = [0, 0, 10], sizes = [8, 6, 6], strides = [1, 1, 1]} : vector<8x6x16xf32> to vector<8x6x6xf32>
    %cst_92 = arith.constant 0.00102838012 : f32
    %348 = vector.broadcast %cst_92 : f32 to vector<8x6x6xf32>
    %349 = arith.mulf %348, %347 : vector<8x6x6xf32>
    %350 = arith.addf %346, %349 : vector<8x6x6xf32>
    %351 = vector.extract_strided_slice %6 {offsets = [0, 0, 0], sizes = [8, 6, 16], strides = [1, 1, 1]} : vector<8x16x16xf32> to vector<8x6x16xf32>
    %cst_93 = arith.constant 0.00102838012 : f32
    %352 = vector.broadcast %cst_93 : f32 to vector<8x6x16xf32>
    %353 = arith.mulf %352, %351 : vector<8x6x16xf32>
    %354 = vector.extract_strided_slice %6 {offsets = [0, 1, 0], sizes = [8, 6, 16], strides = [1, 1, 1]} : vector<8x16x16xf32> to vector<8x6x16xf32>
    %cst_94 = arith.constant 0.00759875821 : f32
    %355 = vector.broadcast %cst_94 : f32 to vector<8x6x16xf32>
    %356 = arith.mulf %355, %354 : vector<8x6x16xf32>
    %357 = arith.addf %353, %356 : vector<8x6x16xf32>
    %358 = vector.extract_strided_slice %6 {offsets = [0, 2, 0], sizes = [8, 6, 16], strides = [1, 1, 1]} : vector<8x16x16xf32> to vector<8x6x16xf32>
    %cst_95 = arith.constant 0.0360007733 : f32
    %359 = vector.broadcast %cst_95 : f32 to vector<8x6x16xf32>
    %360 = arith.mulf %359, %358 : vector<8x6x16xf32>
    %361 = arith.addf %357, %360 : vector<8x6x16xf32>
    %362 = vector.extract_strided_slice %6 {offsets = [0, 3, 0], sizes = [8, 6, 16], strides = [1, 1, 1]} : vector<8x16x16xf32> to vector<8x6x16xf32>
    %cst_96 = arith.constant 0.109360687 : f32
    %363 = vector.broadcast %cst_96 : f32 to vector<8x6x16xf32>
    %364 = arith.mulf %363, %362 : vector<8x6x16xf32>
    %365 = arith.addf %361, %364 : vector<8x6x16xf32>
    %366 = vector.extract_strided_slice %6 {offsets = [0, 4, 0], sizes = [8, 6, 16], strides = [1, 1, 1]} : vector<8x16x16xf32> to vector<8x6x16xf32>
    %cst_97 = arith.constant 0.213005543 : f32
    %367 = vector.broadcast %cst_97 : f32 to vector<8x6x16xf32>
    %368 = arith.mulf %367, %366 : vector<8x6x16xf32>
    %369 = arith.addf %365, %368 : vector<8x6x16xf32>
    %370 = vector.extract_strided_slice %6 {offsets = [0, 5, 0], sizes = [8, 6, 16], strides = [1, 1, 1]} : vector<8x16x16xf32> to vector<8x6x16xf32>
    %cst_98 = arith.constant 0.266011715 : f32
    %371 = vector.broadcast %cst_98 : f32 to vector<8x6x16xf32>
    %372 = arith.mulf %371, %370 : vector<8x6x16xf32>
    %373 = arith.addf %369, %372 : vector<8x6x16xf32>
    %374 = vector.extract_strided_slice %6 {offsets = [0, 6, 0], sizes = [8, 6, 16], strides = [1, 1, 1]} : vector<8x16x16xf32> to vector<8x6x16xf32>
    %cst_99 = arith.constant 0.213005543 : f32
    %375 = vector.broadcast %cst_99 : f32 to vector<8x6x16xf32>
    %376 = arith.mulf %375, %374 : vector<8x6x16xf32>
    %377 = arith.addf %373, %376 : vector<8x6x16xf32>
    %378 = vector.extract_strided_slice %6 {offsets = [0, 7, 0], sizes = [8, 6, 16], strides = [1, 1, 1]} : vector<8x16x16xf32> to vector<8x6x16xf32>
    %cst_100 = arith.constant 0.109360687 : f32
    %379 = vector.broadcast %cst_100 : f32 to vector<8x6x16xf32>
    %380 = arith.mulf %379, %378 : vector<8x6x16xf32>
    %381 = arith.addf %377, %380 : vector<8x6x16xf32>
    %382 = vector.extract_strided_slice %6 {offsets = [0, 8, 0], sizes = [8, 6, 16], strides = [1, 1, 1]} : vector<8x16x16xf32> to vector<8x6x16xf32>
    %cst_101 = arith.constant 0.0360007733 : f32
    %383 = vector.broadcast %cst_101 : f32 to vector<8x6x16xf32>
    %384 = arith.mulf %383, %382 : vector<8x6x16xf32>
    %385 = arith.addf %381, %384 : vector<8x6x16xf32>
    %386 = vector.extract_strided_slice %6 {offsets = [0, 9, 0], sizes = [8, 6, 16], strides = [1, 1, 1]} : vector<8x16x16xf32> to vector<8x6x16xf32>
    %cst_102 = arith.constant 0.00759875821 : f32
    %387 = vector.broadcast %cst_102 : f32 to vector<8x6x16xf32>
    %388 = arith.mulf %387, %386 : vector<8x6x16xf32>
    %389 = arith.addf %385, %388 : vector<8x6x16xf32>
    %390 = vector.extract_strided_slice %6 {offsets = [0, 10, 0], sizes = [8, 6, 16], strides = [1, 1, 1]} : vector<8x16x16xf32> to vector<8x6x16xf32>
    %cst_103 = arith.constant 0.00102838012 : f32
    %391 = vector.broadcast %cst_103 : f32 to vector<8x6x16xf32>
    %392 = arith.mulf %391, %390 : vector<8x6x16xf32>
    %393 = arith.addf %389, %392 : vector<8x6x16xf32>
    %394 = vector.extract_strided_slice %393 {offsets = [0, 0, 0], sizes = [8, 6, 6], strides = [1, 1, 1]} : vector<8x6x16xf32> to vector<8x6x6xf32>
    %cst_104 = arith.constant 0.00102838012 : f32
    %395 = vector.broadcast %cst_104 : f32 to vector<8x6x6xf32>
    %396 = arith.mulf %395, %394 : vector<8x6x6xf32>
    %397 = vector.extract_strided_slice %393 {offsets = [0, 0, 1], sizes = [8, 6, 6], strides = [1, 1, 1]} : vector<8x6x16xf32> to vector<8x6x6xf32>
    %cst_105 = arith.constant 0.00759875821 : f32
    %398 = vector.broadcast %cst_105 : f32 to vector<8x6x6xf32>
    %399 = arith.mulf %398, %397 : vector<8x6x6xf32>
    %400 = arith.addf %396, %399 : vector<8x6x6xf32>
    %401 = vector.extract_strided_slice %393 {offsets = [0, 0, 2], sizes = [8, 6, 6], strides = [1, 1, 1]} : vector<8x6x16xf32> to vector<8x6x6xf32>
    %cst_106 = arith.constant 0.0360007733 : f32
    %402 = vector.broadcast %cst_106 : f32 to vector<8x6x6xf32>
    %403 = arith.mulf %402, %401 : vector<8x6x6xf32>
    %404 = arith.addf %400, %403 : vector<8x6x6xf32>
    %405 = vector.extract_strided_slice %393 {offsets = [0, 0, 3], sizes = [8, 6, 6], strides = [1, 1, 1]} : vector<8x6x16xf32> to vector<8x6x6xf32>
    %cst_107 = arith.constant 0.109360687 : f32
    %406 = vector.broadcast %cst_107 : f32 to vector<8x6x6xf32>
    %407 = arith.mulf %406, %405 : vector<8x6x6xf32>
    %408 = arith.addf %404, %407 : vector<8x6x6xf32>
    %409 = vector.extract_strided_slice %393 {offsets = [0, 0, 4], sizes = [8, 6, 6], strides = [1, 1, 1]} : vector<8x6x16xf32> to vector<8x6x6xf32>
    %cst_108 = arith.constant 0.213005543 : f32
    %410 = vector.broadcast %cst_108 : f32 to vector<8x6x6xf32>
    %411 = arith.mulf %410, %409 : vector<8x6x6xf32>
    %412 = arith.addf %408, %411 : vector<8x6x6xf32>
    %413 = vector.extract_strided_slice %393 {offsets = [0, 0, 5], sizes = [8, 6, 6], strides = [1, 1, 1]} : vector<8x6x16xf32> to vector<8x6x6xf32>
    %cst_109 = arith.constant 0.266011715 : f32
    %414 = vector.broadcast %cst_109 : f32 to vector<8x6x6xf32>
    %415 = arith.mulf %414, %413 : vector<8x6x6xf32>
    %416 = arith.addf %412, %415 : vector<8x6x6xf32>
    %417 = vector.extract_strided_slice %393 {offsets = [0, 0, 6], sizes = [8, 6, 6], strides = [1, 1, 1]} : vector<8x6x16xf32> to vector<8x6x6xf32>
    %cst_110 = arith.constant 0.213005543 : f32
    %418 = vector.broadcast %cst_110 : f32 to vector<8x6x6xf32>
    %419 = arith.mulf %418, %417 : vector<8x6x6xf32>
    %420 = arith.addf %416, %419 : vector<8x6x6xf32>
    %421 = vector.extract_strided_slice %393 {offsets = [0, 0, 7], sizes = [8, 6, 6], strides = [1, 1, 1]} : vector<8x6x16xf32> to vector<8x6x6xf32>
    %cst_111 = arith.constant 0.109360687 : f32
    %422 = vector.broadcast %cst_111 : f32 to vector<8x6x6xf32>
    %423 = arith.mulf %422, %421 : vector<8x6x6xf32>
    %424 = arith.addf %420, %423 : vector<8x6x6xf32>
    %425 = vector.extract_strided_slice %393 {offsets = [0, 0, 8], sizes = [8, 6, 6], strides = [1, 1, 1]} : vector<8x6x16xf32> to vector<8x6x6xf32>
    %cst_112 = arith.constant 0.0360007733 : f32
    %426 = vector.broadcast %cst_112 : f32 to vector<8x6x6xf32>
    %427 = arith.mulf %426, %425 : vector<8x6x6xf32>
    %428 = arith.addf %424, %427 : vector<8x6x6xf32>
    %429 = vector.extract_strided_slice %393 {offsets = [0, 0, 9], sizes = [8, 6, 6], strides = [1, 1, 1]} : vector<8x6x16xf32> to vector<8x6x6xf32>
    %cst_113 = arith.constant 0.00759875821 : f32
    %430 = vector.broadcast %cst_113 : f32 to vector<8x6x6xf32>
    %431 = arith.mulf %430, %429 : vector<8x6x6xf32>
    %432 = arith.addf %428, %431 : vector<8x6x6xf32>
    %433 = vector.extract_strided_slice %393 {offsets = [0, 0, 10], sizes = [8, 6, 6], strides = [1, 1, 1]} : vector<8x6x16xf32> to vector<8x6x6xf32>
    %cst_114 = arith.constant 0.00102838012 : f32
    %434 = vector.broadcast %cst_114 : f32 to vector<8x6x6xf32>
    %435 = arith.mulf %434, %433 : vector<8x6x6xf32>
    %436 = arith.addf %432, %435 : vector<8x6x6xf32>
    %437 = arith.mulf %92, %92 : vector<8x6x6xf32>
    %438 = arith.mulf %178, %178 : vector<8x6x6xf32>
    %439 = arith.mulf %92, %178 : vector<8x6x6xf32>
    %440 = arith.subf %264, %437 : vector<8x6x6xf32>
    %441 = arith.subf %350, %438 : vector<8x6x6xf32>
    %442 = arith.subf %436, %439 : vector<8x6x6xf32>
    %cst_115 = arith.constant 2.000000e+00 : f32
    %443 = vector.broadcast %cst_115 : f32 to vector<8x6x6xf32>
    %444 = arith.mulf %443, %442 : vector<8x6x6xf32>
    %445 = vector.broadcast %3 : f32 to vector<8x6x6xf32>
    %446 = arith.addf %444, %445 : vector<8x6x6xf32>
    %447 = arith.addf %440, %441 : vector<8x6x6xf32>
    %448 = vector.broadcast %3 : f32 to vector<8x6x6xf32>
    %449 = arith.addf %447, %448 : vector<8x6x6xf32>
    %cst_116 = arith.constant 2.000000e+00 : f32
    %450 = vector.broadcast %cst_116 : f32 to vector<8x6x6xf32>
    %451 = arith.mulf %450, %439 : vector<8x6x6xf32>
    %452 = vector.broadcast %2 : f32 to vector<8x6x6xf32>
    %453 = arith.addf %451, %452 : vector<8x6x6xf32>
    %454 = arith.mulf %453, %446 : vector<8x6x6xf32>
    %455 = arith.addf %437, %438 : vector<8x6x6xf32>
    %456 = vector.broadcast %2 : f32 to vector<8x6x6xf32>
    %457 = arith.addf %455, %456 : vector<8x6x6xf32>
    %458 = arith.mulf %457, %449 : vector<8x6x6xf32>
    %459 = arith.divf %454, %458 : vector<8x6x6xf32>
    %c8_i32 = arith.constant 8 : i32
    %460 = arith.muli %arg0, %c8_i32 : i32
    %461 = tpu.iota {dimensions = array<i32: 0>} : vector<8x1x1xi32>
    %462 = vector.broadcast %460 : i32 to vector<8x1x1xi32>
    %463 = arith.addi %462, %461 : vector<8x1x1xi32>
    %c8_i32_117 = arith.constant 8 : i32
    %464 = vector.broadcast %c8_i32_117 : i32 to vector<8x1x1xi32>
    %465 = arith.cmpi slt, %463, %464 : vector<8x1x1xi32>
    %466 = arith.extui %465 : vector<8x1x1xi1> to vector<8x1x1xi32>
    %467 = arith.sitofp %466 : vector<8x1x1xi32> to vector<8x1x1xf32>
    %468 = vector.broadcast %467 : vector<8x1x1xf32> to vector<8x6x6xf32>
    %469 = arith.mulf %459, %468 : vector<8x6x6xf32>
    %470 = vector.shape_cast %469 : vector<8x6x6xf32> to vector<1x8x6x6xf32>
    %cst_118 = arith.constant dense<0.000000e+00> : vector<1xf32>
    %471 = vector.multi_reduction <add>, %470, %cst_118 [1, 2, 3] : vector<1x8x6x6xf32> to vector<1xf32>
    %472 = vector.shape_cast %471 : vector<1xf32> to vector<1x1x1x1xf32>
    %473 = vector.extract %472[0, 0, 0, 0] : f32 from vector<1x1x1x1xf32>
    %474 = vector.broadcast %473 : f32 to vector<1x8x128xf32>
    %c0_119 = arith.constant 0 : index
    %c0_120 = arith.constant 0 : index
    %c0_121 = arith.constant 0 : index
    %475 = vector.load %arg4[%c0_119, %c0_120, %c0_121] : memref<1x8x128xf32, #tpu.memory_space<vmem>>, vector<1x8x128xf32>
    tpu.vector_store %arg4[%c0_119, %c0_120, %c0_121], %474 {strides = array<i32>} : memref<1x8x128xf32, #tpu.memory_space<vmem>>, vector<1x8x128xf32>,
    return
  }
  func.func @transform_0(%arg0: i32, %arg1: memref<2xf32, #tpu.memory_space<smem>>) -> (i32, i32, i32) {
    %c0_i32 = arith.constant 0 : i32
    %c0_i32_0 = arith.constant 0 : i32
    %c0_i32_1 = arith.constant 0 : i32
    return %arg0, %c0_i32, %c0_i32_0 : i32, i32, i32
  }
  func.func @transform_1(%arg0: i32, %arg1: memref<2xf32, #tpu.memory_space<smem>>) -> (i32, i32, i32) {
    %c0_i32 = arith.constant 0 : i32
    %c0_i32_0 = arith.constant 0 : i32
    %c0_i32_1 = arith.constant 0 : i32
    return %arg0, %c0_i32, %c0_i32_0 : i32, i32, i32
  }
  func.func @transform_2(%arg0: i32, %arg1: memref<2xf32, #tpu.memory_space<smem>>) -> (i32, i32, i32) {
    %c0_i32 = arith.constant 0 : i32
    %c0_i32_0 = arith.constant 0 : i32
    %c0_i32_1 = arith.constant 0 : i32
    return %arg0, %c0_i32, %c0_i32_0 : i32, i32, i32
  }
}

</mosaic_0001>

<llo_original>
// kernel: tpu_custom_call.1
$region0: #{tpu_custom_call.1}
  #allocation0 [shape = 'u32[]', space=smem, size = 0x4, offset = 0x4, fixed_abs, tag = 'smem constant byte address 0x4 - core index']
  #allocation1 [shape = 'u32[144,128]{1,0:T(1,128)}', space=vmem, size = 0x12000, scoped, tag = 'internal scratch']
  #allocation2 [shape = 's32[1]{0}', space=sflag, size = 0x4, scoped, tag = 'scoped memory for tpu_custom_call.1']
  #allocation3 [shape = 'u8[512]{0}', space=smem, size = 0x200, scoped, tag = 'prefetched SMEM operand 0']
  %s0 = inlined_call_operand.hbm [shape: f32[2], index: 0, kind: input, shape index: {}]
  %s1 = inlined_call_operand.hbm [shape: f32[8,16,16], index: 1, kind: input, shape index: {}]
  %s2 = inlined_call_operand.hbm [shape: f32[8,16,16], index: 2, kind: input, shape index: {}]
  %s3 = inlined_call_operand.hbm [shape: f32[1,8,128], index: 3, kind: output, shape index: {}]
  %s4 = sld [smem:[#allocation0]]
  $region26: #{tpu_custom_call.1} parent=0
    _
  %s6 = ssub.s32 1, %s4
  %s7 = scalar_select 0, %s6, %s4
  %9 = dma.hbm_to_smem %s0, 16, [#allocation3], [#allocation2]
  %10 = dma.done [#allocation2], 16
  %11 = sfence
  $region1: #{tpu_custom_call.1} parent=0
    #allocation4 [shape = 'u8[65536]{0}', space=vmem, size = 0x10000, scoped, tag = 'input window, operand 1, single buffered']
    #allocation5 [shape = 's32[1]{0}', space=sflag, size = 0x4, scoped, tag = 'scoped memory for tpu_custom_call.1']
    #allocation6 [shape = 's32[1]{0}', space=sflag, size = 0x4, scoped, tag = 'scoped memory for tpu_custom_call.1']
    #allocation7 [shape = 'u8[65536]{0}', space=vmem, size = 0x10000, scoped, tag = 'input window, operand 2, single buffered']
    #allocation8 [shape = 's32[1]{0}', space=sflag, size = 0x4, scoped, tag = 'scoped memory for tpu_custom_call.1']
    #allocation9 [shape = 'u8[4096]{0}', space=vmem, size = 0x1000, scoped, tag = 'output window, operand 0, single buffered']
    %12 = vsyncpa [#allocation5], 0
    %13 = vsyncpa [#allocation8], 0
    %14 = vsyncpa [#allocation6], 0
    // Predicated region
    $region2: #{tpu_custom_call.1} parent=1 // pred_check
      _
    $region3: #{tpu_custom_call.1} parent=1 // pred_check_branch
      %16 = sbr.rel (0) target = $region5
    $region4: #{tpu_custom_call.1} parent=1 // pred_region
      %s18 = ssub.s32 2048, 2048
      %19 = vsyncadd [#allocation5], %s18
      %s20 = sshll.u32 [#allocation4], 4
      %s21 = int_to_ptr.vmem [resolvable:$true] %s20
      %26 = dma.hbm_to_vmem [thread:$0]  %s1, 2048, %s21, [#allocation5], 128, 128, 8
    $region5: #{tpu_custom_call.1} parent=1 // pred_fallthru
      _
    // Predicated region
    $region6: #{tpu_custom_call.1} parent=1 // pred_check
      _
    $region7: #{tpu_custom_call.1} parent=1 // pred_check_branch
      %28 = sbr.rel (0) target = $region9
    $region8: #{tpu_custom_call.1} parent=1 // pred_region
      %s30 = ssub.s32 2048, 2048
      %31 = vsyncadd [#allocation8], %s30
      %s32 = sshll.u32 [#allocation7], 4
      %s33 = int_to_ptr.vmem [resolvable:$true] %s32
      %38 = dma.hbm_to_vmem [thread:$0]  %s2, 2048, %s33, [#allocation8], 128, 128, 8
    $region9: #{tpu_custom_call.1} parent=1 // pred_fallthru
      _
    // Predicated region
    $region10: #{tpu_custom_call.1} parent=1 // pred_check
      _
    $region11: #{tpu_custom_call.1} parent=1 // pred_check_branch
      %40 = sbr.rel (0) target = $region13
    $region12: #{tpu_custom_call.1} parent=1 // pred_region
      %41 = dma.done [#allocation5], 2048
    $region13: #{tpu_custom_call.1} parent=1 // pred_fallthru
      _
    // Predicated region
    $region14: #{tpu_custom_call.1} parent=1 // pred_check
      _
    $region15: #{tpu_custom_call.1} parent=1 // pred_check_branch
      %43 = sbr.rel (0) target = $region17
    $region16: #{tpu_custom_call.1} parent=1 // pred_region
      %44 = dma.done [#allocation8], 2048
    $region17: #{tpu_custom_call.1} parent=1 // pred_fallthru
      _
    %v45 = vld [vmem:[#allocation4] sm:$0xff]
    %v46 = vld [vmem:[#allocation4 + $0x8] sm:$0xff]
    %v47 = vld [vmem:[#allocation4 + $0x10] sm:$0xff]
    %v48 = vld [vmem:[#allocation4 + $0x18] sm:$0xff]
    %v49 = vld [vmem:[#allocation4 + $0x20] sm:$0xff]
    %v50 = vld [vmem:[#allocation4 + $0x28] sm:$0xff]
    %v51 = vld [vmem:[#allocation4 + $0x30] sm:$0xff]
    %v52 = vld [vmem:[#allocation4 + $0x38] sm:$0xff]
    %v53 = vld [vmem:[#allocation4 + $0x40] sm:$0xff]
    %v54 = vld [vmem:[#allocation4 + $0x48] sm:$0xff]
    %v55 = vld [vmem:[#allocation4 + $0x50] sm:$0xff]
    %v56 = vld [vmem:[#allocation4 + $0x58] sm:$0xff]
    %v57 = vld [vmem:[#allocation4 + $0x60] sm:$0xff]
    %v58 = vld [vmem:[#allocation4 + $0x68] sm:$0xff]
    %v59 = vld [vmem:[#allocation4 + $0x70] sm:$0xff]
    %v60 = vld [vmem:[#allocation4 + $0x78] sm:$0xff]
    %v61 = vld [vmem:[#allocation7] sm:$0xff]
    %v62 = vld [vmem:[#allocation7 + $0x8] sm:$0xff]
    %v63 = vld [vmem:[#allocation7 + $0x10] sm:$0xff]
    %v64 = vld [vmem:[#allocation7 + $0x18] sm:$0xff]
    %v65 = vld [vmem:[#allocation7 + $0x20] sm:$0xff]
    %v66 = vld [vmem:[#allocation7 + $0x28] sm:$0xff]
    %v67 = vld [vmem:[#allocation7 + $0x30] sm:$0xff]
    %v68 = vld [vmem:[#allocation7 + $0x38] sm:$0xff]
    %v69 = vld [vmem:[#allocation7 + $0x40] sm:$0xff]
    %v70 = vld [vmem:[#allocation7 + $0x48] sm:$0xff]
    %v71 = vld [vmem:[#allocation7 + $0x50] sm:$0xff]
    %v72 = vld [vmem:[#allocation7 + $0x58] sm:$0xff]
    %v73 = vld [vmem:[#allocation7 + $0x60] sm:$0xff]
    %v74 = vld [vmem:[#allocation7 + $0x68] sm:$0xff]
    %v75 = vld [vmem:[#allocation7 + $0x70] sm:$0xff]
    %v76 = vld [vmem:[#allocation7 + $0x78] sm:$0xff]
    %s77 = sld [smem:[#allocation3]]
    %s78 = sld [smem:[#allocation3 + $0x1]]
    %v79 = vmul.f32 %v45, %v45
    %v80 = vmul.f32 %v46, %v46
    %v81 = vmul.f32 %v47, %v47
    %v82 = vmul.f32 %v48, %v48
    %v83 = vmul.f32 %v49, %v49
    %v84 = vmul.f32 %v50, %v50
    %v85 = vmul.f32 %v51, %v51
    %v86 = vmul.f32 %v52, %v52
    %v87 = vmul.f32 %v53, %v53
    %v88 = vmul.f32 %v54, %v54
    %v89 = vmul.f32 %v55, %v55
    %v90 = vmul.f32 %v56, %v56
    %v91 = vmul.f32 %v57, %v57
    %v92 = vmul.f32 %v58, %v58
    %v93 = vmul.f32 %v59, %v59
    %v94 = vmul.f32 %v60, %v60
    %v95 = vmul.f32 %v61, %v61
    %v96 = vmul.f32 %v62, %v62
    %v97 = vmul.f32 %v63, %v63
    %v98 = vmul.f32 %v64, %v64
    %v99 = vmul.f32 %v65, %v65
    %v100 = vmul.f32 %v66, %v66
    %v101 = vmul.f32 %v67, %v67
    %v102 = vmul.f32 %v68, %v68
    %v103 = vmul.f32 %v69, %v69
    %v104 = vmul.f32 %v70, %v70
    %v105 = vmul.f32 %v71, %v71
    %v106 = vmul.f32 %v72, %v72
    %v107 = vmul.f32 %v73, %v73
    %v108 = vmul.f32 %v74, %v74
    %v109 = vmul.f32 %v75, %v75
    %v110 = vmul.f32 %v76, %v76
    %v111 = vmul.f32 %v45, %v61
    %v112 = vmul.f32 %v46, %v62
    %v113 = vmul.f32 %v47, %v63
    %v114 = vmul.f32 %v48, %v64
    %v115 = vmul.f32 %v49, %v65
    %v116 = vmul.f32 %v50, %v66
    %v117 = vmul.f32 %v51, %v67
    %v118 = vmul.f32 %v52, %v68
    %v119 = vmul.f32 %v53, %v69
    %v120 = vmul.f32 %v54, %v70
    %v121 = vmul.f32 %v55, %v71
    %v122 = vmul.f32 %v56, %v72
    %v123 = vmul.f32 %v57, %v73
    %v124 = vmul.f32 %v58, %v74
    %v125 = vmul.f32 %v59, %v75
    %v126 = vmul.f32 %v60, %v76
    %v127 = vmul.f32 %v45, 0.0010283801
    %v128 = vmul.f32 %v47, 0.0010283801
    %v129 = vmul.f32 %v49, 0.0010283801
    %v130 = vmul.f32 %v51, 0.0010283801
    %v131 = vmul.f32 %v53, 0.0010283801
    %v132 = vmul.f32 %v55, 0.0010283801
    %v133 = vmul.f32 %v57, 0.0010283801
    %v134 = vmul.f32 %v59, 0.0010283801
    %v135 = vmul.f32 %v45, 0.007598758
    %v136 = vmul.f32 %v47, 0.007598758
    %v137 = vmul.f32 %v49, 0.007598758
    %v138 = vmul.f32 %v51, 0.007598758
    %v139 = vmul.f32 %v53, 0.007598758
    %v140 = vmul.f32 %v55, 0.007598758
    %v141 = vmul.f32 %v57, 0.007598758
    %v142 = vmul.f32 %v59, 0.007598758
    %v151 = vrot.slane %v135, 1
    %v152 = vrot.slane %v136, 1
    %v153 = vrot.slane %v137, 1
    %v154 = vrot.slane %v138, 1
    %v155 = vrot.slane %v139, 1
    %v156 = vrot.slane %v140, 1
    %v157 = vrot.slane %v141, 1
    %v158 = vrot.slane %v142, 1
    %v167 = vadd.f32 %v127, %v151
    %v168 = vadd.f32 %v128, %v152
    %v169 = vadd.f32 %v129, %v153
    %v170 = vadd.f32 %v130, %v154
    %v171 = vadd.f32 %v131, %v155
    %v172 = vadd.f32 %v132, %v156
    %v173 = vadd.f32 %v133, %v157
    %v174 = vadd.f32 %v134, %v158
    %v175 = vmul.f32 %v45, 0.036000773
    %v176 = vmul.f32 %v47, 0.036000773
    %v177 = vmul.f32 %v49, 0.036000773
    %v178 = vmul.f32 %v51, 0.036000773
    %v179 = vmul.f32 %v53, 0.036000773
    %v180 = vmul.f32 %v55, 0.036000773
    %v181 = vmul.f32 %v57, 0.036000773
    %v182 = vmul.f32 %v59, 0.036000773
    %v191 = vrot.slane %v175, 2
    %v192 = vrot.slane %v176, 2
    %v193 = vrot.slane %v177, 2
    %v194 = vrot.slane %v178, 2
    %v195 = vrot.slane %v179, 2
    %v196 = vrot.slane %v180, 2
    %v197 = vrot.slane %v181, 2
    %v198 = vrot.slane %v182, 2
    %v207 = vadd.f32 %v167, %v191
    %v208 = vadd.f32 %v168, %v192
    %v209 = vadd.f32 %v169, %v193
    %v210 = vadd.f32 %v170, %v194
    %v211 = vadd.f32 %v171, %v195
    %v212 = vadd.f32 %v172, %v196
    %v213 = vadd.f32 %v173, %v197
    %v214 = vadd.f32 %v174, %v198
    %v215 = vmul.f32 %v45, 0.10936069
    %v216 = vmul.f32 %v46, 0.10936069
    %v217 = vmul.f32 %v47, 0.10936069
    %v218 = vmul.f32 %v48, 0.10936069
    %v219 = vmul.f32 %v49, 0.10936069
    %v220 = vmul.f32 %v50, 0.10936069
    %v221 = vmul.f32 %v51, 0.10936069
    %v222 = vmul.f32 %v52, 0.10936069
    %v223 = vmul.f32 %v53, 0.10936069
    %v224 = vmul.f32 %v54, 0.10936069
    %v225 = vmul.f32 %v55, 0.10936069
    %v226 = vmul.f32 %v56, 0.10936069
    %v227 = vmul.f32 %v57, 0.10936069
    %v228 = vmul.f32 %v58, 0.10936069
    %v229 = vmul.f32 %v59, 0.10936069
    %v230 = vmul.f32 %v60, 0.10936069
    %vm247 = vcmask 1044480
    %v248 = vrot.slane %v215, 3
    %v249 = vrot.slane %v216, 3
    %v250 = vsel %vm247, %v248, %v249
    %v251 = vrot.slane %v217, 3
    %v252 = vrot.slane %v218, 3
    %v253 = vsel %vm247, %v251, %v252
    %v254 = vrot.slane %v219, 3
    %v255 = vrot.slane %v220, 3
    %v256 = vsel %vm247, %v254, %v255
    %v257 = vrot.slane %v221, 3
    %v258 = vrot.slane %v222, 3
    %v259 = vsel %vm247, %v257, %v258
    %v260 = vrot.slane %v223, 3
    %v261 = vrot.slane %v224, 3
    %v262 = vsel %vm247, %v260, %v261
    %v263 = vrot.slane %v225, 3
    %v264 = vrot.slane %v226, 3
    %v265 = vsel %vm247, %v263, %v264
    %v266 = vrot.slane %v227, 3
    %v267 = vrot.slane %v228, 3
    %v268 = vsel %vm247, %v266, %v267
    %v269 = vrot.slane %v229, 3
    %v270 = vrot.slane %v230, 3
    %v271 = vsel %vm247, %v269, %v270
    %v280 = vadd.f32 %v207, %v250
    %v281 = vadd.f32 %v208, %v253
    %v282 = vadd.f32 %v209, %v256
    %v283 = vadd.f32 %v210, %v259
    %v284 = vadd.f32 %v211, %v262
    %v285 = vadd.f32 %v212, %v265
    %v286 = vadd.f32 %v213, %v268
    %v287 = vadd.f32 %v214, %v271
    %v288 = vmul.f32 %v45, 0.21300554
    %v289 = vmul.f32 %v46, 0.21300554
    %v290 = vmul.f32 %v47, 0.21300554
    %v291 = vmul.f32 %v48, 0.21300554
    %v292 = vmul.f32 %v49, 0.21300554
    %v293 = vmul.f32 %v50, 0.21300554
    %v294 = vmul.f32 %v51, 0.21300554
    %v295 = vmul.f32 %v52, 0.21300554
    %v296 = vmul.f32 %v53, 0.21300554
    %v297 = vmul.f32 %v54, 0.21300554
    %v298 = vmul.f32 %v55, 0.21300554
    %v299 = vmul.f32 %v56, 0.21300554
    %v300 = vmul.f32 %v57, 0.21300554
    %v301 = vmul.f32 %v58, 0.21300554
    %v302 = vmul.f32 %v59, 0.21300554
    %v303 = vmul.f32 %v60, 0.21300554
    %vm320 = vcmask 1043456
    %v321 = vrot.slane %v288, 4
    %v322 = vrot.slane %v289, 4
    %v323 = vsel %vm320, %v321, %v322
    %v324 = vrot.slane %v290, 4
    %v325 = vrot.slane %v291, 4
    %v326 = vsel %vm320, %v324, %v325
    %v327 = vrot.slane %v292, 4
    %v328 = vrot.slane %v293, 4
    %v329 = vsel %vm320, %v327, %v328
    %v330 = vrot.slane %v294, 4
    %v331 = vrot.slane %v295, 4
    %v332 = vsel %vm320, %v330, %v331
    %v333 = vrot.slane %v296, 4
    %v334 = vrot.slane %v297, 4
    %v335 = vsel %vm320, %v333, %v334
    %v336 = vrot.slane %v298, 4
    %v337 = vrot.slane %v299, 4
    %v338 = vsel %vm320, %v336, %v337
    %v339 = vrot.slane %v300, 4
    %v340 = vrot.slane %v301, 4
    %v341 = vsel %vm320, %v339, %v340
    %v342 = vrot.slane %v302, 4
    %v343 = vrot.slane %v303, 4
    %v344 = vsel %vm320, %v342, %v343
    %v353 = vadd.f32 %v280, %v323
    %v354 = vadd.f32 %v281, %v326
    %v355 = vadd.f32 %v282, %v329
    %v356 = vadd.f32 %v283, %v332
    %v357 = vadd.f32 %v284, %v335
    %v358 = vadd.f32 %v285, %v338
    %v359 = vadd.f32 %v286, %v341
    %v360 = vadd.f32 %v287, %v344
    %v361 = vmul.f32 %v45, 0.26601171
    %v362 = vmul.f32 %v46, 0.26601171
    %v363 = vmul.f32 %v47, 0.26601171
    %v364 = vmul.f32 %v48, 0.26601171
    %v365 = vmul.f32 %v49, 0.26601171
    %v366 = vmul.f32 %v50, 0.26601171
    %v367 = vmul.f32 %v51, 0.26601171
    %v368 = vmul.f32 %v52, 0.26601171
    %v369 = vmul.f32 %v53, 0.26601171
    %v370 = vmul.f32 %v54, 0.26601171
    %v371 = vmul.f32 %v55, 0.26601171
    %v372 = vmul.f32 %v56, 0.26601171
    %v373 = vmul.f32 %v57, 0.26601171
    %v374 = vmul.f32 %v58, 0.26601171
    %v375 = vmul.f32 %v59, 0.26601171
    %v376 = vmul.f32 %v60, 0.26601171
    %vm393 = vcmask 1042432
    %v394 = vrot.slane %v361, 5
    %v395 = vrot.slane %v362, 5
    %v396 = vsel %vm393, %v394, %v395
    %v397 = vrot.slane %v363, 5
    %v398 = vrot.slane %v364, 5
    %v399 = vsel %vm393, %v397, %v398
    %v400 = vrot.slane %v365, 5
    %v401 = vrot.slane %v366, 5
    %v402 = vsel %vm393, %v400, %v401
    %v403 = vrot.slane %v367, 5
    %v404 = vrot.slane %v368, 5
    %v405 = vsel %vm393, %v403, %v404
    %v406 = vrot.slane %v369, 5
    %v407 = vrot.slane %v370, 5
    %v408 = vsel %vm393, %v406, %v407
    %v409 = vrot.slane %v371, 5
    %v410 = vrot.slane %v372, 5
    %v411 = vsel %vm393, %v409, %v410
    %v412 = vrot.slane %v373, 5
    %v413 = vrot.slane %v374, 5
    %v414 = vsel %vm393, %v412, %v413
    %v415 = vrot.slane %v375, 5
    %v416 = vrot.slane %v376, 5
    %v417 = vsel %vm393, %v415, %v416
    %v426 = vadd.f32 %v353, %v396
    %v427 = vadd.f32 %v354, %v399
    %v428 = vadd.f32 %v355, %v402
    %v429 = vadd.f32 %v356, %v405
    %v430 = vadd.f32 %v357, %v408
    %v431 = vadd.f32 %v358, %v411
    %v432 = vadd.f32 %v359, %v414
    %v433 = vadd.f32 %v360, %v417
    %vm434 = vcmask 1041408
    %v435 = vrot.slane %v288, 6
    %v436 = vrot.slane %v289, 6
    %v437 = vsel %vm434, %v435, %v436
    %v438 = vrot.slane %v290, 6
    %v439 = vrot.slane %v291, 6
    %v440 = vsel %vm434, %v438, %v439
    %v441 = vrot.slane %v292, 6
    %v442 = vrot.slane %v293, 6
    %v443 = vsel %vm434, %v441, %v442
    %v444 = vrot.slane %v294, 6
    %v445 = vrot.slane %v295, 6
    %v446 = vsel %vm434, %v444, %v445
    %v447 = vrot.slane %v296, 6
    %v448 = vrot.slane %v297, 6
    %v449 = vsel %vm434, %v447, %v448
    %v450 = vrot.slane %v298, 6
    %v451 = vrot.slane %v299, 6
    %v452 = vsel %vm434, %v450, %v451
    %v453 = vrot.slane %v300, 6
    %v454 = vrot.slane %v301, 6
    %v455 = vsel %vm434, %v453, %v454
    %v456 = vrot.slane %v302, 6
    %v457 = vrot.slane %v303, 6
    %v458 = vsel %vm434, %v456, %v457
    %v467 = vadd.f32 %v426, %v437
    %v468 = vadd.f32 %v427, %v440
    %v469 = vadd.f32 %v428, %v443
    %v470 = vadd.f32 %v429, %v446
    %v471 = vadd.f32 %v430, %v449
    %v472 = vadd.f32 %v431, %v452
    %v473 = vadd.f32 %v432, %v455
    %v474 = vadd.f32 %v433, %v458
    %vm475 = vcmask 1040384
    %v476 = vrot.slane %v215, 7
    %v477 = vrot.slane %v216, 7
    %v478 = vsel %vm475, %v476, %v477
    %v479 = vrot.slane %v217, 7
    %v480 = vrot.slane %v218, 7
    %v481 = vsel %vm475, %v479, %v480
    %v482 = vrot.slane %v219, 7
    %v483 = vrot.slane %v220, 7
    %v484 = vsel %vm475, %v482, %v483
    %v485 = vrot.slane %v221, 7
    %v486 = vrot.slane %v222, 7
    %v487 = vsel %vm475, %v485, %v486
    %v488 = vrot.slane %v223, 7
    %v489 = vrot.slane %v224, 7
    %v490 = vsel %vm475, %v488, %v489
    %v491 = vrot.slane %v225, 7
    %v492 = vrot.slane %v226, 7
    %v493 = vsel %vm475, %v491, %v492
    %v494 = vrot.slane %v227, 7
    %v495 = vrot.slane %v228, 7
    %v496 = vsel %vm475, %v494, %v495
    %v497 = vrot.slane %v229, 7
    %v498 = vrot.slane %v230, 7
    %v499 = vsel %vm475, %v497, %v498
    %v508 = vadd.f32 %v467, %v478
    %v509 = vadd.f32 %v468, %v481
    %v510 = vadd.f32 %v469, %v484
    %v511 = vadd.f32 %v470, %v487
    %v512 = vadd.f32 %v471, %v490
    %v513 = vadd.f32 %v472, %v493
    %v514 = vadd.f32 %v473, %v496
    %v515 = vadd.f32 %v474, %v499
    %v516 = vmul.f32 %v46, 0.036000773
    %v517 = vmul.f32 %v48, 0.036000773
    %v518 = vmul.f32 %v50, 0.036000773
    %v519 = vmul.f32 %v52, 0.036000773
    %v520 = vmul.f32 %v54, 0.036000773
    %v521 = vmul.f32 %v56, 0.036000773
    %v522 = vmul.f32 %v58, 0.036000773
    %v523 = vmul.f32 %v60, 0.036000773
    %v524 = vadd.f32 %v508, %v516
    %v525 = vadd.f32 %v509, %v517
    %v526 = vadd.f32 %v510, %v518
    %v527 = vadd.f32 %v511, %v519
    %v528 = vadd.f32 %v512, %v520
    %v529 = vadd.f32 %v513, %v521
    %v530 = vadd.f32 %v514, %v522
    %v531 = vadd.f32 %v515, %v523
    %v532 = vmul.f32 %v46, 0.007598758
    %v533 = vmul.f32 %v48, 0.007598758
    %v534 = vmul.f32 %v50, 0.007598758
    %v535 = vmul.f32 %v52, 0.007598758
    %v536 = vmul.f32 %v54, 0.007598758
    %v537 = vmul.f32 %v56, 0.007598758
    %v538 = vmul.f32 %v58, 0.007598758
    %v539 = vmul.f32 %v60, 0.007598758
    %v548 = vrot.slane %v532, 1
    %v549 = vrot.slane %v533, 1
    %v550 = vrot.slane %v534, 1
    %v551 = vrot.slane %v535, 1
    %v552 = vrot.slane %v536, 1
    %v553 = vrot.slane %v537, 1
    %v554 = vrot.slane %v538, 1
    %v555 = vrot.slane %v539, 1
    %v564 = vadd.f32 %v524, %v548
    %v565 = vadd.f32 %v525, %v549
    %v566 = vadd.f32 %v526, %v550
    %v567 = vadd.f32 %v527, %v551
    %v568 = vadd.f32 %v528, %v552
    %v569 = vadd.f32 %v529, %v553
    %v570 = vadd.f32 %v530, %v554
    %v571 = vadd.f32 %v531, %v555
    %v572 = vmul.f32 %v46, 0.0010283801
    %v573 = vmul.f32 %v48, 0.0010283801
    %v574 = vmul.f32 %v50, 0.0010283801
    %v575 = vmul.f32 %v52, 0.0010283801
    %v576 = vmul.f32 %v54, 0.0010283801
    %v577 = vmul.f32 %v56, 0.0010283801
    %v578 = vmul.f32 %v58, 0.0010283801
    %v579 = vmul.f32 %v60, 0.0010283801
    %v588 = vrot.slane %v572, 2
    %v589 = vrot.slane %v573, 2
    %v590 = vrot.slane %v574, 2
    %v591 = vrot.slane %v575, 2
    %v592 = vrot.slane %v576, 2
    %v593 = vrot.slane %v577, 2
    %v594 = vrot.slane %v578, 2
    %v595 = vrot.slane %v579, 2
    %v604 = vadd.f32 %v564, %v588
    %v605 = vadd.f32 %v565, %v589
    %v606 = vadd.f32 %v566, %v590
    %v607 = vadd.f32 %v567, %v591
    %v608 = vadd.f32 %v568, %v592
    %v609 = vadd.f32 %v569, %v593
    %v610 = vadd.f32 %v570, %v594
    %v611 = vadd.f32 %v571, %v595
    %v612 = vmul.f32 %v604, 0.0010283801
    %v613 = vmul.f32 %v605, 0.0010283801
    %v614 = vmul.f32 %v606, 0.0010283801
    %v615 = vmul.f32 %v607, 0.0010283801
    %v616 = vmul.f32 %v608, 0.0010283801
    %v617 = vmul.f32 %v609, 0.0010283801
    %v618 = vmul.f32 %v610, 0.0010283801
    %v619 = vmul.f32 %v611, 0.0010283801
    %v620 = vmul.f32 %v604, 0.007598758
    %v621 = vmul.f32 %v605, 0.007598758
    %v622 = vmul.f32 %v606, 0.007598758
    %v623 = vmul.f32 %v607, 0.007598758
    %v624 = vmul.f32 %v608, 0.007598758
    %v625 = vmul.f32 %v609, 0.007598758
    %v626 = vmul.f32 %v610, 0.007598758
    %v627 = vmul.f32 %v611, 0.007598758
    %636 = vrot.lane.b32.xlu0 %v620, 127
    %v637 = vpop.permute.xlu0 %636
    %638 = vrot.lane.b32.xlu0 %v621, 127
    %v639 = vpop.permute.xlu0 %638
    %640 = vrot.lane.b32.xlu0 %v622, 127
    %v641 = vpop.permute.xlu0 %640
    %642 = vrot.lane.b32.xlu0 %v623, 127
    %v643 = vpop.permute.xlu0 %642
    %644 = vrot.lane.b32.xlu0 %v624, 127
    %v645 = vpop.permute.xlu0 %644
    %646 = vrot.lane.b32.xlu0 %v625, 127
    %v647 = vpop.permute.xlu0 %646
    %648 = vrot.lane.b32.xlu0 %v626, 127
    %v649 = vpop.permute.xlu0 %648
    %650 = vrot.lane.b32.xlu0 %v627, 127
    %v651 = vpop.permute.xlu0 %650
    %v660 = vadd.f32 %v612, %v637
    %v661 = vadd.f32 %v613, %v639
    %v662 = vadd.f32 %v614, %v641
    %v663 = vadd.f32 %v615, %v643
    %v664 = vadd.f32 %v616, %v645
    %v665 = vadd.f32 %v617, %v647
    %v666 = vadd.f32 %v618, %v649
    %v667 = vadd.f32 %v619, %v651
    %v668 = vmul.f32 %v604, 0.036000773
    %v669 = vmul.f32 %v605, 0.036000773
    %v670 = vmul.f32 %v606, 0.036000773
    %v671 = vmul.f32 %v607, 0.036000773
    %v672 = vmul.f32 %v608, 0.036000773
    %v673 = vmul.f32 %v609, 0.036000773
    %v674 = vmul.f32 %v610, 0.036000773
    %v675 = vmul.f32 %v611, 0.036000773
    %684 = vrot.lane.b32.xlu0 %v668, 126
    %v685 = vpop.permute.xlu0 %684
    %686 = vrot.lane.b32.xlu0 %v669, 126
    %v687 = vpop.permute.xlu0 %686
    %688 = vrot.lane.b32.xlu0 %v670, 126
    %v689 = vpop.permute.xlu0 %688
    %690 = vrot.lane.b32.xlu0 %v671, 126
    %v691 = vpop.permute.xlu0 %690
    %692 = vrot.lane.b32.xlu0 %v672, 126
    %v693 = vpop.permute.xlu0 %692
    %694 = vrot.lane.b32.xlu0 %v673, 126
    %v695 = vpop.permute.xlu0 %694
    %696 = vrot.lane.b32.xlu0 %v674, 126
    %v697 = vpop.permute.xlu0 %696
    %698 = vrot.lane.b32.xlu0 %v675, 126
    %v699 = vpop.permute.xlu0 %698
    %v708 = vadd.f32 %v660, %v685
    %v709 = vadd.f32 %v661, %v687
    %v710 = vadd.f32 %v662, %v689
    %v711 = vadd.f32 %v663, %v691
    %v712 = vadd.f32 %v664, %v693
    %v713 = vadd.f32 %v665, %v695
    %v714 = vadd.f32 %v666, %v697
    %v715 = vadd.f32 %v667, %v699
    %v716 = vmul.f32 %v604, 0.10936069
    %v717 = vmul.f32 %v605, 0.10936069
    %v718 = vmul.f32 %v606, 0.10936069
    %v719 = vmul.f32 %v607, 0.10936069
    %v720 = vmul.f32 %v608, 0.10936069
    %v721 = vmul.f32 %v609, 0.10936069
    %v722 = vmul.f32 %v610, 0.10936069
    %v723 = vmul.f32 %v611, 0.10936069
    %732 = vrot.lane.b32.xlu0 %v716, 125
    %v733 = vpop.permute.xlu0 %732
    %734 = vrot.lane.b32.xlu0 %v717, 125
    %v735 = vpop.permute.xlu0 %734
    %736 = vrot.lane.b32.xlu0 %v718, 125
    %v737 = vpop.permute.xlu0 %736
    %738 = vrot.lane.b32.xlu0 %v719, 125
    %v739 = vpop.permute.xlu0 %738
    %740 = vrot.lane.b32.xlu0 %v720, 125
    %v741 = vpop.permute.xlu0 %740
    %742 = vrot.lane.b32.xlu0 %v721, 125
    %v743 = vpop.permute.xlu0 %742
    %744 = vrot.lane.b32.xlu0 %v722, 125
    %v745 = vpop.permute.xlu0 %744
    %746 = vrot.lane.b32.xlu0 %v723, 125
    %v747 = vpop.permute.xlu0 %746
    %v756 = vadd.f32 %v708, %v733
    %v757 = vadd.f32 %v709, %v735
    %v758 = vadd.f32 %v710, %v737
    %v759 = vadd.f32 %v711, %v739
    %v760 = vadd.f32 %v712, %v741
    %v761 = vadd.f32 %v713, %v743
    %v762 = vadd.f32 %v714, %v745
    %v763 = vadd.f32 %v715, %v747
    %v764 = vmul.f32 %v604, 0.21300554
    %v765 = vmul.f32 %v605, 0.21300554
    %v766 = vmul.f32 %v606, 0.21300554
    %v767 = vmul.f32 %v607, 0.21300554
    %v768 = vmul.f32 %v608, 0.21300554
    %v769 = vmul.f32 %v609, 0.21300554
    %v770 = vmul.f32 %v610, 0.21300554
    %v771 = vmul.f32 %v611, 0.21300554
    %780 = vrot.lane.b32.xlu0 %v764, 124
    %v781 = vpop.permute.xlu0 %780
    %782 = vrot.lane.b32.xlu0 %v765, 124
    %v783 = vpop.permute.xlu0 %782
    %784 = vrot.lane.b32.xlu0 %v766, 124
    %v785 = vpop.permute.xlu0 %784
    %786 = vrot.lane.b32.xlu0 %v767, 124
    %v787 = vpop.permute.xlu0 %786
    %788 = vrot.lane.b32.xlu0 %v768, 124
    %v789 = vpop.permute.xlu0 %788
    %790 = vrot.lane.b32.xlu0 %v769, 124
    %v791 = vpop.permute.xlu0 %790
    %792 = vrot.lane.b32.xlu0 %v770, 124
    %v793 = vpop.permute.xlu0 %792
    %794 = vrot.lane.b32.xlu0 %v771, 124
    %v795 = vpop.permute.xlu0 %794
    %v804 = vadd.f32 %v756, %v781
    %v805 = vadd.f32 %v757, %v783
    %v806 = vadd.f32 %v758, %v785
    %v807 = vadd.f32 %v759, %v787
    %v808 = vadd.f32 %v760, %v789
    %v809 = vadd.f32 %v761, %v791
    %v810 = vadd.f32 %v762, %v793
    %v811 = vadd.f32 %v763, %v795
    %v812 = vmul.f32 %v604, 0.26601171
    %v813 = vmul.f32 %v605, 0.26601171
    %v814 = vmul.f32 %v606, 0.26601171
    %v815 = vmul.f32 %v607, 0.26601171
    %v816 = vmul.f32 %v608, 0.26601171
    %v817 = vmul.f32 %v609, 0.26601171
    %v818 = vmul.f32 %v610, 0.26601171
    %v819 = vmul.f32 %v611, 0.26601171
    %828 = vrot.lane.b32.xlu0 %v812, 123
    %v829 = vpop.permute.xlu0 %828
    %830 = vrot.lane.b32.xlu0 %v813, 123
    %v831 = vpop.permute.xlu0 %830
    %832 = vrot.lane.b32.xlu0 %v814, 123
    %v833 = vpop.permute.xlu0 %832
    %834 = vrot.lane.b32.xlu0 %v815, 123
    %v835 = vpop.permute.xlu0 %834
    %836 = vrot.lane.b32.xlu0 %v816, 123
    %v837 = vpop.permute.xlu0 %836
    %838 = vrot.lane.b32.xlu0 %v817, 123
    %v839 = vpop.permute.xlu0 %838
    %840 = vrot.lane.b32.xlu0 %v818, 123
    %v841 = vpop.permute.xlu0 %840
    %842 = vrot.lane.b32.xlu0 %v819, 123
    %v843 = vpop.permute.xlu0 %842
    %v852 = vadd.f32 %v804, %v829
    %v853 = vadd.f32 %v805, %v831
    %v854 = vadd.f32 %v806, %v833
    %v855 = vadd.f32 %v807, %v835
    %v856 = vadd.f32 %v808, %v837
    %v857 = vadd.f32 %v809, %v839
    %v858 = vadd.f32 %v810, %v841
    %v859 = vadd.f32 %v811, %v843
    %860 = vrot.lane.b32.xlu0 %v764, 122
    %v861 = vpop.permute.xlu0 %860
    %862 = vrot.lane.b32.xlu0 %v765, 122
    %v863 = vpop.permute.xlu0 %862
    %864 = vrot.lane.b32.xlu0 %v766, 122
    %v865 = vpop.permute.xlu0 %864
    %866 = vrot.lane.b32.xlu0 %v767, 122
    %v867 = vpop.permute.xlu0 %866
    %868 = vrot.lane.b32.xlu0 %v768, 122
    %v869 = vpop.permute.xlu0 %868
    %870 = vrot.lane.b32.xlu0 %v769, 122
    %v871 = vpop.permute.xlu0 %870
    %872 = vrot.lane.b32.xlu0 %v770, 122
    %v873 = vpop.permute.xlu0 %872
    %874 = vrot.lane.b32.xlu0 %v771, 122
    %v875 = vpop.permute.xlu0 %874
    %v884 = vadd.f32 %v852, %v861
    %v885 = vadd.f32 %v853, %v863
    %v886 = vadd.f32 %v854, %v865
    %v887 = vadd.f32 %v855, %v867
    %v888 = vadd.f32 %v856, %v869
    %v889 = vadd.f32 %v857, %v871
    %v890 = vadd.f32 %v858, %v873
    %v891 = vadd.f32 %v859, %v875
    %892 = vrot.lane.b32.xlu0 %v716, 121
    %v893 = vpop.permute.xlu0 %892
    %894 = vrot.lane.b32.xlu0 %v717, 121
    %v895 = vpop.permute.xlu0 %894
    %896 = vrot.lane.b32.xlu0 %v718, 121
    %v897 = vpop.permute.xlu0 %896
    %898 = vrot.lane.b32.xlu0 %v719, 121
    %v899 = vpop.permute.xlu0 %898
    %900 = vrot.lane.b32.xlu0 %v720, 121
    %v901 = vpop.permute.xlu0 %900
    %902 = vrot.lane.b32.xlu0 %v721, 121
    %v903 = vpop.permute.xlu0 %902
    %904 = vrot.lane.b32.xlu0 %v722, 121
    %v905 = vpop.permute.xlu0 %904
    %906 = vrot.lane.b32.xlu0 %v723, 121
    %v907 = vpop.permute.xlu0 %906
    %v916 = vadd.f32 %v884, %v893
    %v917 = vadd.f32 %v885, %v895
    %v918 = vadd.f32 %v886, %v897
    %v919 = vadd.f32 %v887, %v899
    %v920 = vadd.f32 %v888, %v901
    %v921 = vadd.f32 %v889, %v903
    %v922 = vadd.f32 %v890, %v905
    %v923 = vadd.f32 %v891, %v907
    %924 = vrot.lane.b32.xlu0 %v668, 120
    %v925 = vpop.permute.xlu0 %924
    %926 = vrot.lane.b32.xlu0 %v669, 120
    %v927 = vpop.permute.xlu0 %926
    %928 = vrot.lane.b32.xlu0 %v670, 120
    %v929 = vpop.permute.xlu0 %928
    %930 = vrot.lane.b32.xlu0 %v671, 120
    %v931 = vpop.permute.xlu0 %930
    %932 = vrot.lane.b32.xlu0 %v672, 120
    %v933 = vpop.permute.xlu0 %932
    %934 = vrot.lane.b32.xlu0 %v673, 120
    %v935 = vpop.permute.xlu0 %934
    %936 = vrot.lane.b32.xlu0 %v674, 120
    %v937 = vpop.permute.xlu0 %936
    %938 = vrot.lane.b32.xlu0 %v675, 120
    %v939 = vpop.permute.xlu0 %938
    %v948 = vadd.f32 %v916, %v925
    %v949 = vadd.f32 %v917, %v927
    %v950 = vadd.f32 %v918, %v929
    %v951 = vadd.f32 %v919, %v931
    %v952 = vadd.f32 %v920, %v933
    %v953 = vadd.f32 %v921, %v935
    %v954 = vadd.f32 %v922, %v937
    %v955 = vadd.f32 %v923, %v939
    %956 = vrot.lane.b32.xlu0 %v620, 119
    %v957 = vpop.permute.xlu0 %956
    %958 = vrot.lane.b32.xlu0 %v621, 119
    %v959 = vpop.permute.xlu0 %958
    %960 = vrot.lane.b32.xlu0 %v622, 119
    %v961 = vpop.permute.xlu0 %960
    %962 = vrot.lane.b32.xlu0 %v623, 119
    %v963 = vpop.permute.xlu0 %962
    %964 = vrot.lane.b32.xlu0 %v624, 119
    %v965 = vpop.permute.xlu0 %964
    %966 = vrot.lane.b32.xlu0 %v625, 119
    %v967 = vpop.permute.xlu0 %966
    %968 = vrot.lane.b32.xlu0 %v626, 119
    %v969 = vpop.permute.xlu0 %968
    %970 = vrot.lane.b32.xlu0 %v627, 119
    %v971 = vpop.permute.xlu0 %970
    %v980 = vadd.f32 %v948, %v957
    %v981 = vadd.f32 %v949, %v959
    %v982 = vadd.f32 %v950, %v961
    %v983 = vadd.f32 %v951, %v963
    %v984 = vadd.f32 %v952, %v965
    %v985 = vadd.f32 %v953, %v967
    %v986 = vadd.f32 %v954, %v969
    %v987 = vadd.f32 %v955, %v971
    %996 = vrot.lane.b32.xlu0 %v612, 118
    %v997 = vpop.permute.xlu0 %996
    %998 = vrot.lane.b32.xlu0 %v613, 118
    %v999 = vpop.permute.xlu0 %998
    %1000 = vrot.lane.b32.xlu0 %v614, 118
    %v1001 = vpop.permute.xlu0 %1000
    %1002 = vrot.lane.b32.xlu0 %v615, 118
    %v1003 = vpop.permute.xlu0 %1002
    %1004 = vrot.lane.b32.xlu0 %v616, 118
    %v1005 = vpop.permute.xlu0 %1004
    %1006 = vrot.lane.b32.xlu0 %v617, 118
    %v1007 = vpop.permute.xlu0 %1006
    %1008 = vrot.lane.b32.xlu0 %v618, 118
    %v1009 = vpop.permute.xlu0 %1008
    %1010 = vrot.lane.b32.xlu0 %v619, 118
    %v1011 = vpop.permute.xlu0 %1010
    %v1020 = vadd.f32 %v980, %v997
    %v1021 = vadd.f32 %v981, %v999
    %v1022 = vadd.f32 %v982, %v1001
    %v1023 = vadd.f32 %v983, %v1003
    %v1024 = vadd.f32 %v984, %v1005
    %v1025 = vadd.f32 %v985, %v1007
    %v1026 = vadd.f32 %v986, %v1009
    %v1027 = vadd.f32 %v987, %v1011
    %v1028 = vmul.f32 %v61, 0.0010283801
    %v1029 = vmul.f32 %v63, 0.0010283801
    %v1030 = vmul.f32 %v65, 0.0010283801
    %v1031 = vmul.f32 %v67, 0.0010283801
    %v1032 = vmul.f32 %v69, 0.0010283801
    %v1033 = vmul.f32 %v71, 0.0010283801
    %v1034 = vmul.f32 %v73, 0.0010283801
    %v1035 = vmul.f32 %v75, 0.0010283801
    %v1036 = vmul.f32 %v61, 0.007598758
    %v1037 = vmul.f32 %v63, 0.007598758
    %v1038 = vmul.f32 %v65, 0.007598758
    %v1039 = vmul.f32 %v67, 0.007598758
    %v1040 = vmul.f32 %v69, 0.007598758
    %v1041 = vmul.f32 %v71, 0.007598758
    %v1042 = vmul.f32 %v73, 0.007598758
    %v1043 = vmul.f32 %v75, 0.007598758
    %v1052 = vrot.slane %v1036, 1
    %v1053 = vrot.slane %v1037, 1
    %v1054 = vrot.slane %v1038, 1
    %v1055 = vrot.slane %v1039, 1
    %v1056 = vrot.slane %v1040, 1
    %v1057 = vrot.slane %v1041, 1
    %v1058 = vrot.slane %v1042, 1
    %v1059 = vrot.slane %v1043, 1
    %v1068 = vadd.f32 %v1028, %v1052
    %v1069 = vadd.f32 %v1029, %v1053
    %v1070 = vadd.f32 %v1030, %v1054
    %v1071 = vadd.f32 %v1031, %v1055
    %v1072 = vadd.f32 %v1032, %v1056
    %v1073 = vadd.f32 %v1033, %v1057
    %v1074 = vadd.f32 %v1034, %v1058
    %v1075 = vadd.f32 %v1035, %v1059
    %v1076 = vmul.f32 %v61, 0.036000773
    %v1077 = vmul.f32 %v63, 0.036000773
    %v1078 = vmul.f32 %v65, 0.036000773
    %v1079 = vmul.f32 %v67, 0.036000773
    %v1080 = vmul.f32 %v69, 0.036000773
    %v1081 = vmul.f32 %v71, 0.036000773
    %v1082 = vmul.f32 %v73, 0.036000773
    %v1083 = vmul.f32 %v75, 0.036000773
    %v1092 = vrot.slane %v1076, 2
    %v1093 = vrot.slane %v1077, 2
    %v1094 = vrot.slane %v1078, 2
    %v1095 = vrot.slane %v1079, 2
    %v1096 = vrot.slane %v1080, 2
    %v1097 = vrot.slane %v1081, 2
    %v1098 = vrot.slane %v1082, 2
    %v1099 = vrot.slane %v1083, 2
    %v1108 = vadd.f32 %v1068, %v1092
    %v1109 = vadd.f32 %v1069, %v1093
    %v1110 = vadd.f32 %v1070, %v1094
    %v1111 = vadd.f32 %v1071, %v1095
    %v1112 = vadd.f32 %v1072, %v1096
    %v1113 = vadd.f32 %v1073, %v1097
    %v1114 = vadd.f32 %v1074, %v1098
    %v1115 = vadd.f32 %v1075, %v1099
    %v1116 = vmul.f32 %v61, 0.10936069
    %v1117 = vmul.f32 %v62, 0.10936069
    %v1118 = vmul.f32 %v63, 0.10936069
    %v1119 = vmul.f32 %v64, 0.10936069
    %v1120 = vmul.f32 %v65, 0.10936069
    %v1121 = vmul.f32 %v66, 0.10936069
    %v1122 = vmul.f32 %v67, 0.10936069
    %v1123 = vmul.f32 %v68, 0.10936069
    %v1124 = vmul.f32 %v69, 0.10936069
    %v1125 = vmul.f32 %v70, 0.10936069
    %v1126 = vmul.f32 %v71, 0.10936069
    %v1127 = vmul.f32 %v72, 0.10936069
    %v1128 = vmul.f32 %v73, 0.10936069
    %v1129 = vmul.f32 %v74, 0.10936069
    %v1130 = vmul.f32 %v75, 0.10936069
    %v1131 = vmul.f32 %v76, 0.10936069
    %v1148 = vrot.slane %v1116, 3
    %v1149 = vrot.slane %v1117, 3
    %v1150 = vsel %vm247, %v1148, %v1149
    %v1151 = vrot.slane %v1118, 3
    %v1152 = vrot.slane %v1119, 3
    %v1153 = vsel %vm247, %v1151, %v1152
    %v1154 = vrot.slane %v1120, 3
    %v1155 = vrot.slane %v1121, 3
    %v1156 = vsel %vm247, %v1154, %v1155
    %v1157 = vrot.slane %v1122, 3
    %v1158 = vrot.slane %v1123, 3
    %v1159 = vsel %vm247, %v1157, %v1158
    %v1160 = vrot.slane %v1124, 3
    %v1161 = vrot.slane %v1125, 3
    %v1162 = vsel %vm247, %v1160, %v1161
    %v1163 = vrot.slane %v1126, 3
    %v1164 = vrot.slane %v1127, 3
    %v1165 = vsel %vm247, %v1163, %v1164
    %v1166 = vrot.slane %v1128, 3
    %v1167 = vrot.slane %v1129, 3
    %v1168 = vsel %vm247, %v1166, %v1167
    %v1169 = vrot.slane %v1130, 3
    %v1170 = vrot.slane %v1131, 3
    %v1171 = vsel %vm247, %v1169, %v1170
    %v1180 = vadd.f32 %v1108, %v1150
    %v1181 = vadd.f32 %v1109, %v1153
    %v1182 = vadd.f32 %v1110, %v1156
    %v1183 = vadd.f32 %v1111, %v1159
    %v1184 = vadd.f32 %v1112, %v1162
    %v1185 = vadd.f32 %v1113, %v1165
    %v1186 = vadd.f32 %v1114, %v1168
    %v1187 = vadd.f32 %v1115, %v1171
    %v1188 = vmul.f32 %v61, 0.21300554
    %v1189 = vmul.f32 %v62, 0.21300554
    %v1190 = vmul.f32 %v63, 0.21300554
    %v1191 = vmul.f32 %v64, 0.21300554
    %v1192 = vmul.f32 %v65, 0.21300554
    %v1193 = vmul.f32 %v66, 0.21300554
    %v1194 = vmul.f32 %v67, 0.21300554
    %v1195 = vmul.f32 %v68, 0.21300554
    %v1196 = vmul.f32 %v69, 0.21300554
    %v1197 = vmul.f32 %v70, 0.21300554
    %v1198 = vmul.f32 %v71, 0.21300554
    %v1199 = vmul.f32 %v72, 0.21300554
    %v1200 = vmul.f32 %v73, 0.21300554
    %v1201 = vmul.f32 %v74, 0.21300554
    %v1202 = vmul.f32 %v75, 0.21300554
    %v1203 = vmul.f32 %v76, 0.21300554
    %v1220 = vrot.slane %v1188, 4
    %v1221 = vrot.slane %v1189, 4
    %v1222 = vsel %vm320, %v1220, %v1221
    %v1223 = vrot.slane %v1190, 4
    %v1224 = vrot.slane %v1191, 4
    %v1225 = vsel %vm320, %v1223, %v1224
    %v1226 = vrot.slane %v1192, 4
    %v1227 = vrot.slane %v1193, 4
    %v1228 = vsel %vm320, %v1226, %v1227
    %v1229 = vrot.slane %v1194, 4
    %v1230 = vrot.slane %v1195, 4
    %v1231 = vsel %vm320, %v1229, %v1230
    %v1232 = vrot.slane %v1196, 4
    %v1233 = vrot.slane %v1197, 4
    %v1234 = vsel %vm320, %v1232, %v1233
    %v1235 = vrot.slane %v1198, 4
    %v1236 = vrot.slane %v1199, 4
    %v1237 = vsel %vm320, %v1235, %v1236
    %v1238 = vrot.slane %v1200, 4
    %v1239 = vrot.slane %v1201, 4
    %v1240 = vsel %vm320, %v1238, %v1239
    %v1241 = vrot.slane %v1202, 4
    %v1242 = vrot.slane %v1203, 4
    %v1243 = vsel %vm320, %v1241, %v1242
    %v1252 = vadd.f32 %v1180, %v1222
    %v1253 = vadd.f32 %v1181, %v1225
    %v1254 = vadd.f32 %v1182, %v1228
    %v1255 = vadd.f32 %v1183, %v1231
    %v1256 = vadd.f32 %v1184, %v1234
    %v1257 = vadd.f32 %v1185, %v1237
    %v1258 = vadd.f32 %v1186, %v1240
    %v1259 = vadd.f32 %v1187, %v1243
    %v1260 = vmul.f32 %v61, 0.26601171
    %v1261 = vmul.f32 %v62, 0.26601171
    %v1262 = vmul.f32 %v63, 0.26601171
    %v1263 = vmul.f32 %v64, 0.26601171
    %v1264 = vmul.f32 %v65, 0.26601171
    %v1265 = vmul.f32 %v66, 0.26601171
    %v1266 = vmul.f32 %v67, 0.26601171
    %v1267 = vmul.f32 %v68, 0.26601171
    %v1268 = vmul.f32 %v69, 0.26601171
    %v1269 = vmul.f32 %v70, 0.26601171
    %v1270 = vmul.f32 %v71, 0.26601171
    %v1271 = vmul.f32 %v72, 0.26601171
    %v1272 = vmul.f32 %v73, 0.26601171
    %v1273 = vmul.f32 %v74, 0.26601171
    %v1274 = vmul.f32 %v75, 0.26601171
    %v1275 = vmul.f32 %v76, 0.26601171
    %v1292 = vrot.slane %v1260, 5
    %v1293 = vrot.slane %v1261, 5
    %v1294 = vsel %vm393, %v1292, %v1293
    %v1295 = vrot.slane %v1262, 5
    %v1296 = vrot.slane %v1263, 5
    %v1297 = vsel %vm393, %v1295, %v1296
    %v1298 = vrot.slane %v1264, 5
    %v1299 = vrot.slane %v1265, 5
    %v1300 = vsel %vm393, %v1298, %v1299
    %v1301 = vrot.slane %v1266, 5
    %v1302 = vrot.slane %v1267, 5
    %v1303 = vsel %vm393, %v1301, %v1302
    %v1304 = vrot.slane %v1268, 5
    %v1305 = vrot.slane %v1269, 5
    %v1306 = vsel %vm393, %v1304, %v1305
    %v1307 = vrot.slane %v1270, 5
    %v1308 = vrot.slane %v1271, 5
    %v1309 = vsel %vm393, %v1307, %v1308
    %v1310 = vrot.slane %v1272, 5
    %v1311 = vrot.slane %v1273, 5
    %v1312 = vsel %vm393, %v1310, %v1311
    %v1313 = vrot.slane %v1274, 5
    %v1314 = vrot.slane %v1275, 5
    %v1315 = vsel %vm393, %v1313, %v1314
    %v1324 = vadd.f32 %v1252, %v1294
    %v1325 = vadd.f32 %v1253, %v1297
    %v1326 = vadd.f32 %v1254, %v1300
    %v1327 = vadd.f32 %v1255, %v1303
    %v1328 = vadd.f32 %v1256, %v1306
    %v1329 = vadd.f32 %v1257, %v1309
    %v1330 = vadd.f32 %v1258, %v1312
    %v1331 = vadd.f32 %v1259, %v1315
    %v1332 = vrot.slane %v1188, 6
    %v1333 = vrot.slane %v1189, 6
    %v1334 = vsel %vm434, %v1332, %v1333
    %v1335 = vrot.slane %v1190, 6
    %v1336 = vrot.slane %v1191, 6
    %v1337 = vsel %vm434, %v1335, %v1336
    %v1338 = vrot.slane %v1192, 6
    %v1339 = vrot.slane %v1193, 6
    %v1340 = vsel %vm434, %v1338, %v1339
    %v1341 = vrot.slane %v1194, 6
    %v1342 = vrot.slane %v1195, 6
    %v1343 = vsel %vm434, %v1341, %v1342
    %v1344 = vrot.slane %v1196, 6
    %v1345 = vrot.slane %v1197, 6
    %v1346 = vsel %vm434, %v1344, %v1345
    %v1347 = vrot.slane %v1198, 6
    %v1348 = vrot.slane %v1199, 6
    %v1349 = vsel %vm434, %v1347, %v1348
    %v1350 = vrot.slane %v1200, 6
    %v1351 = vrot.slane %v1201, 6
    %v1352 = vsel %vm434, %v1350, %v1351
    %v1353 = vrot.slane %v1202, 6
    %v1354 = vrot.slane %v1203, 6
    %v1355 = vsel %vm434, %v1353, %v1354
    %v1364 = vadd.f32 %v1324, %v1334
    %v1365 = vadd.f32 %v1325, %v1337
    %v1366 = vadd.f32 %v1326, %v1340
    %v1367 = vadd.f32 %v1327, %v1343
    %v1368 = vadd.f32 %v1328, %v1346
    %v1369 = vadd.f32 %v1329, %v1349
    %v1370 = vadd.f32 %v1330, %v1352
    %v1371 = vadd.f32 %v1331, %v1355
    %v1372 = vrot.slane %v1116, 7
    %v1373 = vrot.slane %v1117, 7
    %v1374 = vsel %vm475, %v1372, %v1373
    %v1375 = vrot.slane %v1118, 7
    %v1376 = vrot.slane %v1119, 7
    %v1377 = vsel %vm475, %v1375, %v1376
    %v1378 = vrot.slane %v1120, 7
    %v1379 = vrot.slane %v1121, 7
    %v1380 = vsel %vm475, %v1378, %v1379
    %v1381 = vrot.slane %v1122, 7
    %v1382 = vrot.slane %v1123, 7
    %v1383 = vsel %vm475, %v1381, %v1382
    %v1384 = vrot.slane %v1124, 7
    %v1385 = vrot.slane %v1125, 7
    %v1386 = vsel %vm475, %v1384, %v1385
    %v1387 = vrot.slane %v1126, 7
    %v1388 = vrot.slane %v1127, 7
    %v1389 = vsel %vm475, %v1387, %v1388
    %v1390 = vrot.slane %v1128, 7
    %v1391 = vrot.slane %v1129, 7
    %v1392 = vsel %vm475, %v1390, %v1391
    %v1393 = vrot.slane %v1130, 7
    %v1394 = vrot.slane %v1131, 7
    %v1395 = vsel %vm475, %v1393, %v1394
    %v1404 = vadd.f32 %v1364, %v1374
    %v1405 = vadd.f32 %v1365, %v1377
    %v1406 = vadd.f32 %v1366, %v1380
    %v1407 = vadd.f32 %v1367, %v1383
    %v1408 = vadd.f32 %v1368, %v1386
    %v1409 = vadd.f32 %v1369, %v1389
    %v1410 = vadd.f32 %v1370, %v1392
    %v1411 = vadd.f32 %v1371, %v1395
    %v1412 = vmul.f32 %v62, 0.036000773
    %v1413 = vmul.f32 %v64, 0.036000773
    %v1414 = vmul.f32 %v66, 0.036000773
    %v1415 = vmul.f32 %v68, 0.036000773
    %v1416 = vmul.f32 %v70, 0.036000773
    %v1417 = vmul.f32 %v72, 0.036000773
    %v1418 = vmul.f32 %v74, 0.036000773
    %v1419 = vmul.f32 %v76, 0.036000773
    %v1420 = vadd.f32 %v1404, %v1412
    %v1421 = vadd.f32 %v1405, %v1413
    %v1422 = vadd.f32 %v1406, %v1414
    %v1423 = vadd.f32 %v1407, %v1415
    %v1424 = vadd.f32 %v1408, %v1416
    %v1425 = vadd.f32 %v1409, %v1417
    %v1426 = vadd.f32 %v1410, %v1418
    %v1427 = vadd.f32 %v1411, %v1419
    %v1428 = vmul.f32 %v62, 0.007598758
    %v1429 = vmul.f32 %v64, 0.007598758
    %v1430 = vmul.f32 %v66, 0.007598758
    %v1431 = vmul.f32 %v68, 0.007598758
    %v1432 = vmul.f32 %v70, 0.007598758
    %v1433 = vmul.f32 %v72, 0.007598758
    %v1434 = vmul.f32 %v74, 0.007598758
    %v1435 = vmul.f32 %v76, 0.007598758
    %v1444 = vrot.slane %v1428, 1
    %v1445 = vrot.slane %v1429, 1
    %v1446 = vrot.slane %v1430, 1
    %v1447 = vrot.slane %v1431, 1
    %v1448 = vrot.slane %v1432, 1
    %v1449 = vrot.slane %v1433, 1
    %v1450 = vrot.slane %v1434, 1
    %v1451 = vrot.slane %v1435, 1
    %v1460 = vadd.f32 %v1420, %v1444
    %v1461 = vadd.f32 %v1421, %v1445
    %v1462 = vadd.f32 %v1422, %v1446
    %v1463 = vadd.f32 %v1423, %v1447
    %v1464 = vadd.f32 %v1424, %v1448
    %v1465 = vadd.f32 %v1425, %v1449
    %v1466 = vadd.f32 %v1426, %v1450
    %v1467 = vadd.f32 %v1427, %v1451
    %v1468 = vmul.f32 %v62, 0.0010283801
    %v1469 = vmul.f32 %v64, 0.0010283801
    %v1470 = vmul.f32 %v66, 0.0010283801
    %v1471 = vmul.f32 %v68, 0.0010283801
    %v1472 = vmul.f32 %v70, 0.0010283801
    %v1473 = vmul.f32 %v72, 0.0010283801
    %v1474 = vmul.f32 %v74, 0.0010283801
    %v1475 = vmul.f32 %v76, 0.0010283801
    %v1484 = vrot.slane %v1468, 2
    %v1485 = vrot.slane %v1469, 2
    %v1486 = vrot.slane %v1470, 2
    %v1487 = vrot.slane %v1471, 2
    %v1488 = vrot.slane %v1472, 2
    %v1489 = vrot.slane %v1473, 2
    %v1490 = vrot.slane %v1474, 2
    %v1491 = vrot.slane %v1475, 2
    %v1500 = vadd.f32 %v1460, %v1484
    %v1501 = vadd.f32 %v1461, %v1485
    %v1502 = vadd.f32 %v1462, %v1486
    %v1503 = vadd.f32 %v1463, %v1487
    %v1504 = vadd.f32 %v1464, %v1488
    %v1505 = vadd.f32 %v1465, %v1489
    %v1506 = vadd.f32 %v1466, %v1490
    %v1507 = vadd.f32 %v1467, %v1491
    %v1508 = vmul.f32 %v1500, 0.0010283801
    %v1509 = vmul.f32 %v1501, 0.0010283801
    %v1510 = vmul.f32 %v1502, 0.0010283801
    %v1511 = vmul.f32 %v1503, 0.0010283801
    %v1512 = vmul.f32 %v1504, 0.0010283801
    %v1513 = vmul.f32 %v1505, 0.0010283801
    %v1514 = vmul.f32 %v1506, 0.0010283801
    %v1515 = vmul.f32 %v1507, 0.0010283801
    %v1516 = vmul.f32 %v1500, 0.007598758
    %v1517 = vmul.f32 %v1501, 0.007598758
    %v1518 = vmul.f32 %v1502, 0.007598758
    %v1519 = vmul.f32 %v1503, 0.007598758
    %v1520 = vmul.f32 %v1504, 0.007598758
    %v1521 = vmul.f32 %v1505, 0.007598758
    %v1522 = vmul.f32 %v1506, 0.007598758
    %v1523 = vmul.f32 %v1507, 0.007598758
    %1532 = vrot.lane.b32.xlu0 %v1516, 127
    %v1533 = vpop.permute.xlu0 %1532
    %1534 = vrot.lane.b32.xlu0 %v1517, 127
    %v1535 = vpop.permute.xlu0 %1534
    %1536 = vrot.lane.b32.xlu0 %v1518, 127
    %v1537 = vpop.permute.xlu0 %1536
    %1538 = vrot.lane.b32.xlu0 %v1519, 127
    %v1539 = vpop.permute.xlu0 %1538
    %1540 = vrot.lane.b32.xlu0 %v1520, 127
    %v1541 = vpop.permute.xlu0 %1540
    %1542 = vrot.lane.b32.xlu0 %v1521, 127
    %v1543 = vpop.permute.xlu0 %1542
    %1544 = vrot.lane.b32.xlu0 %v1522, 127
    %v1545 = vpop.permute.xlu0 %1544
    %1546 = vrot.lane.b32.xlu0 %v1523, 127
    %v1547 = vpop.permute.xlu0 %1546
    %v1556 = vadd.f32 %v1508, %v1533
    %v1557 = vadd.f32 %v1509, %v1535
    %v1558 = vadd.f32 %v1510, %v1537
    %v1559 = vadd.f32 %v1511, %v1539
    %v1560 = vadd.f32 %v1512, %v1541
    %v1561 = vadd.f32 %v1513, %v1543
    %v1562 = vadd.f32 %v1514, %v1545
    %v1563 = vadd.f32 %v1515, %v1547
    %v1564 = vmul.f32 %v1500, 0.036000773
    %v1565 = vmul.f32 %v1501, 0.036000773
    %v1566 = vmul.f32 %v1502, 0.036000773
    %v1567 = vmul.f32 %v1503, 0.036000773
    %v1568 = vmul.f32 %v1504, 0.036000773
    %v1569 = vmul.f32 %v1505, 0.036000773
    %v1570 = vmul.f32 %v1506, 0.036000773
    %v1571 = vmul.f32 %v1507, 0.036000773
    %1580 = vrot.lane.b32.xlu0 %v1564, 126
    %v1581 = vpop.permute.xlu0 %1580
    %1582 = vrot.lane.b32.xlu0 %v1565, 126
    %v1583 = vpop.permute.xlu0 %1582
    %1584 = vrot.lane.b32.xlu0 %v1566, 126
    %v1585 = vpop.permute.xlu0 %1584
    %1586 = vrot.lane.b32.xlu0 %v1567, 126
    %v1587 = vpop.permute.xlu0 %1586
    %1588 = vrot.lane.b32.xlu0 %v1568, 126
    %v1589 = vpop.permute.xlu0 %1588
    %1590 = vrot.lane.b32.xlu0 %v1569, 126
    %v1591 = vpop.permute.xlu0 %1590
    %1592 = vrot.lane.b32.xlu0 %v1570, 126
    %v1593 = vpop.permute.xlu0 %1592
    %1594 = vrot.lane.b32.xlu0 %v1571, 126
    %v1595 = vpop.permute.xlu0 %1594
    %v1604 = vadd.f32 %v1556, %v1581
    %v1605 = vadd.f32 %v1557, %v1583
    %v1606 = vadd.f32 %v1558, %v1585
    %v1607 = vadd.f32 %v1559, %v1587
    %v1608 = vadd.f32 %v1560, %v1589
    %v1609 = vadd.f32 %v1561, %v1591
    %v1610 = vadd.f32 %v1562, %v1593
    %v1611 = vadd.f32 %v1563, %v1595
    %v1612 = vmul.f32 %v1500, 0.10936069
    %v1613 = vmul.f32 %v1501, 0.10936069
    %v1614 = vmul.f32 %v1502, 0.10936069
    %v1615 = vmul.f32 %v1503, 0.10936069
    %v1616 = vmul.f32 %v1504, 0.10936069
    %v1617 = vmul.f32 %v1505, 0.10936069
    %v1618 = vmul.f32 %v1506, 0.10936069
    %v1619 = vmul.f32 %v1507, 0.10936069
    %1628 = vrot.lane.b32.xlu0 %v1612, 125
    %v1629 = vpop.permute.xlu0 %1628
    %1630 = vrot.lane.b32.xlu0 %v1613, 125
    %v1631 = vpop.permute.xlu0 %1630
    %1632 = vrot.lane.b32.xlu0 %v1614, 125
    %v1633 = vpop.permute.xlu0 %1632
    %1634 = vrot.lane.b32.xlu0 %v1615, 125
    %v1635 = vpop.permute.xlu0 %1634
    %1636 = vrot.lane.b32.xlu0 %v1616, 125
    %v1637 = vpop.permute.xlu0 %1636
    %1638 = vrot.lane.b32.xlu0 %v1617, 125
    %v1639 = vpop.permute.xlu0 %1638
    %1640 = vrot.lane.b32.xlu0 %v1618, 125
    %v1641 = vpop.permute.xlu0 %1640
    %1642 = vrot.lane.b32.xlu0 %v1619, 125
    %v1643 = vpop.permute.xlu0 %1642
    %v1652 = vadd.f32 %v1604, %v1629
    %v1653 = vadd.f32 %v1605, %v1631
    %v1654 = vadd.f32 %v1606, %v1633
    %v1655 = vadd.f32 %v1607, %v1635
    %v1656 = vadd.f32 %v1608, %v1637
    %v1657 = vadd.f32 %v1609, %v1639
    %v1658 = vadd.f32 %v1610, %v1641
    %v1659 = vadd.f32 %v1611, %v1643
    %v1660 = vmul.f32 %v1500, 0.21300554
    %v1661 = vmul.f32 %v1501, 0.21300554
    %v1662 = vmul.f32 %v1502, 0.21300554
    %v1663 = vmul.f32 %v1503, 0.21300554
    %v1664 = vmul.f32 %v1504, 0.21300554
    %v1665 = vmul.f32 %v1505, 0.21300554
    %v1666 = vmul.f32 %v1506, 0.21300554
    %v1667 = vmul.f32 %v1507, 0.21300554
    %1676 = vrot.lane.b32.xlu0 %v1660, 124
    %v1677 = vpop.permute.xlu0 %1676
    %1678 = vrot.lane.b32.xlu0 %v1661, 124
    %v1679 = vpop.permute.xlu0 %1678
    %1680 = vrot.lane.b32.xlu0 %v1662, 124
    %v1681 = vpop.permute.xlu0 %1680
    %1682 = vrot.lane.b32.xlu0 %v1663, 124
    %v1683 = vpop.permute.xlu0 %1682
    %1684 = vrot.lane.b32.xlu0 %v1664, 124
    %v1685 = vpop.permute.xlu0 %1684
    %1686 = vrot.lane.b32.xlu0 %v1665, 124
    %v1687 = vpop.permute.xlu0 %1686
    %1688 = vrot.lane.b32.xlu0 %v1666, 124
    %v1689 = vpop.permute.xlu0 %1688
    %1690 = vrot.lane.b32.xlu0 %v1667, 124
    %v1691 = vpop.permute.xlu0 %1690
    %v1700 = vadd.f32 %v1652, %v1677
    %v1701 = vadd.f32 %v1653, %v1679
    %v1702 = vadd.f32 %v1654, %v1681
    %v1703 = vadd.f32 %v1655, %v1683
    %v1704 = vadd.f32 %v1656, %v1685
    %v1705 = vadd.f32 %v1657, %v1687
    %v1706 = vadd.f32 %v1658, %v1689
    %v1707 = vadd.f32 %v1659, %v1691
    %v1708 = vmul.f32 %v1500, 0.26601171
    %v1709 = vmul.f32 %v1501, 0.26601171
    %v1710 = vmul.f32 %v1502, 0.26601171
    %v1711 = vmul.f32 %v1503, 0.26601171
    %v1712 = vmul.f32 %v1504, 0.26601171
    %v1713 = vmul.f32 %v1505, 0.26601171
    %v1714 = vmul.f32 %v1506, 0.26601171
    %v1715 = vmul.f32 %v1507, 0.26601171
    %1724 = vrot.lane.b32.xlu0 %v1708, 123
    %v1725 = vpop.permute.xlu0 %1724
    %1726 = vrot.lane.b32.xlu0 %v1709, 123
    %v1727 = vpop.permute.xlu0 %1726
    %1728 = vrot.lane.b32.xlu0 %v1710, 123
    %v1729 = vpop.permute.xlu0 %1728
    %1730 = vrot.lane.b32.xlu0 %v1711, 123
    %v1731 = vpop.permute.xlu0 %1730
    %1732 = vrot.lane.b32.xlu0 %v1712, 123
    %v1733 = vpop.permute.xlu0 %1732
    %1734 = vrot.lane.b32.xlu0 %v1713, 123
    %v1735 = vpop.permute.xlu0 %1734
    %1736 = vrot.lane.b32.xlu0 %v1714, 123
    %v1737 = vpop.permute.xlu0 %1736
    %1738 = vrot.lane.b32.xlu0 %v1715, 123
    %v1739 = vpop.permute.xlu0 %1738
    %v1748 = vadd.f32 %v1700, %v1725
    %v1749 = vadd.f32 %v1701, %v1727
    %v1750 = vadd.f32 %v1702, %v1729
    %v1751 = vadd.f32 %v1703, %v1731
    %v1752 = vadd.f32 %v1704, %v1733
    %v1753 = vadd.f32 %v1705, %v1735
    %v1754 = vadd.f32 %v1706, %v1737
    %v1755 = vadd.f32 %v1707, %v1739
    %1756 = vrot.lane.b32.xlu0 %v1660, 122
    %v1757 = vpop.permute.xlu0 %1756
    %1758 = vrot.lane.b32.xlu0 %v1661, 122
    %v1759 = vpop.permute.xlu0 %1758
    %1760 = vrot.lane.b32.xlu0 %v1662, 122
    %v1761 = vpop.permute.xlu0 %1760
    %1762 = vrot.lane.b32.xlu0 %v1663, 122
    %v1763 = vpop.permute.xlu0 %1762
    %1764 = vrot.lane.b32.xlu0 %v1664, 122
    %v1765 = vpop.permute.xlu0 %1764
    %1766 = vrot.lane.b32.xlu0 %v1665, 122
    %v1767 = vpop.permute.xlu0 %1766
    %1768 = vrot.lane.b32.xlu0 %v1666, 122
    %v1769 = vpop.permute.xlu0 %1768
    %1770 = vrot.lane.b32.xlu0 %v1667, 122
    %v1771 = vpop.permute.xlu0 %1770
    %v1780 = vadd.f32 %v1748, %v1757
    %v1781 = vadd.f32 %v1749, %v1759
    %v1782 = vadd.f32 %v1750, %v1761
    %v1783 = vadd.f32 %v1751, %v1763
    %v1784 = vadd.f32 %v1752, %v1765
    %v1785 = vadd.f32 %v1753, %v1767
    %v1786 = vadd.f32 %v1754, %v1769
    %v1787 = vadd.f32 %v1755, %v1771
    %1788 = vrot.lane.b32.xlu0 %v1612, 121
    %v1789 = vpop.permute.xlu0 %1788
    %1790 = vrot.lane.b32.xlu0 %v1613, 121
    %v1791 = vpop.permute.xlu0 %1790
    %1792 = vrot.lane.b32.xlu0 %v1614, 121
    %v1793 = vpop.permute.xlu0 %1792
    %1794 = vrot.lane.b32.xlu0 %v1615, 121
    %v1795 = vpop.permute.xlu0 %1794
    %1796 = vrot.lane.b32.xlu0 %v1616, 121
    %v1797 = vpop.permute.xlu0 %1796
    %1798 = vrot.lane.b32.xlu0 %v1617, 121
    %v1799 = vpop.permute.xlu0 %1798
    %1800 = vrot.lane.b32.xlu0 %v1618, 121
    %v1801 = vpop.permute.xlu0 %1800
    %1802 = vrot.lane.b32.xlu0 %v1619, 121
    %v1803 = vpop.permute.xlu0 %1802
    %v1812 = vadd.f32 %v1780, %v1789
    %v1813 = vadd.f32 %v1781, %v1791
    %v1814 = vadd.f32 %v1782, %v1793
    %v1815 = vadd.f32 %v1783, %v1795
    %v1816 = vadd.f32 %v1784, %v1797
    %v1817 = vadd.f32 %v1785, %v1799
    %v1818 = vadd.f32 %v1786, %v1801
    %v1819 = vadd.f32 %v1787, %v1803
    %1820 = vrot.lane.b32.xlu0 %v1564, 120
    %v1821 = vpop.permute.xlu0 %1820
    %1822 = vrot.lane.b32.xlu0 %v1565, 120
    %v1823 = vpop.permute.xlu0 %1822
    %1824 = vrot.lane.b32.xlu0 %v1566, 120
    %v1825 = vpop.permute.xlu0 %1824
    %1826 = vrot.lane.b32.xlu0 %v1567, 120
    %v1827 = vpop.permute.xlu0 %1826
    %1828 = vrot.lane.b32.xlu0 %v1568, 120
    %v1829 = vpop.permute.xlu0 %1828
    %1830 = vrot.lane.b32.xlu0 %v1569, 120
    %v1831 = vpop.permute.xlu0 %1830
    %1832 = vrot.lane.b32.xlu0 %v1570, 120
    %v1833 = vpop.permute.xlu0 %1832
    %1834 = vrot.lane.b32.xlu0 %v1571, 120
    %v1835 = vpop.permute.xlu0 %1834
    %v1844 = vadd.f32 %v1812, %v1821
    %v1845 = vadd.f32 %v1813, %v1823
    %v1846 = vadd.f32 %v1814, %v1825
    %v1847 = vadd.f32 %v1815, %v1827
    %v1848 = vadd.f32 %v1816, %v1829
    %v1849 = vadd.f32 %v1817, %v1831
    %v1850 = vadd.f32 %v1818, %v1833
    %v1851 = vadd.f32 %v1819, %v1835
    %1852 = vrot.lane.b32.xlu0 %v1516, 119
    %v1853 = vpop.permute.xlu0 %1852
    %1854 = vrot.lane.b32.xlu0 %v1517, 119
    %v1855 = vpop.permute.xlu0 %1854
    %1856 = vrot.lane.b32.xlu0 %v1518, 119
    %v1857 = vpop.permute.xlu0 %1856
    %1858 = vrot.lane.b32.xlu0 %v1519, 119
    %v1859 = vpop.permute.xlu0 %1858
    %1860 = vrot.lane.b32.xlu0 %v1520, 119
    %v1861 = vpop.permute.xlu0 %1860
    %1862 = vrot.lane.b32.xlu0 %v1521, 119
    %v1863 = vpop.permute.xlu0 %1862
    %1864 = vrot.lane.b32.xlu0 %v1522, 119
    %v1865 = vpop.permute.xlu0 %1864
    %1866 = vrot.lane.b32.xlu0 %v1523, 119
    %v1867 = vpop.permute.xlu0 %1866
    %v1876 = vadd.f32 %v1844, %v1853
    %v1877 = vadd.f32 %v1845, %v1855
    %v1878 = vadd.f32 %v1846, %v1857
    %v1879 = vadd.f32 %v1847, %v1859
    %v1880 = vadd.f32 %v1848, %v1861
    %v1881 = vadd.f32 %v1849, %v1863
    %v1882 = vadd.f32 %v1850, %v1865
    %v1883 = vadd.f32 %v1851, %v1867
    %1892 = vrot.lane.b32.xlu0 %v1508, 118
    %v1893 = vpop.permute.xlu0 %1892
    %1894 = vrot.lane.b32.xlu0 %v1509, 118
    %v1895 = vpop.permute.xlu0 %1894
    %1896 = vrot.lane.b32.xlu0 %v1510, 118
    %v1897 = vpop.permute.xlu0 %1896
    %1898 = vrot.lane.b32.xlu0 %v1511, 118
    %v1899 = vpop.permute.xlu0 %1898
    %1900 = vrot.lane.b32.xlu0 %v1512, 118
    %v1901 = vpop.permute.xlu0 %1900
    %1902 = vrot.lane.b32.xlu0 %v1513, 118
    %v1903 = vpop.permute.xlu0 %1902
    %1904 = vrot.lane.b32.xlu0 %v1514, 118
    %v1905 = vpop.permute.xlu0 %1904
    %1906 = vrot.lane.b32.xlu0 %v1515, 118
    %v1907 = vpop.permute.xlu0 %1906
    %v1916 = vadd.f32 %v1876, %v1893
    %v1917 = vadd.f32 %v1877, %v1895
    %v1918 = vadd.f32 %v1878, %v1897
    %v1919 = vadd.f32 %v1879, %v1899
    %v1920 = vadd.f32 %v1880, %v1901
    %v1921 = vadd.f32 %v1881, %v1903
    %v1922 = vadd.f32 %v1882, %v1905
    %v1923 = vadd.f32 %v1883, %v1907
    %v1924 = vmul.f32 %v79, 0.0010283801
    %v1925 = vmul.f32 %v81, 0.0010283801
    %v1926 = vmul.f32 %v83, 0.0010283801
    %v1927 = vmul.f32 %v85, 0.0010283801
    %v1928 = vmul.f32 %v87, 0.0010283801
    %v1929 = vmul.f32 %v89, 0.0010283801
    %v1930 = vmul.f32 %v91, 0.0010283801
    %v1931 = vmul.f32 %v93, 0.0010283801
    %v1932 = vmul.f32 %v79, 0.007598758
    %v1933 = vmul.f32 %v81, 0.007598758
    %v1934 = vmul.f32 %v83, 0.007598758
    %v1935 = vmul.f32 %v85, 0.007598758
    %v1936 = vmul.f32 %v87, 0.007598758
    %v1937 = vmul.f32 %v89, 0.007598758
    %v1938 = vmul.f32 %v91, 0.007598758
    %v1939 = vmul.f32 %v93, 0.007598758
    %v1948 = vrot.slane %v1932, 1
    %v1949 = vrot.slane %v1933, 1
    %v1950 = vrot.slane %v1934, 1
    %v1951 = vrot.slane %v1935, 1
    %v1952 = vrot.slane %v1936, 1
    %v1953 = vrot.slane %v1937, 1
    %v1954 = vrot.slane %v1938, 1
    %v1955 = vrot.slane %v1939, 1
    %v1964 = vadd.f32 %v1924, %v1948
    %v1965 = vadd.f32 %v1925, %v1949
    %v1966 = vadd.f32 %v1926, %v1950
    %v1967 = vadd.f32 %v1927, %v1951
    %v1968 = vadd.f32 %v1928, %v1952
    %v1969 = vadd.f32 %v1929, %v1953
    %v1970 = vadd.f32 %v1930, %v1954
    %v1971 = vadd.f32 %v1931, %v1955
    %v1972 = vmul.f32 %v79, 0.036000773
    %v1973 = vmul.f32 %v81, 0.036000773
    %v1974 = vmul.f32 %v83, 0.036000773
    %v1975 = vmul.f32 %v85, 0.036000773
    %v1976 = vmul.f32 %v87, 0.036000773
    %v1977 = vmul.f32 %v89, 0.036000773
    %v1978 = vmul.f32 %v91, 0.036000773
    %v1979 = vmul.f32 %v93, 0.036000773
    %v1988 = vrot.slane %v1972, 2
    %v1989 = vrot.slane %v1973, 2
    %v1990 = vrot.slane %v1974, 2
    %v1991 = vrot.slane %v1975, 2
    %v1992 = vrot.slane %v1976, 2
    %v1993 = vrot.slane %v1977, 2
    %v1994 = vrot.slane %v1978, 2
    %v1995 = vrot.slane %v1979, 2
    %v2004 = vadd.f32 %v1964, %v1988
    %v2005 = vadd.f32 %v1965, %v1989
    %v2006 = vadd.f32 %v1966, %v1990
    %v2007 = vadd.f32 %v1967, %v1991
    %v2008 = vadd.f32 %v1968, %v1992
    %v2009 = vadd.f32 %v1969, %v1993
    %v2010 = vadd.f32 %v1970, %v1994
    %v2011 = vadd.f32 %v1971, %v1995
    %v2012 = vmul.f32 %v79, 0.10936069
    %v2013 = vmul.f32 %v80, 0.10936069
    %v2014 = vmul.f32 %v81, 0.10936069
    %v2015 = vmul.f32 %v82, 0.10936069
    %v2016 = vmul.f32 %v83, 0.10936069
    %v2017 = vmul.f32 %v84, 0.10936069
    %v2018 = vmul.f32 %v85, 0.10936069
    %v2019 = vmul.f32 %v86, 0.10936069
    %v2020 = vmul.f32 %v87, 0.10936069
    %v2021 = vmul.f32 %v88, 0.10936069
    %v2022 = vmul.f32 %v89, 0.10936069
    %v2023 = vmul.f32 %v90, 0.10936069
    %v2024 = vmul.f32 %v91, 0.10936069
    %v2025 = vmul.f32 %v92, 0.10936069
    %v2026 = vmul.f32 %v93, 0.10936069
    %v2027 = vmul.f32 %v94, 0.10936069
    %v2044 = vrot.slane %v2012, 3
    %v2045 = vrot.slane %v2013, 3
    %v2046 = vsel %vm247, %v2044, %v2045
    %v2047 = vrot.slane %v2014, 3
    %v2048 = vrot.slane %v2015, 3
    %v2049 = vsel %vm247, %v2047, %v2048
    %v2050 = vrot.slane %v2016, 3
    %v2051 = vrot.slane %v2017, 3
    %v2052 = vsel %vm247, %v2050, %v2051
    %v2053 = vrot.slane %v2018, 3
    %v2054 = vrot.slane %v2019, 3
    %v2055 = vsel %vm247, %v2053, %v2054
    %v2056 = vrot.slane %v2020, 3
    %v2057 = vrot.slane %v2021, 3
    %v2058 = vsel %vm247, %v2056, %v2057
    %v2059 = vrot.slane %v2022, 3
    %v2060 = vrot.slane %v2023, 3
    %v2061 = vsel %vm247, %v2059, %v2060
    %v2062 = vrot.slane %v2024, 3
    %v2063 = vrot.slane %v2025, 3
    %v2064 = vsel %vm247, %v2062, %v2063
    %v2065 = vrot.slane %v2026, 3
    %v2066 = vrot.slane %v2027, 3
    %v2067 = vsel %vm247, %v2065, %v2066
    %v2076 = vadd.f32 %v2004, %v2046
    %v2077 = vadd.f32 %v2005, %v2049
    %v2078 = vadd.f32 %v2006, %v2052
    %v2079 = vadd.f32 %v2007, %v2055
    %v2080 = vadd.f32 %v2008, %v2058
    %v2081 = vadd.f32 %v2009, %v2061
    %v2082 = vadd.f32 %v2010, %v2064
    %v2083 = vadd.f32 %v2011, %v2067
    %v2084 = vmul.f32 %v79, 0.21300554
    %v2085 = vmul.f32 %v80, 0.21300554
    %v2086 = vmul.f32 %v81, 0.21300554
    %v2087 = vmul.f32 %v82, 0.21300554
    %v2088 = vmul.f32 %v83, 0.21300554
    %v2089 = vmul.f32 %v84, 0.21300554
    %v2090 = vmul.f32 %v85, 0.21300554
    %v2091 = vmul.f32 %v86, 0.21300554
    %v2092 = vmul.f32 %v87, 0.21300554
    %v2093 = vmul.f32 %v88, 0.21300554
    %v2094 = vmul.f32 %v89, 0.21300554
    %v2095 = vmul.f32 %v90, 0.21300554
    %v2096 = vmul.f32 %v91, 0.21300554
    %v2097 = vmul.f32 %v92, 0.21300554
    %v2098 = vmul.f32 %v93, 0.21300554
    %v2099 = vmul.f32 %v94, 0.21300554
    %v2116 = vrot.slane %v2084, 4
    %v2117 = vrot.slane %v2085, 4
    %v2118 = vsel %vm320, %v2116, %v2117
    %v2119 = vrot.slane %v2086, 4
    %v2120 = vrot.slane %v2087, 4
    %v2121 = vsel %vm320, %v2119, %v2120
    %v2122 = vrot.slane %v2088, 4
    %v2123 = vrot.slane %v2089, 4
    %v2124 = vsel %vm320, %v2122, %v2123
    %v2125 = vrot.slane %v2090, 4
    %v2126 = vrot.slane %v2091, 4
    %v2127 = vsel %vm320, %v2125, %v2126
    %v2128 = vrot.slane %v2092, 4
    %v2129 = vrot.slane %v2093, 4
    %v2130 = vsel %vm320, %v2128, %v2129
    %v2131 = vrot.slane %v2094, 4
    %v2132 = vrot.slane %v2095, 4
    %v2133 = vsel %vm320, %v2131, %v2132
    %v2134 = vrot.slane %v2096, 4
    %v2135 = vrot.slane %v2097, 4
    %v2136 = vsel %vm320, %v2134, %v2135
    %v2137 = vrot.slane %v2098, 4
    %v2138 = vrot.slane %v2099, 4
    %v2139 = vsel %vm320, %v2137, %v2138
    %v2148 = vadd.f32 %v2076, %v2118
    %v2149 = vadd.f32 %v2077, %v2121
    %v2150 = vadd.f32 %v2078, %v2124
    %v2151 = vadd.f32 %v2079, %v2127
    %v2152 = vadd.f32 %v2080, %v2130
    %v2153 = vadd.f32 %v2081, %v2133
    %v2154 = vadd.f32 %v2082, %v2136
    %v2155 = vadd.f32 %v2083, %v2139
    %v2156 = vmul.f32 %v79, 0.26601171
    %v2157 = vmul.f32 %v80, 0.26601171
    %v2158 = vmul.f32 %v81, 0.26601171
    %v2159 = vmul.f32 %v82, 0.26601171
    %v2160 = vmul.f32 %v83, 0.26601171
    %v2161 = vmul.f32 %v84, 0.26601171
    %v2162 = vmul.f32 %v85, 0.26601171
    %v2163 = vmul.f32 %v86, 0.26601171
    %v2164 = vmul.f32 %v87, 0.26601171
    %v2165 = vmul.f32 %v88, 0.26601171
    %v2166 = vmul.f32 %v89, 0.26601171
    %v2167 = vmul.f32 %v90, 0.26601171
    %v2168 = vmul.f32 %v91, 0.26601171
    %v2169 = vmul.f32 %v92, 0.26601171
    %v2170 = vmul.f32 %v93, 0.26601171
    %v2171 = vmul.f32 %v94, 0.26601171
    %v2188 = vrot.slane %v2156, 5
    %v2189 = vrot.slane %v2157, 5
    %v2190 = vsel %vm393, %v2188, %v2189
    %v2191 = vrot.slane %v2158, 5
    %v2192 = vrot.slane %v2159, 5
    %v2193 = vsel %vm393, %v2191, %v2192
    %v2194 = vrot.slane %v2160, 5
    %v2195 = vrot.slane %v2161, 5
    %v2196 = vsel %vm393, %v2194, %v2195
    %v2197 = vrot.slane %v2162, 5
    %v2198 = vrot.slane %v2163, 5
    %v2199 = vsel %vm393, %v2197, %v2198
    %v2200 = vrot.slane %v2164, 5
    %v2201 = vrot.slane %v2165, 5
    %v2202 = vsel %vm393, %v2200, %v2201
    %v2203 = vrot.slane %v2166, 5
    %v2204 = vrot.slane %v2167, 5
    %v2205 = vsel %vm393, %v2203, %v2204
    %v2206 = vrot.slane %v2168, 5
    %v2207 = vrot.slane %v2169, 5
    %v2208 = vsel %vm393, %v2206, %v2207
    %v2209 = vrot.slane %v2170, 5
    %v2210 = vrot.slane %v2171, 5
    %v2211 = vsel %vm393, %v2209, %v2210
    %v2220 = vadd.f32 %v2148, %v2190
    %v2221 = vadd.f32 %v2149, %v2193
    %v2222 = vadd.f32 %v2150, %v2196
    %v2223 = vadd.f32 %v2151, %v2199
    %v2224 = vadd.f32 %v2152, %v2202
    %v2225 = vadd.f32 %v2153, %v2205
    %v2226 = vadd.f32 %v2154, %v2208
    %v2227 = vadd.f32 %v2155, %v2211
    %v2228 = vrot.slane %v2084, 6
    %v2229 = vrot.slane %v2085, 6
    %v2230 = vsel %vm434, %v2228, %v2229
    %v2231 = vrot.slane %v2086, 6
    %v2232 = vrot.slane %v2087, 6
    %v2233 = vsel %vm434, %v2231, %v2232
    %v2234 = vrot.slane %v2088, 6
    %v2235 = vrot.slane %v2089, 6
    %v2236 = vsel %vm434, %v2234, %v2235
    %v2237 = vrot.slane %v2090, 6
    %v2238 = vrot.slane %v2091, 6
    %v2239 = vsel %vm434, %v2237, %v2238
    %v2240 = vrot.slane %v2092, 6
    %v2241 = vrot.slane %v2093, 6
    %v2242 = vsel %vm434, %v2240, %v2241
    %v2243 = vrot.slane %v2094, 6
    %v2244 = vrot.slane %v2095, 6
    %v2245 = vsel %vm434, %v2243, %v2244
    %v2246 = vrot.slane %v2096, 6
    %v2247 = vrot.slane %v2097, 6
    %v2248 = vsel %vm434, %v2246, %v2247
    %v2249 = vrot.slane %v2098, 6
    %v2250 = vrot.slane %v2099, 6
    %v2251 = vsel %vm434, %v2249, %v2250
    %v2260 = vadd.f32 %v2220, %v2230
    %v2261 = vadd.f32 %v2221, %v2233
    %v2262 = vadd.f32 %v2222, %v2236
    %v2263 = vadd.f32 %v2223, %v2239
    %v2264 = vadd.f32 %v2224, %v2242
    %v2265 = vadd.f32 %v2225, %v2245
    %v2266 = vadd.f32 %v2226, %v2248
    %v2267 = vadd.f32 %v2227, %v2251
    %v2268 = vrot.slane %v2012, 7
    %v2269 = vrot.slane %v2013, 7
    %v2270 = vsel %vm475, %v2268, %v2269
    %v2271 = vrot.slane %v2014, 7
    %v2272 = vrot.slane %v2015, 7
    %v2273 = vsel %vm475, %v2271, %v2272
    %v2274 = vrot.slane %v2016, 7
    %v2275 = vrot.slane %v2017, 7
    %v2276 = vsel %vm475, %v2274, %v2275
    %v2277 = vrot.slane %v2018, 7
    %v2278 = vrot.slane %v2019, 7
    %v2279 = vsel %vm475, %v2277, %v2278
    %v2280 = vrot.slane %v2020, 7
    %v2281 = vrot.slane %v2021, 7
    %v2282 = vsel %vm475, %v2280, %v2281
    %v2283 = vrot.slane %v2022, 7
    %v2284 = vrot.slane %v2023, 7
    %v2285 = vsel %vm475, %v2283, %v2284
    %v2286 = vrot.slane %v2024, 7
    %v2287 = vrot.slane %v2025, 7
    %v2288 = vsel %vm475, %v2286, %v2287
    %v2289 = vrot.slane %v2026, 7
    %v2290 = vrot.slane %v2027, 7
    %v2291 = vsel %vm475, %v2289, %v2290
    %v2300 = vadd.f32 %v2260, %v2270
    %v2301 = vadd.f32 %v2261, %v2273
    %v2302 = vadd.f32 %v2262, %v2276
    %v2303 = vadd.f32 %v2263, %v2279
    %v2304 = vadd.f32 %v2264, %v2282
    %v2305 = vadd.f32 %v2265, %v2285
    %v2306 = vadd.f32 %v2266, %v2288
    %v2307 = vadd.f32 %v2267, %v2291
    %v2308 = vmul.f32 %v80, 0.036000773
    %v2309 = vmul.f32 %v82, 0.036000773
    %v2310 = vmul.f32 %v84, 0.036000773
    %v2311 = vmul.f32 %v86, 0.036000773
    %v2312 = vmul.f32 %v88, 0.036000773
    %v2313 = vmul.f32 %v90, 0.036000773
    %v2314 = vmul.f32 %v92, 0.036000773
    %v2315 = vmul.f32 %v94, 0.036000773
    %v2316 = vadd.f32 %v2300, %v2308
    %v2317 = vadd.f32 %v2301, %v2309
    %v2318 = vadd.f32 %v2302, %v2310
    %v2319 = vadd.f32 %v2303, %v2311
    %v2320 = vadd.f32 %v2304, %v2312
    %v2321 = vadd.f32 %v2305, %v2313
    %v2322 = vadd.f32 %v2306, %v2314
    %v2323 = vadd.f32 %v2307, %v2315
    %v2324 = vmul.f32 %v80, 0.007598758
    %v2325 = vmul.f32 %v82, 0.007598758
    %v2326 = vmul.f32 %v84, 0.007598758
    %v2327 = vmul.f32 %v86, 0.007598758
    %v2328 = vmul.f32 %v88, 0.007598758
    %v2329 = vmul.f32 %v90, 0.007598758
    %v2330 = vmul.f32 %v92, 0.007598758
    %v2331 = vmul.f32 %v94, 0.007598758
    %v2340 = vrot.slane %v2324, 1
    %v2341 = vrot.slane %v2325, 1
    %v2342 = vrot.slane %v2326, 1
    %v2343 = vrot.slane %v2327, 1
    %v2344 = vrot.slane %v2328, 1
    %v2345 = vrot.slane %v2329, 1
    %v2346 = vrot.slane %v2330, 1
    %v2347 = vrot.slane %v2331, 1
    %v2356 = vadd.f32 %v2316, %v2340
    %v2357 = vadd.f32 %v2317, %v2341
    %v2358 = vadd.f32 %v2318, %v2342
    %v2359 = vadd.f32 %v2319, %v2343
    %v2360 = vadd.f32 %v2320, %v2344
    %v2361 = vadd.f32 %v2321, %v2345
    %v2362 = vadd.f32 %v2322, %v2346
    %v2363 = vadd.f32 %v2323, %v2347
    %v2364 = vmul.f32 %v80, 0.0010283801
    %v2365 = vmul.f32 %v82, 0.0010283801
    %v2366 = vmul.f32 %v84, 0.0010283801
    %v2367 = vmul.f32 %v86, 0.0010283801
    %v2368 = vmul.f32 %v88, 0.0010283801
    %v2369 = vmul.f32 %v90, 0.0010283801
    %v2370 = vmul.f32 %v92, 0.0010283801
    %v2371 = vmul.f32 %v94, 0.0010283801
    %v2380 = vrot.slane %v2364, 2
    %v2381 = vrot.slane %v2365, 2
    %v2382 = vrot.slane %v2366, 2
    %v2383 = vrot.slane %v2367, 2
    %v2384 = vrot.slane %v2368, 2
    %v2385 = vrot.slane %v2369, 2
    %v2386 = vrot.slane %v2370, 2
    %v2387 = vrot.slane %v2371, 2
    %v2396 = vadd.f32 %v2356, %v2380
    %v2397 = vadd.f32 %v2357, %v2381
    %v2398 = vadd.f32 %v2358, %v2382
    %v2399 = vadd.f32 %v2359, %v2383
    %v2400 = vadd.f32 %v2360, %v2384
    %v2401 = vadd.f32 %v2361, %v2385
    %v2402 = vadd.f32 %v2362, %v2386
    %v2403 = vadd.f32 %v2363, %v2387
    %v2404 = vmul.f32 %v2396, 0.0010283801
    %v2405 = vmul.f32 %v2397, 0.0010283801
    %v2406 = vmul.f32 %v2398, 0.0010283801
    %v2407 = vmul.f32 %v2399, 0.0010283801
    %v2408 = vmul.f32 %v2400, 0.0010283801
    %v2409 = vmul.f32 %v2401, 0.0010283801
    %v2410 = vmul.f32 %v2402, 0.0010283801
    %v2411 = vmul.f32 %v2403, 0.0010283801
    %v2412 = vmul.f32 %v2396, 0.007598758
    %v2413 = vmul.f32 %v2397, 0.007598758
    %v2414 = vmul.f32 %v2398, 0.007598758
    %v2415 = vmul.f32 %v2399, 0.007598758
    %v2416 = vmul.f32 %v2400, 0.007598758
    %v2417 = vmul.f32 %v2401, 0.007598758
    %v2418 = vmul.f32 %v2402, 0.007598758
    %v2419 = vmul.f32 %v2403, 0.007598758
    %2428 = vrot.lane.b32.xlu0 %v2412, 127
    %v2429 = vpop.permute.xlu0 %2428
    %2430 = vrot.lane.b32.xlu0 %v2413, 127
    %v2431 = vpop.permute.xlu0 %2430
    %2432 = vrot.lane.b32.xlu0 %v2414, 127
    %v2433 = vpop.permute.xlu0 %2432
    %2434 = vrot.lane.b32.xlu0 %v2415, 127
    %v2435 = vpop.permute.xlu0 %2434
    %2436 = vrot.lane.b32.xlu0 %v2416, 127
    %v2437 = vpop.permute.xlu0 %2436
    %2438 = vrot.lane.b32.xlu0 %v2417, 127
    %v2439 = vpop.permute.xlu0 %2438
    %2440 = vrot.lane.b32.xlu0 %v2418, 127
    %v2441 = vpop.permute.xlu0 %2440
    %2442 = vrot.lane.b32.xlu0 %v2419, 127
    %v2443 = vpop.permute.xlu0 %2442
    %v2452 = vadd.f32 %v2404, %v2429
    %v2453 = vadd.f32 %v2405, %v2431
    %v2454 = vadd.f32 %v2406, %v2433
    %v2455 = vadd.f32 %v2407, %v2435
    %v2456 = vadd.f32 %v2408, %v2437
    %v2457 = vadd.f32 %v2409, %v2439
    %v2458 = vadd.f32 %v2410, %v2441
    %v2459 = vadd.f32 %v2411, %v2443
    %v2460 = vmul.f32 %v2396, 0.036000773
    %v2461 = vmul.f32 %v2397, 0.036000773
    %v2462 = vmul.f32 %v2398, 0.036000773
    %v2463 = vmul.f32 %v2399, 0.036000773
    %v2464 = vmul.f32 %v2400, 0.036000773
    %v2465 = vmul.f32 %v2401, 0.036000773
    %v2466 = vmul.f32 %v2402, 0.036000773
    %v2467 = vmul.f32 %v2403, 0.036000773
    %2476 = vrot.lane.b32.xlu0 %v2460, 126
    %v2477 = vpop.permute.xlu0 %2476
    %2478 = vrot.lane.b32.xlu0 %v2461, 126
    %v2479 = vpop.permute.xlu0 %2478
    %2480 = vrot.lane.b32.xlu0 %v2462, 126
    %v2481 = vpop.permute.xlu0 %2480
    %2482 = vrot.lane.b32.xlu0 %v2463, 126
    %v2483 = vpop.permute.xlu0 %2482
    %2484 = vrot.lane.b32.xlu0 %v2464, 126
    %v2485 = vpop.permute.xlu0 %2484
    %2486 = vrot.lane.b32.xlu0 %v2465, 126
    %v2487 = vpop.permute.xlu0 %2486
    %2488 = vrot.lane.b32.xlu0 %v2466, 126
    %v2489 = vpop.permute.xlu0 %2488
    %2490 = vrot.lane.b32.xlu0 %v2467, 126
    %v2491 = vpop.permute.xlu0 %2490
    %v2500 = vadd.f32 %v2452, %v2477
    %v2501 = vadd.f32 %v2453, %v2479
    %v2502 = vadd.f32 %v2454, %v2481
    %v2503 = vadd.f32 %v2455, %v2483
    %v2504 = vadd.f32 %v2456, %v2485
    %v2505 = vadd.f32 %v2457, %v2487
    %v2506 = vadd.f32 %v2458, %v2489
    %v2507 = vadd.f32 %v2459, %v2491
    %v2508 = vmul.f32 %v2396, 0.10936069
    %v2509 = vmul.f32 %v2397, 0.10936069
    %v2510 = vmul.f32 %v2398, 0.10936069
    %v2511 = vmul.f32 %v2399, 0.10936069
    %v2512 = vmul.f32 %v2400, 0.10936069
    %v2513 = vmul.f32 %v2401, 0.10936069
    %v2514 = vmul.f32 %v2402, 0.10936069
    %v2515 = vmul.f32 %v2403, 0.10936069
    %2524 = vrot.lane.b32.xlu0 %v2508, 125
    %v2525 = vpop.permute.xlu0 %2524
    %2526 = vrot.lane.b32.xlu0 %v2509, 125
    %v2527 = vpop.permute.xlu0 %2526
    %2528 = vrot.lane.b32.xlu0 %v2510, 125
    %v2529 = vpop.permute.xlu0 %2528
    %2530 = vrot.lane.b32.xlu0 %v2511, 125
    %v2531 = vpop.permute.xlu0 %2530
    %2532 = vrot.lane.b32.xlu0 %v2512, 125
    %v2533 = vpop.permute.xlu0 %2532
    %2534 = vrot.lane.b32.xlu0 %v2513, 125
    %v2535 = vpop.permute.xlu0 %2534
    %2536 = vrot.lane.b32.xlu0 %v2514, 125
    %v2537 = vpop.permute.xlu0 %2536
    %2538 = vrot.lane.b32.xlu0 %v2515, 125
    %v2539 = vpop.permute.xlu0 %2538
    %v2548 = vadd.f32 %v2500, %v2525
    %v2549 = vadd.f32 %v2501, %v2527
    %v2550 = vadd.f32 %v2502, %v2529
    %v2551 = vadd.f32 %v2503, %v2531
    %v2552 = vadd.f32 %v2504, %v2533
    %v2553 = vadd.f32 %v2505, %v2535
    %v2554 = vadd.f32 %v2506, %v2537
    %v2555 = vadd.f32 %v2507, %v2539
    %v2556 = vmul.f32 %v2396, 0.21300554
    %v2557 = vmul.f32 %v2397, 0.21300554
    %v2558 = vmul.f32 %v2398, 0.21300554
    %v2559 = vmul.f32 %v2399, 0.21300554
    %v2560 = vmul.f32 %v2400, 0.21300554
    %v2561 = vmul.f32 %v2401, 0.21300554
    %v2562 = vmul.f32 %v2402, 0.21300554
    %v2563 = vmul.f32 %v2403, 0.21300554
    %2572 = vrot.lane.b32.xlu0 %v2556, 124
    %v2573 = vpop.permute.xlu0 %2572
    %2574 = vrot.lane.b32.xlu0 %v2557, 124
    %v2575 = vpop.permute.xlu0 %2574
    %2576 = vrot.lane.b32.xlu0 %v2558, 124
    %v2577 = vpop.permute.xlu0 %2576
    %2578 = vrot.lane.b32.xlu0 %v2559, 124
    %v2579 = vpop.permute.xlu0 %2578
    %2580 = vrot.lane.b32.xlu0 %v2560, 124
    %v2581 = vpop.permute.xlu0 %2580
    %2582 = vrot.lane.b32.xlu0 %v2561, 124
    %v2583 = vpop.permute.xlu0 %2582
    %2584 = vrot.lane.b32.xlu0 %v2562, 124
    %v2585 = vpop.permute.xlu0 %2584
    %2586 = vrot.lane.b32.xlu0 %v2563, 124
    %v2587 = vpop.permute.xlu0 %2586
    %v2596 = vadd.f32 %v2548, %v2573
    %v2597 = vadd.f32 %v2549, %v2575
    %v2598 = vadd.f32 %v2550, %v2577
    %v2599 = vadd.f32 %v2551, %v2579
    %v2600 = vadd.f32 %v2552, %v2581
    %v2601 = vadd.f32 %v2553, %v2583
    %v2602 = vadd.f32 %v2554, %v2585
    %v2603 = vadd.f32 %v2555, %v2587
    %v2604 = vmul.f32 %v2396, 0.26601171
    %v2605 = vmul.f32 %v2397, 0.26601171
    %v2606 = vmul.f32 %v2398, 0.26601171
    %v2607 = vmul.f32 %v2399, 0.26601171
    %v2608 = vmul.f32 %v2400, 0.26601171
    %v2609 = vmul.f32 %v2401, 0.26601171
    %v2610 = vmul.f32 %v2402, 0.26601171
    %v2611 = vmul.f32 %v2403, 0.26601171
    %2620 = vrot.lane.b32.xlu0 %v2604, 123
    %v2621 = vpop.permute.xlu0 %2620
    %2622 = vrot.lane.b32.xlu0 %v2605, 123
    %v2623 = vpop.permute.xlu0 %2622
    %2624 = vrot.lane.b32.xlu0 %v2606, 123
    %v2625 = vpop.permute.xlu0 %2624
    %2626 = vrot.lane.b32.xlu0 %v2607, 123
    %v2627 = vpop.permute.xlu0 %2626
    %2628 = vrot.lane.b32.xlu0 %v2608, 123
    %v2629 = vpop.permute.xlu0 %2628
    %2630 = vrot.lane.b32.xlu0 %v2609, 123
    %v2631 = vpop.permute.xlu0 %2630
    %2632 = vrot.lane.b32.xlu0 %v2610, 123
    %v2633 = vpop.permute.xlu0 %2632
    %2634 = vrot.lane.b32.xlu0 %v2611, 123
    %v2635 = vpop.permute.xlu0 %2634
    %v2644 = vadd.f32 %v2596, %v2621
    %v2645 = vadd.f32 %v2597, %v2623
    %v2646 = vadd.f32 %v2598, %v2625
    %v2647 = vadd.f32 %v2599, %v2627
    %v2648 = vadd.f32 %v2600, %v2629
    %v2649 = vadd.f32 %v2601, %v2631
    %v2650 = vadd.f32 %v2602, %v2633
    %v2651 = vadd.f32 %v2603, %v2635
    %2652 = vrot.lane.b32.xlu0 %v2556, 122
    %v2653 = vpop.permute.xlu0 %2652
    %2654 = vrot.lane.b32.xlu0 %v2557, 122
    %v2655 = vpop.permute.xlu0 %2654
    %2656 = vrot.lane.b32.xlu0 %v2558, 122
    %v2657 = vpop.permute.xlu0 %2656
    %2658 = vrot.lane.b32.xlu0 %v2559, 122
    %v2659 = vpop.permute.xlu0 %2658
    %2660 = vrot.lane.b32.xlu0 %v2560, 122
    %v2661 = vpop.permute.xlu0 %2660
    %2662 = vrot.lane.b32.xlu0 %v2561, 122
    %v2663 = vpop.permute.xlu0 %2662
    %2664 = vrot.lane.b32.xlu0 %v2562, 122
    %v2665 = vpop.permute.xlu0 %2664
    %2666 = vrot.lane.b32.xlu0 %v2563, 122
    %v2667 = vpop.permute.xlu0 %2666
    %v2676 = vadd.f32 %v2644, %v2653
    %v2677 = vadd.f32 %v2645, %v2655
    %v2678 = vadd.f32 %v2646, %v2657
    %v2679 = vadd.f32 %v2647, %v2659
    %v2680 = vadd.f32 %v2648, %v2661
    %v2681 = vadd.f32 %v2649, %v2663
    %v2682 = vadd.f32 %v2650, %v2665
    %v2683 = vadd.f32 %v2651, %v2667
    %2684 = vrot.lane.b32.xlu0 %v2508, 121
    %v2685 = vpop.permute.xlu0 %2684
    %2686 = vrot.lane.b32.xlu0 %v2509, 121
    %v2687 = vpop.permute.xlu0 %2686
    %2688 = vrot.lane.b32.xlu0 %v2510, 121
    %v2689 = vpop.permute.xlu0 %2688
    %2690 = vrot.lane.b32.xlu0 %v2511, 121
    %v2691 = vpop.permute.xlu0 %2690
    %2692 = vrot.lane.b32.xlu0 %v2512, 121
    %v2693 = vpop.permute.xlu0 %2692
    %2694 = vrot.lane.b32.xlu0 %v2513, 121
    %v2695 = vpop.permute.xlu0 %2694
    %2696 = vrot.lane.b32.xlu0 %v2514, 121
    %v2697 = vpop.permute.xlu0 %2696
    %2698 = vrot.lane.b32.xlu0 %v2515, 121
    %v2699 = vpop.permute.xlu0 %2698
    %v2708 = vadd.f32 %v2676, %v2685
    %v2709 = vadd.f32 %v2677, %v2687
    %v2710 = vadd.f32 %v2678, %v2689
    %v2711 = vadd.f32 %v2679, %v2691
    %v2712 = vadd.f32 %v2680, %v2693
    %v2713 = vadd.f32 %v2681, %v2695
    %v2714 = vadd.f32 %v2682, %v2697
    %v2715 = vadd.f32 %v2683, %v2699
    %2716 = vrot.lane.b32.xlu0 %v2460, 120
    %v2717 = vpop.permute.xlu0 %2716
    %2718 = vrot.lane.b32.xlu0 %v2461, 120
    %v2719 = vpop.permute.xlu0 %2718
    %2720 = vrot.lane.b32.xlu0 %v2462, 120
    %v2721 = vpop.permute.xlu0 %2720
    %2722 = vrot.lane.b32.xlu0 %v2463, 120
    %v2723 = vpop.permute.xlu0 %2722
    %2724 = vrot.lane.b32.xlu0 %v2464, 120
    %v2725 = vpop.permute.xlu0 %2724
    %2726 = vrot.lane.b32.xlu0 %v2465, 120
    %v2727 = vpop.permute.xlu0 %2726
    %2728 = vrot.lane.b32.xlu0 %v2466, 120
    %v2729 = vpop.permute.xlu0 %2728
    %2730 = vrot.lane.b32.xlu0 %v2467, 120
    %v2731 = vpop.permute.xlu0 %2730
    %v2740 = vadd.f32 %v2708, %v2717
    %v2741 = vadd.f32 %v2709, %v2719
    %v2742 = vadd.f32 %v2710, %v2721
    %v2743 = vadd.f32 %v2711, %v2723
    %v2744 = vadd.f32 %v2712, %v2725
    %v2745 = vadd.f32 %v2713, %v2727
    %v2746 = vadd.f32 %v2714, %v2729
    %v2747 = vadd.f32 %v2715, %v2731
    %2748 = vrot.lane.b32.xlu0 %v2412, 119
    %v2749 = vpop.permute.xlu0 %2748
    %2750 = vrot.lane.b32.xlu0 %v2413, 119
    %v2751 = vpop.permute.xlu0 %2750
    %2752 = vrot.lane.b32.xlu0 %v2414, 119
    %v2753 = vpop.permute.xlu0 %2752
    %2754 = vrot.lane.b32.xlu0 %v2415, 119
    %v2755 = vpop.permute.xlu0 %2754
    %2756 = vrot.lane.b32.xlu0 %v2416, 119
    %v2757 = vpop.permute.xlu0 %2756
    %2758 = vrot.lane.b32.xlu0 %v2417, 119
    %v2759 = vpop.permute.xlu0 %2758
    %2760 = vrot.lane.b32.xlu0 %v2418, 119
    %v2761 = vpop.permute.xlu0 %2760
    %2762 = vrot.lane.b32.xlu0 %v2419, 119
    %v2763 = vpop.permute.xlu0 %2762
    %v2772 = vadd.f32 %v2740, %v2749
    %v2773 = vadd.f32 %v2741, %v2751
    %v2774 = vadd.f32 %v2742, %v2753
    %v2775 = vadd.f32 %v2743, %v2755
    %v2776 = vadd.f32 %v2744, %v2757
    %v2777 = vadd.f32 %v2745, %v2759
    %v2778 = vadd.f32 %v2746, %v2761
    %v2779 = vadd.f32 %v2747, %v2763
    %2788 = vrot.lane.b32.xlu0 %v2404, 118
    %v2789 = vpop.permute.xlu0 %2788
    %2790 = vrot.lane.b32.xlu0 %v2405, 118
    %v2791 = vpop.permute.xlu0 %2790
    %2792 = vrot.lane.b32.xlu0 %v2406, 118
    %v2793 = vpop.permute.xlu0 %2792
    %2794 = vrot.lane.b32.xlu0 %v2407, 118
    %v2795 = vpop.permute.xlu0 %2794
    %2796 = vrot.lane.b32.xlu0 %v2408, 118
    %v2797 = vpop.permute.xlu0 %2796
    %2798 = vrot.lane.b32.xlu0 %v2409, 118
    %v2799 = vpop.permute.xlu0 %2798
    %2800 = vrot.lane.b32.xlu0 %v2410, 118
    %v2801 = vpop.permute.xlu0 %2800
    %2802 = vrot.lane.b32.xlu0 %v2411, 118
    %v2803 = vpop.permute.xlu0 %2802
    %v2812 = vadd.f32 %v2772, %v2789
    %v2813 = vadd.f32 %v2773, %v2791
    %v2814 = vadd.f32 %v2774, %v2793
    %v2815 = vadd.f32 %v2775, %v2795
    %v2816 = vadd.f32 %v2776, %v2797
    %v2817 = vadd.f32 %v2777, %v2799
    %v2818 = vadd.f32 %v2778, %v2801
    %v2819 = vadd.f32 %v2779, %v2803
    %v2820 = vmul.f32 %v95, 0.0010283801
    %v2821 = vmul.f32 %v97, 0.0010283801
    %v2822 = vmul.f32 %v99, 0.0010283801
    %v2823 = vmul.f32 %v101, 0.0010283801
    %v2824 = vmul.f32 %v103, 0.0010283801
    %v2825 = vmul.f32 %v105, 0.0010283801
    %v2826 = vmul.f32 %v107, 0.0010283801
    %v2827 = vmul.f32 %v109, 0.0010283801
    %v2828 = vmul.f32 %v95, 0.007598758
    %v2829 = vmul.f32 %v97, 0.007598758
    %v2830 = vmul.f32 %v99, 0.007598758
    %v2831 = vmul.f32 %v101, 0.007598758
    %v2832 = vmul.f32 %v103, 0.007598758
    %v2833 = vmul.f32 %v105, 0.007598758
    %v2834 = vmul.f32 %v107, 0.007598758
    %v2835 = vmul.f32 %v109, 0.007598758
    %v2844 = vrot.slane %v2828, 1
    %v2845 = vrot.slane %v2829, 1
    %v2846 = vrot.slane %v2830, 1
    %v2847 = vrot.slane %v2831, 1
    %v2848 = vrot.slane %v2832, 1
    %v2849 = vrot.slane %v2833, 1
    %v2850 = vrot.slane %v2834, 1
    %v2851 = vrot.slane %v2835, 1
    %v2860 = vadd.f32 %v2820, %v2844
    %v2861 = vadd.f32 %v2821, %v2845
    %v2862 = vadd.f32 %v2822, %v2846
    %v2863 = vadd.f32 %v2823, %v2847
    %v2864 = vadd.f32 %v2824, %v2848
    %v2865 = vadd.f32 %v2825, %v2849
    %v2866 = vadd.f32 %v2826, %v2850
    %v2867 = vadd.f32 %v2827, %v2851
    %v2868 = vmul.f32 %v95, 0.036000773
    %v2869 = vmul.f32 %v97, 0.036000773
    %v2870 = vmul.f32 %v99, 0.036000773
    %v2871 = vmul.f32 %v101, 0.036000773
    %v2872 = vmul.f32 %v103, 0.036000773
    %v2873 = vmul.f32 %v105, 0.036000773
    %v2874 = vmul.f32 %v107, 0.036000773
    %v2875 = vmul.f32 %v109, 0.036000773
    %v2884 = vrot.slane %v2868, 2
    %v2885 = vrot.slane %v2869, 2
    %v2886 = vrot.slane %v2870, 2
    %v2887 = vrot.slane %v2871, 2
    %v2888 = vrot.slane %v2872, 2
    %v2889 = vrot.slane %v2873, 2
    %v2890 = vrot.slane %v2874, 2
    %v2891 = vrot.slane %v2875, 2
    %v2900 = vadd.f32 %v2860, %v2884
    %v2901 = vadd.f32 %v2861, %v2885
    %v2902 = vadd.f32 %v2862, %v2886
    %v2903 = vadd.f32 %v2863, %v2887
    %v2904 = vadd.f32 %v2864, %v2888
    %v2905 = vadd.f32 %v2865, %v2889
    %v2906 = vadd.f32 %v2866, %v2890
    %v2907 = vadd.f32 %v2867, %v2891
    %v2908 = vmul.f32 %v95, 0.10936069
    %v2909 = vmul.f32 %v96, 0.10936069
    %v2910 = vmul.f32 %v97, 0.10936069
    %v2911 = vmul.f32 %v98, 0.10936069
    %v2912 = vmul.f32 %v99, 0.10936069
    %v2913 = vmul.f32 %v100, 0.10936069
    %v2914 = vmul.f32 %v101, 0.10936069
    %v2915 = vmul.f32 %v102, 0.10936069
    %v2916 = vmul.f32 %v103, 0.10936069
    %v2917 = vmul.f32 %v104, 0.10936069
    %v2918 = vmul.f32 %v105, 0.10936069
    %v2919 = vmul.f32 %v106, 0.10936069
    %v2920 = vmul.f32 %v107, 0.10936069
    %v2921 = vmul.f32 %v108, 0.10936069
    %v2922 = vmul.f32 %v109, 0.10936069
    %v2923 = vmul.f32 %v110, 0.10936069
    %v2940 = vrot.slane %v2908, 3
    %v2941 = vrot.slane %v2909, 3
    %v2942 = vsel %vm247, %v2940, %v2941
    %v2943 = vrot.slane %v2910, 3
    %v2944 = vrot.slane %v2911, 3
    %v2945 = vsel %vm247, %v2943, %v2944
    %v2946 = vrot.slane %v2912, 3
    %v2947 = vrot.slane %v2913, 3
    %v2948 = vsel %vm247, %v2946, %v2947
    %v2949 = vrot.slane %v2914, 3
    %v2950 = vrot.slane %v2915, 3
    %v2951 = vsel %vm247, %v2949, %v2950
    %v2952 = vrot.slane %v2916, 3
    %v2953 = vrot.slane %v2917, 3
    %v2954 = vsel %vm247, %v2952, %v2953
    %v2955 = vrot.slane %v2918, 3
    %v2956 = vrot.slane %v2919, 3
    %v2957 = vsel %vm247, %v2955, %v2956
    %v2958 = vrot.slane %v2920, 3
    %v2959 = vrot.slane %v2921, 3
    %v2960 = vsel %vm247, %v2958, %v2959
    %v2961 = vrot.slane %v2922, 3
    %v2962 = vrot.slane %v2923, 3
    %v2963 = vsel %vm247, %v2961, %v2962
    %v2972 = vadd.f32 %v2900, %v2942
    %v2973 = vadd.f32 %v2901, %v2945
    %v2974 = vadd.f32 %v2902, %v2948
    %v2975 = vadd.f32 %v2903, %v2951
    %v2976 = vadd.f32 %v2904, %v2954
    %v2977 = vadd.f32 %v2905, %v2957
    %v2978 = vadd.f32 %v2906, %v2960
    %v2979 = vadd.f32 %v2907, %v2963
    %v2980 = vmul.f32 %v95, 0.21300554
    %v2981 = vmul.f32 %v96, 0.21300554
    %v2982 = vmul.f32 %v97, 0.21300554
    %v2983 = vmul.f32 %v98, 0.21300554
    %v2984 = vmul.f32 %v99, 0.21300554
    %v2985 = vmul.f32 %v100, 0.21300554
    %v2986 = vmul.f32 %v101, 0.21300554
    %v2987 = vmul.f32 %v102, 0.21300554
    %v2988 = vmul.f32 %v103, 0.21300554
    %v2989 = vmul.f32 %v104, 0.21300554
    %v2990 = vmul.f32 %v105, 0.21300554
    %v2991 = vmul.f32 %v106, 0.21300554
    %v2992 = vmul.f32 %v107, 0.21300554
    %v2993 = vmul.f32 %v108, 0.21300554
    %v2994 = vmul.f32 %v109, 0.21300554
    %v2995 = vmul.f32 %v110, 0.21300554
    %v3012 = vrot.slane %v2980, 4
    %v3013 = vrot.slane %v2981, 4
    %v3014 = vsel %vm320, %v3012, %v3013
    %v3015 = vrot.slane %v2982, 4
    %v3016 = vrot.slane %v2983, 4
    %v3017 = vsel %vm320, %v3015, %v3016
    %v3018 = vrot.slane %v2984, 4
    %v3019 = vrot.slane %v2985, 4
    %v3020 = vsel %vm320, %v3018, %v3019
    %v3021 = vrot.slane %v2986, 4
    %v3022 = vrot.slane %v2987, 4
    %v3023 = vsel %vm320, %v3021, %v3022
    %v3024 = vrot.slane %v2988, 4
    %v3025 = vrot.slane %v2989, 4
    %v3026 = vsel %vm320, %v3024, %v3025
    %v3027 = vrot.slane %v2990, 4
    %v3028 = vrot.slane %v2991, 4
    %v3029 = vsel %vm320, %v3027, %v3028
    %v3030 = vrot.slane %v2992, 4
    %v3031 = vrot.slane %v2993, 4
    %v3032 = vsel %vm320, %v3030, %v3031
    %v3033 = vrot.slane %v2994, 4
    %v3034 = vrot.slane %v2995, 4
    %v3035 = vsel %vm320, %v3033, %v3034
    %v3044 = vadd.f32 %v2972, %v3014
    %v3045 = vadd.f32 %v2973, %v3017
    %v3046 = vadd.f32 %v2974, %v3020
    %v3047 = vadd.f32 %v2975, %v3023
    %v3048 = vadd.f32 %v2976, %v3026
    %v3049 = vadd.f32 %v2977, %v3029
    %v3050 = vadd.f32 %v2978, %v3032
    %v3051 = vadd.f32 %v2979, %v3035
    %v3052 = vmul.f32 %v95, 0.26601171
    %v3053 = vmul.f32 %v96, 0.26601171
    %v3054 = vmul.f32 %v97, 0.26601171
    %v3055 = vmul.f32 %v98, 0.26601171
    %v3056 = vmul.f32 %v99, 0.26601171
    %v3057 = vmul.f32 %v100, 0.26601171
    %v3058 = vmul.f32 %v101, 0.26601171
    %v3059 = vmul.f32 %v102, 0.26601171
    %v3060 = vmul.f32 %v103, 0.26601171
    %v3061 = vmul.f32 %v104, 0.26601171
    %v3062 = vmul.f32 %v105, 0.26601171
    %v3063 = vmul.f32 %v106, 0.26601171
    %v3064 = vmul.f32 %v107, 0.26601171
    %v3065 = vmul.f32 %v108, 0.26601171
    %v3066 = vmul.f32 %v109, 0.26601171
    %v3067 = vmul.f32 %v110, 0.26601171
    %v3084 = vrot.slane %v3052, 5
    %v3085 = vrot.slane %v3053, 5
    %v3086 = vsel %vm393, %v3084, %v3085
    %v3087 = vrot.slane %v3054, 5
    %v3088 = vrot.slane %v3055, 5
    %v3089 = vsel %vm393, %v3087, %v3088
    %v3090 = vrot.slane %v3056, 5
    %v3091 = vrot.slane %v3057, 5
    %v3092 = vsel %vm393, %v3090, %v3091
    %v3093 = vrot.slane %v3058, 5
    %v3094 = vrot.slane %v3059, 5
    %v3095 = vsel %vm393, %v3093, %v3094
    %v3096 = vrot.slane %v3060, 5
    %v3097 = vrot.slane %v3061, 5
    %v3098 = vsel %vm393, %v3096, %v3097
    %v3099 = vrot.slane %v3062, 5
    %v3100 = vrot.slane %v3063, 5
    %v3101 = vsel %vm393, %v3099, %v3100
    %v3102 = vrot.slane %v3064, 5
    %v3103 = vrot.slane %v3065, 5
    %v3104 = vsel %vm393, %v3102, %v3103
    %v3105 = vrot.slane %v3066, 5
    %v3106 = vrot.slane %v3067, 5
    %v3107 = vsel %vm393, %v3105, %v3106
    %v3116 = vadd.f32 %v3044, %v3086
    %v3117 = vadd.f32 %v3045, %v3089
    %v3118 = vadd.f32 %v3046, %v3092
    %v3119 = vadd.f32 %v3047, %v3095
    %v3120 = vadd.f32 %v3048, %v3098
    %v3121 = vadd.f32 %v3049, %v3101
    %v3122 = vadd.f32 %v3050, %v3104
    %v3123 = vadd.f32 %v3051, %v3107
    %v3124 = vrot.slane %v2980, 6
    %v3125 = vrot.slane %v2981, 6
    %v3126 = vsel %vm434, %v3124, %v3125
    %v3127 = vrot.slane %v2982, 6
    %v3128 = vrot.slane %v2983, 6
    %v3129 = vsel %vm434, %v3127, %v3128
    %v3130 = vrot.slane %v2984, 6
    %v3131 = vrot.slane %v2985, 6
    %v3132 = vsel %vm434, %v3130, %v3131
    %v3133 = vrot.slane %v2986, 6
    %v3134 = vrot.slane %v2987, 6
    %v3135 = vsel %vm434, %v3133, %v3134
    %v3136 = vrot.slane %v2988, 6
    %v3137 = vrot.slane %v2989, 6
    %v3138 = vsel %vm434, %v3136, %v3137
    %v3139 = vrot.slane %v2990, 6
    %v3140 = vrot.slane %v2991, 6
    %v3141 = vsel %vm434, %v3139, %v3140
    %v3142 = vrot.slane %v2992, 6
    %v3143 = vrot.slane %v2993, 6
    %v3144 = vsel %vm434, %v3142, %v3143
    %v3145 = vrot.slane %v2994, 6
    %v3146 = vrot.slane %v2995, 6
    %v3147 = vsel %vm434, %v3145, %v3146
    %v3156 = vadd.f32 %v3116, %v3126
    %v3157 = vadd.f32 %v3117, %v3129
    %v3158 = vadd.f32 %v3118, %v3132
    %v3159 = vadd.f32 %v3119, %v3135
    %v3160 = vadd.f32 %v3120, %v3138
    %v3161 = vadd.f32 %v3121, %v3141
    %v3162 = vadd.f32 %v3122, %v3144
    %v3163 = vadd.f32 %v3123, %v3147
    %v3164 = vrot.slane %v2908, 7
    %v3165 = vrot.slane %v2909, 7
    %v3166 = vsel %vm475, %v3164, %v3165
    %v3167 = vrot.slane %v2910, 7
    %v3168 = vrot.slane %v2911, 7
    %v3169 = vsel %vm475, %v3167, %v3168
    %v3170 = vrot.slane %v2912, 7
    %v3171 = vrot.slane %v2913, 7
    %v3172 = vsel %vm475, %v3170, %v3171
    %v3173 = vrot.slane %v2914, 7
    %v3174 = vrot.slane %v2915, 7
    %v3175 = vsel %vm475, %v3173, %v3174
    %v3176 = vrot.slane %v2916, 7
    %v3177 = vrot.slane %v2917, 7
    %v3178 = vsel %vm475, %v3176, %v3177
    %v3179 = vrot.slane %v2918, 7
    %v3180 = vrot.slane %v2919, 7
    %v3181 = vsel %vm475, %v3179, %v3180
    %v3182 = vrot.slane %v2920, 7
    %v3183 = vrot.slane %v2921, 7
    %v3184 = vsel %vm475, %v3182, %v3183
    %v3185 = vrot.slane %v2922, 7
    %v3186 = vrot.slane %v2923, 7
    %v3187 = vsel %vm475, %v3185, %v3186
    %v3196 = vadd.f32 %v3156, %v3166
    %v3197 = vadd.f32 %v3157, %v3169
    %v3198 = vadd.f32 %v3158, %v3172
    %v3199 = vadd.f32 %v3159, %v3175
    %v3200 = vadd.f32 %v3160, %v3178
    %v3201 = vadd.f32 %v3161, %v3181
    %v3202 = vadd.f32 %v3162, %v3184
    %v3203 = vadd.f32 %v3163, %v3187
    %v3204 = vmul.f32 %v96, 0.036000773
    %v3205 = vmul.f32 %v98, 0.036000773
    %v3206 = vmul.f32 %v100, 0.036000773
    %v3207 = vmul.f32 %v102, 0.036000773
    %v3208 = vmul.f32 %v104, 0.036000773
    %v3209 = vmul.f32 %v106, 0.036000773
    %v3210 = vmul.f32 %v108, 0.036000773
    %v3211 = vmul.f32 %v110, 0.036000773
    %v3212 = vadd.f32 %v3196, %v3204
    %v3213 = vadd.f32 %v3197, %v3205
    %v3214 = vadd.f32 %v3198, %v3206
    %v3215 = vadd.f32 %v3199, %v3207
    %v3216 = vadd.f32 %v3200, %v3208
    %v3217 = vadd.f32 %v3201, %v3209
    %v3218 = vadd.f32 %v3202, %v3210
    %v3219 = vadd.f32 %v3203, %v3211
    %v3220 = vmul.f32 %v96, 0.007598758
    %v3221 = vmul.f32 %v98, 0.007598758
    %v3222 = vmul.f32 %v100, 0.007598758
    %v3223 = vmul.f32 %v102, 0.007598758
    %v3224 = vmul.f32 %v104, 0.007598758
    %v3225 = vmul.f32 %v106, 0.007598758
    %v3226 = vmul.f32 %v108, 0.007598758
    %v3227 = vmul.f32 %v110, 0.007598758
    %v3236 = vrot.slane %v3220, 1
    %v3237 = vrot.slane %v3221, 1
    %v3238 = vrot.slane %v3222, 1
    %v3239 = vrot.slane %v3223, 1
    %v3240 = vrot.slane %v3224, 1
    %v3241 = vrot.slane %v3225, 1
    %v3242 = vrot.slane %v3226, 1
    %v3243 = vrot.slane %v3227, 1
    %v3252 = vadd.f32 %v3212, %v3236
    %v3253 = vadd.f32 %v3213, %v3237
    %v3254 = vadd.f32 %v3214, %v3238
    %v3255 = vadd.f32 %v3215, %v3239
    %v3256 = vadd.f32 %v3216, %v3240
    %v3257 = vadd.f32 %v3217, %v3241
    %v3258 = vadd.f32 %v3218, %v3242
    %v3259 = vadd.f32 %v3219, %v3243
    %v3260 = vmul.f32 %v96, 0.0010283801
    %v3261 = vmul.f32 %v98, 0.0010283801
    %v3262 = vmul.f32 %v100, 0.0010283801
    %v3263 = vmul.f32 %v102, 0.0010283801
    %v3264 = vmul.f32 %v104, 0.0010283801
    %v3265 = vmul.f32 %v106, 0.0010283801
    %v3266 = vmul.f32 %v108, 0.0010283801
    %v3267 = vmul.f32 %v110, 0.0010283801
    %v3276 = vrot.slane %v3260, 2
    %v3277 = vrot.slane %v3261, 2
    %v3278 = vrot.slane %v3262, 2
    %v3279 = vrot.slane %v3263, 2
    %v3280 = vrot.slane %v3264, 2
    %v3281 = vrot.slane %v3265, 2
    %v3282 = vrot.slane %v3266, 2
    %v3283 = vrot.slane %v3267, 2
    %v3292 = vadd.f32 %v3252, %v3276
    %v3293 = vadd.f32 %v3253, %v3277
    %v3294 = vadd.f32 %v3254, %v3278
    %v3295 = vadd.f32 %v3255, %v3279
    %v3296 = vadd.f32 %v3256, %v3280
    %v3297 = vadd.f32 %v3257, %v3281
    %v3298 = vadd.f32 %v3258, %v3282
    %v3299 = vadd.f32 %v3259, %v3283
    %v3300 = vmul.f32 %v3292, 0.0010283801
    %v3301 = vmul.f32 %v3293, 0.0010283801
    %v3302 = vmul.f32 %v3294, 0.0010283801
    %v3303 = vmul.f32 %v3295, 0.0010283801
    %v3304 = vmul.f32 %v3296, 0.0010283801
    %v3305 = vmul.f32 %v3297, 0.0010283801
    %v3306 = vmul.f32 %v3298, 0.0010283801
    %v3307 = vmul.f32 %v3299, 0.0010283801
    %v3308 = vmul.f32 %v3292, 0.007598758
    %v3309 = vmul.f32 %v3293, 0.007598758
    %v3310 = vmul.f32 %v3294, 0.007598758
    %v3311 = vmul.f32 %v3295, 0.007598758
    %v3312 = vmul.f32 %v3296, 0.007598758
    %v3313 = vmul.f32 %v3297, 0.007598758
    %v3314 = vmul.f32 %v3298, 0.007598758
    %v3315 = vmul.f32 %v3299, 0.007598758
    %3324 = vrot.lane.b32.xlu0 %v3308, 127
    %v3325 = vpop.permute.xlu0 %3324
    %3326 = vrot.lane.b32.xlu0 %v3309, 127
    %v3327 = vpop.permute.xlu0 %3326
    %3328 = vrot.lane.b32.xlu0 %v3310, 127
    %v3329 = vpop.permute.xlu0 %3328
    %3330 = vrot.lane.b32.xlu0 %v3311, 127
    %v3331 = vpop.permute.xlu0 %3330
    %3332 = vrot.lane.b32.xlu0 %v3312, 127
    %v3333 = vpop.permute.xlu0 %3332
    %3334 = vrot.lane.b32.xlu0 %v3313, 127
    %v3335 = vpop.permute.xlu0 %3334
    %3336 = vrot.lane.b32.xlu0 %v3314, 127
    %v3337 = vpop.permute.xlu0 %3336
    %3338 = vrot.lane.b32.xlu0 %v3315, 127
    %v3339 = vpop.permute.xlu0 %3338
    %v3348 = vadd.f32 %v3300, %v3325
    %v3349 = vadd.f32 %v3301, %v3327
    %v3350 = vadd.f32 %v3302, %v3329
    %v3351 = vadd.f32 %v3303, %v3331
    %v3352 = vadd.f32 %v3304, %v3333
    %v3353 = vadd.f32 %v3305, %v3335
    %v3354 = vadd.f32 %v3306, %v3337
    %v3355 = vadd.f32 %v3307, %v3339
    %v3356 = vmul.f32 %v3292, 0.036000773
    %v3357 = vmul.f32 %v3293, 0.036000773
    %v3358 = vmul.f32 %v3294, 0.036000773
    %v3359 = vmul.f32 %v3295, 0.036000773
    %v3360 = vmul.f32 %v3296, 0.036000773
    %v3361 = vmul.f32 %v3297, 0.036000773
    %v3362 = vmul.f32 %v3298, 0.036000773
    %v3363 = vmul.f32 %v3299, 0.036000773
    %3372 = vrot.lane.b32.xlu0 %v3356, 126
    %v3373 = vpop.permute.xlu0 %3372
    %3374 = vrot.lane.b32.xlu0 %v3357, 126
    %v3375 = vpop.permute.xlu0 %3374
    %3376 = vrot.lane.b32.xlu0 %v3358, 126
    %v3377 = vpop.permute.xlu0 %3376
    %3378 = vrot.lane.b32.xlu0 %v3359, 126
    %v3379 = vpop.permute.xlu0 %3378
    %3380 = vrot.lane.b32.xlu0 %v3360, 126
    %v3381 = vpop.permute.xlu0 %3380
    %3382 = vrot.lane.b32.xlu0 %v3361, 126
    %v3383 = vpop.permute.xlu0 %3382
    %3384 = vrot.lane.b32.xlu0 %v3362, 126
    %v3385 = vpop.permute.xlu0 %3384
    %3386 = vrot.lane.b32.xlu0 %v3363, 126
    %v3387 = vpop.permute.xlu0 %3386
    %v3396 = vadd.f32 %v3348, %v3373
    %v3397 = vadd.f32 %v3349, %v3375
    %v3398 = vadd.f32 %v3350, %v3377
    %v3399 = vadd.f32 %v3351, %v3379
    %v3400 = vadd.f32 %v3352, %v3381
    %v3401 = vadd.f32 %v3353, %v3383
    %v3402 = vadd.f32 %v3354, %v3385
    %v3403 = vadd.f32 %v3355, %v3387
    %v3404 = vmul.f32 %v3292, 0.10936069
    %v3405 = vmul.f32 %v3293, 0.10936069
    %v3406 = vmul.f32 %v3294, 0.10936069
    %v3407 = vmul.f32 %v3295, 0.10936069
    %v3408 = vmul.f32 %v3296, 0.10936069
    %v3409 = vmul.f32 %v3297, 0.10936069
    %v3410 = vmul.f32 %v3298, 0.10936069
    %v3411 = vmul.f32 %v3299, 0.10936069
    %3420 = vrot.lane.b32.xlu0 %v3404, 125
    %v3421 = vpop.permute.xlu0 %3420
    %3422 = vrot.lane.b32.xlu0 %v3405, 125
    %v3423 = vpop.permute.xlu0 %3422
    %3424 = vrot.lane.b32.xlu0 %v3406, 125
    %v3425 = vpop.permute.xlu0 %3424
    %3426 = vrot.lane.b32.xlu0 %v3407, 125
    %v3427 = vpop.permute.xlu0 %3426
    %3428 = vrot.lane.b32.xlu0 %v3408, 125
    %v3429 = vpop.permute.xlu0 %3428
    %3430 = vrot.lane.b32.xlu0 %v3409, 125
    %v3431 = vpop.permute.xlu0 %3430
    %3432 = vrot.lane.b32.xlu0 %v3410, 125
    %v3433 = vpop.permute.xlu0 %3432
    %3434 = vrot.lane.b32.xlu0 %v3411, 125
    %v3435 = vpop.permute.xlu0 %3434
    %v3444 = vadd.f32 %v3396, %v3421
    %v3445 = vadd.f32 %v3397, %v3423
    %v3446 = vadd.f32 %v3398, %v3425
    %v3447 = vadd.f32 %v3399, %v3427
    %v3448 = vadd.f32 %v3400, %v3429
    %v3449 = vadd.f32 %v3401, %v3431
    %v3450 = vadd.f32 %v3402, %v3433
    %v3451 = vadd.f32 %v3403, %v3435
    %v3452 = vmul.f32 %v3292, 0.21300554
    %v3453 = vmul.f32 %v3293, 0.21300554
    %v3454 = vmul.f32 %v3294, 0.21300554
    %v3455 = vmul.f32 %v3295, 0.21300554
    %v3456 = vmul.f32 %v3296, 0.21300554
    %v3457 = vmul.f32 %v3297, 0.21300554
    %v3458 = vmul.f32 %v3298, 0.21300554
    %v3459 = vmul.f32 %v3299, 0.21300554
    %3468 = vrot.lane.b32.xlu0 %v3452, 124
    %v3469 = vpop.permute.xlu0 %3468
    %3470 = vrot.lane.b32.xlu0 %v3453, 124
    %v3471 = vpop.permute.xlu0 %3470
    %3472 = vrot.lane.b32.xlu0 %v3454, 124
    %v3473 = vpop.permute.xlu0 %3472
    %3474 = vrot.lane.b32.xlu0 %v3455, 124
    %v3475 = vpop.permute.xlu0 %3474
    %3476 = vrot.lane.b32.xlu0 %v3456, 124
    %v3477 = vpop.permute.xlu0 %3476
    %3478 = vrot.lane.b32.xlu0 %v3457, 124
    %v3479 = vpop.permute.xlu0 %3478
    %3480 = vrot.lane.b32.xlu0 %v3458, 124
    %v3481 = vpop.permute.xlu0 %3480
    %3482 = vrot.lane.b32.xlu0 %v3459, 124
    %v3483 = vpop.permute.xlu0 %3482
    %v3492 = vadd.f32 %v3444, %v3469
    %v3493 = vadd.f32 %v3445, %v3471
    %v3494 = vadd.f32 %v3446, %v3473
    %v3495 = vadd.f32 %v3447, %v3475
    %v3496 = vadd.f32 %v3448, %v3477
    %v3497 = vadd.f32 %v3449, %v3479
    %v3498 = vadd.f32 %v3450, %v3481
    %v3499 = vadd.f32 %v3451, %v3483
    %v3500 = vmul.f32 %v3292, 0.26601171
    %v3501 = vmul.f32 %v3293, 0.26601171
    %v3502 = vmul.f32 %v3294, 0.26601171
    %v3503 = vmul.f32 %v3295, 0.26601171
    %v3504 = vmul.f32 %v3296, 0.26601171
    %v3505 = vmul.f32 %v3297, 0.26601171
    %v3506 = vmul.f32 %v3298, 0.26601171
    %v3507 = vmul.f32 %v3299, 0.26601171
    %3516 = vrot.lane.b32.xlu0 %v3500, 123
    %v3517 = vpop.permute.xlu0 %3516
    %3518 = vrot.lane.b32.xlu0 %v3501, 123
    %v3519 = vpop.permute.xlu0 %3518
    %3520 = vrot.lane.b32.xlu0 %v3502, 123
    %v3521 = vpop.permute.xlu0 %3520
    %3522 = vrot.lane.b32.xlu0 %v3503, 123
    %v3523 = vpop.permute.xlu0 %3522
    %3524 = vrot.lane.b32.xlu0 %v3504, 123
    %v3525 = vpop.permute.xlu0 %3524
    %3526 = vrot.lane.b32.xlu0 %v3505, 123
    %v3527 = vpop.permute.xlu0 %3526
    %3528 = vrot.lane.b32.xlu0 %v3506, 123
    %v3529 = vpop.permute.xlu0 %3528
    %3530 = vrot.lane.b32.xlu0 %v3507, 123
    %v3531 = vpop.permute.xlu0 %3530
    %v3540 = vadd.f32 %v3492, %v3517
    %v3541 = vadd.f32 %v3493, %v3519
    %v3542 = vadd.f32 %v3494, %v3521
    %v3543 = vadd.f32 %v3495, %v3523
    %v3544 = vadd.f32 %v3496, %v3525
    %v3545 = vadd.f32 %v3497, %v3527
    %v3546 = vadd.f32 %v3498, %v3529
    %v3547 = vadd.f32 %v3499, %v3531
    %3548 = vrot.lane.b32.xlu0 %v3452, 122
    %v3549 = vpop.permute.xlu0 %3548
    %3550 = vrot.lane.b32.xlu0 %v3453, 122
    %v3551 = vpop.permute.xlu0 %3550
    %3552 = vrot.lane.b32.xlu0 %v3454, 122
    %v3553 = vpop.permute.xlu0 %3552
    %3554 = vrot.lane.b32.xlu0 %v3455, 122
    %v3555 = vpop.permute.xlu0 %3554
    %3556 = vrot.lane.b32.xlu0 %v3456, 122
    %v3557 = vpop.permute.xlu0 %3556
    %3558 = vrot.lane.b32.xlu0 %v3457, 122
    %v3559 = vpop.permute.xlu0 %3558
    %3560 = vrot.lane.b32.xlu0 %v3458, 122
    %v3561 = vpop.permute.xlu0 %3560
    %3562 = vrot.lane.b32.xlu0 %v3459, 122
    %v3563 = vpop.permute.xlu0 %3562
    %v3572 = vadd.f32 %v3540, %v3549
    %v3573 = vadd.f32 %v3541, %v3551
    %v3574 = vadd.f32 %v3542, %v3553
    %v3575 = vadd.f32 %v3543, %v3555
    %v3576 = vadd.f32 %v3544, %v3557
    %v3577 = vadd.f32 %v3545, %v3559
    %v3578 = vadd.f32 %v3546, %v3561
    %v3579 = vadd.f32 %v3547, %v3563
    %3580 = vrot.lane.b32.xlu0 %v3404, 121
    %v3581 = vpop.permute.xlu0 %3580
    %3582 = vrot.lane.b32.xlu0 %v3405, 121
    %v3583 = vpop.permute.xlu0 %3582
    %3584 = vrot.lane.b32.xlu0 %v3406, 121
    %v3585 = vpop.permute.xlu0 %3584
    %3586 = vrot.lane.b32.xlu0 %v3407, 121
    %v3587 = vpop.permute.xlu0 %3586
    %3588 = vrot.lane.b32.xlu0 %v3408, 121
    %v3589 = vpop.permute.xlu0 %3588
    %3590 = vrot.lane.b32.xlu0 %v3409, 121
    %v3591 = vpop.permute.xlu0 %3590
    %3592 = vrot.lane.b32.xlu0 %v3410, 121
    %v3593 = vpop.permute.xlu0 %3592
    %3594 = vrot.lane.b32.xlu0 %v3411, 121
    %v3595 = vpop.permute.xlu0 %3594
    %v3604 = vadd.f32 %v3572, %v3581
    %v3605 = vadd.f32 %v3573, %v3583
    %v3606 = vadd.f32 %v3574, %v3585
    %v3607 = vadd.f32 %v3575, %v3587
    %v3608 = vadd.f32 %v3576, %v3589
    %v3609 = vadd.f32 %v3577, %v3591
    %v3610 = vadd.f32 %v3578, %v3593
    %v3611 = vadd.f32 %v3579, %v3595
    %3612 = vrot.lane.b32.xlu0 %v3356, 120
    %v3613 = vpop.permute.xlu0 %3612
    %3614 = vrot.lane.b32.xlu0 %v3357, 120
    %v3615 = vpop.permute.xlu0 %3614
    %3616 = vrot.lane.b32.xlu0 %v3358, 120
    %v3617 = vpop.permute.xlu0 %3616
    %3618 = vrot.lane.b32.xlu0 %v3359, 120
    %v3619 = vpop.permute.xlu0 %3618
    %3620 = vrot.lane.b32.xlu0 %v3360, 120
    %v3621 = vpop.permute.xlu0 %3620
    %3622 = vrot.lane.b32.xlu0 %v3361, 120
    %v3623 = vpop.permute.xlu0 %3622
    %3624 = vrot.lane.b32.xlu0 %v3362, 120
    %v3625 = vpop.permute.xlu0 %3624
    %3626 = vrot.lane.b32.xlu0 %v3363, 120
    %v3627 = vpop.permute.xlu0 %3626
    %v3636 = vadd.f32 %v3604, %v3613
    %v3637 = vadd.f32 %v3605, %v3615
    %v3638 = vadd.f32 %v3606, %v3617
    %v3639 = vadd.f32 %v3607, %v3619
    %v3640 = vadd.f32 %v3608, %v3621
    %v3641 = vadd.f32 %v3609, %v3623
    %v3642 = vadd.f32 %v3610, %v3625
    %v3643 = vadd.f32 %v3611, %v3627
    %3644 = vrot.lane.b32.xlu0 %v3308, 119
    %v3645 = vpop.permute.xlu0 %3644
    %3646 = vrot.lane.b32.xlu0 %v3309, 119
    %v3647 = vpop.permute.xlu0 %3646
    %3648 = vrot.lane.b32.xlu0 %v3310, 119
    %v3649 = vpop.permute.xlu0 %3648
    %3650 = vrot.lane.b32.xlu0 %v3311, 119
    %v3651 = vpop.permute.xlu0 %3650
    %3652 = vrot.lane.b32.xlu0 %v3312, 119
    %v3653 = vpop.permute.xlu0 %3652
    %3654 = vrot.lane.b32.xlu0 %v3313, 119
    %v3655 = vpop.permute.xlu0 %3654
    %3656 = vrot.lane.b32.xlu0 %v3314, 119
    %v3657 = vpop.permute.xlu0 %3656
    %3658 = vrot.lane.b32.xlu0 %v3315, 119
    %v3659 = vpop.permute.xlu0 %3658
    %v3668 = vadd.f32 %v3636, %v3645
    %v3669 = vadd.f32 %v3637, %v3647
    %v3670 = vadd.f32 %v3638, %v3649
    %v3671 = vadd.f32 %v3639, %v3651
    %v3672 = vadd.f32 %v3640, %v3653
    %v3673 = vadd.f32 %v3641, %v3655
    %v3674 = vadd.f32 %v3642, %v3657
    %v3675 = vadd.f32 %v3643, %v3659
    %3684 = vrot.lane.b32.xlu0 %v3300, 118
    %v3685 = vpop.permute.xlu0 %3684
    %3686 = vrot.lane.b32.xlu0 %v3301, 118
    %v3687 = vpop.permute.xlu0 %3686
    %3688 = vrot.lane.b32.xlu0 %v3302, 118
    %v3689 = vpop.permute.xlu0 %3688
    %3690 = vrot.lane.b32.xlu0 %v3303, 118
    %v3691 = vpop.permute.xlu0 %3690
    %3692 = vrot.lane.b32.xlu0 %v3304, 118
    %v3693 = vpop.permute.xlu0 %3692
    %3694 = vrot.lane.b32.xlu0 %v3305, 118
    %v3695 = vpop.permute.xlu0 %3694
    %3696 = vrot.lane.b32.xlu0 %v3306, 118
    %v3697 = vpop.permute.xlu0 %3696
    %3698 = vrot.lane.b32.xlu0 %v3307, 118
    %v3699 = vpop.permute.xlu0 %3698
    %v3708 = vadd.f32 %v3668, %v3685
    %v3709 = vadd.f32 %v3669, %v3687
    %v3710 = vadd.f32 %v3670, %v3689
    %v3711 = vadd.f32 %v3671, %v3691
    %v3712 = vadd.f32 %v3672, %v3693
    %v3713 = vadd.f32 %v3673, %v3695
    %v3714 = vadd.f32 %v3674, %v3697
    %v3715 = vadd.f32 %v3675, %v3699
    %v3716 = vmul.f32 %v111, 0.0010283801
    %v3717 = vmul.f32 %v113, 0.0010283801
    %v3718 = vmul.f32 %v115, 0.0010283801
    %v3719 = vmul.f32 %v117, 0.0010283801
    %v3720 = vmul.f32 %v119, 0.0010283801
    %v3721 = vmul.f32 %v121, 0.0010283801
    %v3722 = vmul.f32 %v123, 0.0010283801
    %v3723 = vmul.f32 %v125, 0.0010283801
    %v3724 = vmul.f32 %v111, 0.007598758
    %v3725 = vmul.f32 %v113, 0.007598758
    %v3726 = vmul.f32 %v115, 0.007598758
    %v3727 = vmul.f32 %v117, 0.007598758
    %v3728 = vmul.f32 %v119, 0.007598758
    %v3729 = vmul.f32 %v121, 0.007598758
    %v3730 = vmul.f32 %v123, 0.007598758
    %v3731 = vmul.f32 %v125, 0.007598758
    %v3740 = vrot.slane %v3724, 1
    %v3741 = vrot.slane %v3725, 1
    %v3742 = vrot.slane %v3726, 1
    %v3743 = vrot.slane %v3727, 1
    %v3744 = vrot.slane %v3728, 1
    %v3745 = vrot.slane %v3729, 1
    %v3746 = vrot.slane %v3730, 1
    %v3747 = vrot.slane %v3731, 1
    %v3756 = vadd.f32 %v3716, %v3740
    %v3757 = vadd.f32 %v3717, %v3741
    %v3758 = vadd.f32 %v3718, %v3742
    %v3759 = vadd.f32 %v3719, %v3743
    %v3760 = vadd.f32 %v3720, %v3744
    %v3761 = vadd.f32 %v3721, %v3745
    %v3762 = vadd.f32 %v3722, %v3746
    %v3763 = vadd.f32 %v3723, %v3747
    %v3764 = vmul.f32 %v111, 0.036000773
    %v3765 = vmul.f32 %v113, 0.036000773
    %v3766 = vmul.f32 %v115, 0.036000773
    %v3767 = vmul.f32 %v117, 0.036000773
    %v3768 = vmul.f32 %v119, 0.036000773
    %v3769 = vmul.f32 %v121, 0.036000773
    %v3770 = vmul.f32 %v123, 0.036000773
    %v3771 = vmul.f32 %v125, 0.036000773
    %v3780 = vrot.slane %v3764, 2
    %v3781 = vrot.slane %v3765, 2
    %v3782 = vrot.slane %v3766, 2
    %v3783 = vrot.slane %v3767, 2
    %v3784 = vrot.slane %v3768, 2
    %v3785 = vrot.slane %v3769, 2
    %v3786 = vrot.slane %v3770, 2
    %v3787 = vrot.slane %v3771, 2
    %v3796 = vadd.f32 %v3756, %v3780
    %v3797 = vadd.f32 %v3757, %v3781
    %v3798 = vadd.f32 %v3758, %v3782
    %v3799 = vadd.f32 %v3759, %v3783
    %v3800 = vadd.f32 %v3760, %v3784
    %v3801 = vadd.f32 %v3761, %v3785
    %v3802 = vadd.f32 %v3762, %v3786
    %v3803 = vadd.f32 %v3763, %v3787
    %v3804 = vmul.f32 %v111, 0.10936069
    %v3805 = vmul.f32 %v112, 0.10936069
    %v3806 = vmul.f32 %v113, 0.10936069
    %v3807 = vmul.f32 %v114, 0.10936069
    %v3808 = vmul.f32 %v115, 0.10936069
    %v3809 = vmul.f32 %v116, 0.10936069
    %v3810 = vmul.f32 %v117, 0.10936069
    %v3811 = vmul.f32 %v118, 0.10936069
    %v3812 = vmul.f32 %v119, 0.10936069
    %v3813 = vmul.f32 %v120, 0.10936069
    %v3814 = vmul.f32 %v121, 0.10936069
    %v3815 = vmul.f32 %v122, 0.10936069
    %v3816 = vmul.f32 %v123, 0.10936069
    %v3817 = vmul.f32 %v124, 0.10936069
    %v3818 = vmul.f32 %v125, 0.10936069
    %v3819 = vmul.f32 %v126, 0.10936069
    %v3836 = vrot.slane %v3804, 3
    %v3837 = vrot.slane %v3805, 3
    %v3838 = vsel %vm247, %v3836, %v3837
    %v3839 = vrot.slane %v3806, 3
    %v3840 = vrot.slane %v3807, 3
    %v3841 = vsel %vm247, %v3839, %v3840
    %v3842 = vrot.slane %v3808, 3
    %v3843 = vrot.slane %v3809, 3
    %v3844 = vsel %vm247, %v3842, %v3843
    %v3845 = vrot.slane %v3810, 3
    %v3846 = vrot.slane %v3811, 3
    %v3847 = vsel %vm247, %v3845, %v3846
    %v3848 = vrot.slane %v3812, 3
    %v3849 = vrot.slane %v3813, 3
    %v3850 = vsel %vm247, %v3848, %v3849
    %v3851 = vrot.slane %v3814, 3
    %v3852 = vrot.slane %v3815, 3
    %v3853 = vsel %vm247, %v3851, %v3852
    %v3854 = vrot.slane %v3816, 3
    %v3855 = vrot.slane %v3817, 3
    %v3856 = vsel %vm247, %v3854, %v3855
    %v3857 = vrot.slane %v3818, 3
    %v3858 = vrot.slane %v3819, 3
    %v3859 = vsel %vm247, %v3857, %v3858
    %v3868 = vadd.f32 %v3796, %v3838
    %v3869 = vadd.f32 %v3797, %v3841
    %v3870 = vadd.f32 %v3798, %v3844
    %v3871 = vadd.f32 %v3799, %v3847
    %v3872 = vadd.f32 %v3800, %v3850
    %v3873 = vadd.f32 %v3801, %v3853
    %v3874 = vadd.f32 %v3802, %v3856
    %v3875 = vadd.f32 %v3803, %v3859
    %v3876 = vmul.f32 %v111, 0.21300554
    %v3877 = vmul.f32 %v112, 0.21300554
    %v3878 = vmul.f32 %v113, 0.21300554
    %v3879 = vmul.f32 %v114, 0.21300554
    %v3880 = vmul.f32 %v115, 0.21300554
    %v3881 = vmul.f32 %v116, 0.21300554
    %v3882 = vmul.f32 %v117, 0.21300554
    %v3883 = vmul.f32 %v118, 0.21300554
    %v3884 = vmul.f32 %v119, 0.21300554
    %v3885 = vmul.f32 %v120, 0.21300554
    %v3886 = vmul.f32 %v121, 0.21300554
    %v3887 = vmul.f32 %v122, 0.21300554
    %v3888 = vmul.f32 %v123, 0.21300554
    %v3889 = vmul.f32 %v124, 0.21300554
    %v3890 = vmul.f32 %v125, 0.21300554
    %v3891 = vmul.f32 %v126, 0.21300554
    %v3908 = vrot.slane %v3876, 4
    %v3909 = vrot.slane %v3877, 4
    %v3910 = vsel %vm320, %v3908, %v3909
    %v3911 = vrot.slane %v3878, 4
    %v3912 = vrot.slane %v3879, 4
    %v3913 = vsel %vm320, %v3911, %v3912
    %v3914 = vrot.slane %v3880, 4
    %v3915 = vrot.slane %v3881, 4
    %v3916 = vsel %vm320, %v3914, %v3915
    %v3917 = vrot.slane %v3882, 4
    %v3918 = vrot.slane %v3883, 4
    %v3919 = vsel %vm320, %v3917, %v3918
    %v3920 = vrot.slane %v3884, 4
    %v3921 = vrot.slane %v3885, 4
    %v3922 = vsel %vm320, %v3920, %v3921
    %v3923 = vrot.slane %v3886, 4
    %v3924 = vrot.slane %v3887, 4
    %v3925 = vsel %vm320, %v3923, %v3924
    %v3926 = vrot.slane %v3888, 4
    %v3927 = vrot.slane %v3889, 4
    %v3928 = vsel %vm320, %v3926, %v3927
    %v3929 = vrot.slane %v3890, 4
    %v3930 = vrot.slane %v3891, 4
    %v3931 = vsel %vm320, %v3929, %v3930
    %v3940 = vadd.f32 %v3868, %v3910
    %v3941 = vadd.f32 %v3869, %v3913
    %v3942 = vadd.f32 %v3870, %v3916
    %v3943 = vadd.f32 %v3871, %v3919
    %v3944 = vadd.f32 %v3872, %v3922
    %v3945 = vadd.f32 %v3873, %v3925
    %v3946 = vadd.f32 %v3874, %v3928
    %v3947 = vadd.f32 %v3875, %v3931
    %v3948 = vmul.f32 %v111, 0.26601171
    %v3949 = vmul.f32 %v112, 0.26601171
    %v3950 = vmul.f32 %v113, 0.26601171
    %v3951 = vmul.f32 %v114, 0.26601171
    %v3952 = vmul.f32 %v115, 0.26601171
    %v3953 = vmul.f32 %v116, 0.26601171
    %v3954 = vmul.f32 %v117, 0.26601171
    %v3955 = vmul.f32 %v118, 0.26601171
    %v3956 = vmul.f32 %v119, 0.26601171
    %v3957 = vmul.f32 %v120, 0.26601171
    %v3958 = vmul.f32 %v121, 0.26601171
    %v3959 = vmul.f32 %v122, 0.26601171
    %v3960 = vmul.f32 %v123, 0.26601171
    %v3961 = vmul.f32 %v124, 0.26601171
    %v3962 = vmul.f32 %v125, 0.26601171
    %v3963 = vmul.f32 %v126, 0.26601171
    %v3980 = vrot.slane %v3948, 5
    %v3981 = vrot.slane %v3949, 5
    %v3982 = vsel %vm393, %v3980, %v3981
    %v3983 = vrot.slane %v3950, 5
    %v3984 = vrot.slane %v3951, 5
    %v3985 = vsel %vm393, %v3983, %v3984
    %v3986 = vrot.slane %v3952, 5
    %v3987 = vrot.slane %v3953, 5
    %v3988 = vsel %vm393, %v3986, %v3987
    %v3989 = vrot.slane %v3954, 5
    %v3990 = vrot.slane %v3955, 5
    %v3991 = vsel %vm393, %v3989, %v3990
    %v3992 = vrot.slane %v3956, 5
    %v3993 = vrot.slane %v3957, 5
    %v3994 = vsel %vm393, %v3992, %v3993
    %v3995 = vrot.slane %v3958, 5
    %v3996 = vrot.slane %v3959, 5
    %v3997 = vsel %vm393, %v3995, %v3996
    %v3998 = vrot.slane %v3960, 5
    %v3999 = vrot.slane %v3961, 5
    %v4000 = vsel %vm393, %v3998, %v3999
    %v4001 = vrot.slane %v3962, 5
    %v4002 = vrot.slane %v3963, 5
    %v4003 = vsel %vm393, %v4001, %v4002
    %v4012 = vadd.f32 %v3940, %v3982
    %v4013 = vadd.f32 %v3941, %v3985
    %v4014 = vadd.f32 %v3942, %v3988
    %v4015 = vadd.f32 %v3943, %v3991
    %v4016 = vadd.f32 %v3944, %v3994
    %v4017 = vadd.f32 %v3945, %v3997
    %v4018 = vadd.f32 %v3946, %v4000
    %v4019 = vadd.f32 %v3947, %v4003
    %v4020 = vrot.slane %v3876, 6
    %v4021 = vrot.slane %v3877, 6
    %v4022 = vsel %vm434, %v4020, %v4021
    %v4023 = vrot.slane %v3878, 6
    %v4024 = vrot.slane %v3879, 6
    %v4025 = vsel %vm434, %v4023, %v4024
    %v4026 = vrot.slane %v3880, 6
    %v4027 = vrot.slane %v3881, 6
    %v4028 = vsel %vm434, %v4026, %v4027
    %v4029 = vrot.slane %v3882, 6
    %v4030 = vrot.slane %v3883, 6
    %v4031 = vsel %vm434, %v4029, %v4030
    %v4032 = vrot.slane %v3884, 6
    %v4033 = vrot.slane %v3885, 6
    %v4034 = vsel %vm434, %v4032, %v4033
    %v4035 = vrot.slane %v3886, 6
    %v4036 = vrot.slane %v3887, 6
    %v4037 = vsel %vm434, %v4035, %v4036
    %v4038 = vrot.slane %v3888, 6
    %v4039 = vrot.slane %v3889, 6
    %v4040 = vsel %vm434, %v4038, %v4039
    %v4041 = vrot.slane %v3890, 6
    %v4042 = vrot.slane %v3891, 6
    %v4043 = vsel %vm434, %v4041, %v4042
    %v4052 = vadd.f32 %v4012, %v4022
    %v4053 = vadd.f32 %v4013, %v4025
    %v4054 = vadd.f32 %v4014, %v4028
    %v4055 = vadd.f32 %v4015, %v4031
    %v4056 = vadd.f32 %v4016, %v4034
    %v4057 = vadd.f32 %v4017, %v4037
    %v4058 = vadd.f32 %v4018, %v4040
    %v4059 = vadd.f32 %v4019, %v4043
    %v4060 = vrot.slane %v3804, 7
    %v4061 = vrot.slane %v3805, 7
    %v4062 = vsel %vm475, %v4060, %v4061
    %v4063 = vrot.slane %v3806, 7
    %v4064 = vrot.slane %v3807, 7
    %v4065 = vsel %vm475, %v4063, %v4064
    %v4066 = vrot.slane %v3808, 7
    %v4067 = vrot.slane %v3809, 7
    %v4068 = vsel %vm475, %v4066, %v4067
    %v4069 = vrot.slane %v3810, 7
    %v4070 = vrot.slane %v3811, 7
    %v4071 = vsel %vm475, %v4069, %v4070
    %v4072 = vrot.slane %v3812, 7
    %v4073 = vrot.slane %v3813, 7
    %v4074 = vsel %vm475, %v4072, %v4073
    %v4075 = vrot.slane %v3814, 7
    %v4076 = vrot.slane %v3815, 7
    %v4077 = vsel %vm475, %v4075, %v4076
    %v4078 = vrot.slane %v3816, 7
    %v4079 = vrot.slane %v3817, 7
    %v4080 = vsel %vm475, %v4078, %v4079
    %v4081 = vrot.slane %v3818, 7
    %v4082 = vrot.slane %v3819, 7
    %v4083 = vsel %vm475, %v4081, %v4082
    %v4092 = vadd.f32 %v4052, %v4062
    %v4093 = vadd.f32 %v4053, %v4065
    %v4094 = vadd.f32 %v4054, %v4068
    %v4095 = vadd.f32 %v4055, %v4071
    %v4096 = vadd.f32 %v4056, %v4074
    %v4097 = vadd.f32 %v4057, %v4077
    %v4098 = vadd.f32 %v4058, %v4080
    %v4099 = vadd.f32 %v4059, %v4083
    %v4100 = vmul.f32 %v112, 0.036000773
    %v4101 = vmul.f32 %v114, 0.036000773
    %v4102 = vmul.f32 %v116, 0.036000773
    %v4103 = vmul.f32 %v118, 0.036000773
    %v4104 = vmul.f32 %v120, 0.036000773
    %v4105 = vmul.f32 %v122, 0.036000773
    %v4106 = vmul.f32 %v124, 0.036000773
    %v4107 = vmul.f32 %v126, 0.036000773
    %v4108 = vadd.f32 %v4092, %v4100
    %v4109 = vadd.f32 %v4093, %v4101
    %v4110 = vadd.f32 %v4094, %v4102
    %v4111 = vadd.f32 %v4095, %v4103
    %v4112 = vadd.f32 %v4096, %v4104
    %v4113 = vadd.f32 %v4097, %v4105
    %v4114 = vadd.f32 %v4098, %v4106
    %v4115 = vadd.f32 %v4099, %v4107
    %v4116 = vmul.f32 %v112, 0.007598758
    %v4117 = vmul.f32 %v114, 0.007598758
    %v4118 = vmul.f32 %v116, 0.007598758
    %v4119 = vmul.f32 %v118, 0.007598758
    %v4120 = vmul.f32 %v120, 0.007598758
    %v4121 = vmul.f32 %v122, 0.007598758
    %v4122 = vmul.f32 %v124, 0.007598758
    %v4123 = vmul.f32 %v126, 0.007598758
    %v4132 = vrot.slane %v4116, 1
    %v4133 = vrot.slane %v4117, 1
    %v4134 = vrot.slane %v4118, 1
    %v4135 = vrot.slane %v4119, 1
    %v4136 = vrot.slane %v4120, 1
    %v4137 = vrot.slane %v4121, 1
    %v4138 = vrot.slane %v4122, 1
    %v4139 = vrot.slane %v4123, 1
    %v4148 = vadd.f32 %v4108, %v4132
    %v4149 = vadd.f32 %v4109, %v4133
    %v4150 = vadd.f32 %v4110, %v4134
    %v4151 = vadd.f32 %v4111, %v4135
    %v4152 = vadd.f32 %v4112, %v4136
    %v4153 = vadd.f32 %v4113, %v4137
    %v4154 = vadd.f32 %v4114, %v4138
    %v4155 = vadd.f32 %v4115, %v4139
    %v4156 = vmul.f32 %v112, 0.0010283801
    %v4157 = vmul.f32 %v114, 0.0010283801
    %v4158 = vmul.f32 %v116, 0.0010283801
    %v4159 = vmul.f32 %v118, 0.0010283801
    %v4160 = vmul.f32 %v120, 0.0010283801
    %v4161 = vmul.f32 %v122, 0.0010283801
    %v4162 = vmul.f32 %v124, 0.0010283801
    %v4163 = vmul.f32 %v126, 0.0010283801
    %v4172 = vrot.slane %v4156, 2
    %v4173 = vrot.slane %v4157, 2
    %v4174 = vrot.slane %v4158, 2
    %v4175 = vrot.slane %v4159, 2
    %v4176 = vrot.slane %v4160, 2
    %v4177 = vrot.slane %v4161, 2
    %v4178 = vrot.slane %v4162, 2
    %v4179 = vrot.slane %v4163, 2
    %v4188 = vadd.f32 %v4148, %v4172
    %v4189 = vadd.f32 %v4149, %v4173
    %v4190 = vadd.f32 %v4150, %v4174
    %v4191 = vadd.f32 %v4151, %v4175
    %v4192 = vadd.f32 %v4152, %v4176
    %v4193 = vadd.f32 %v4153, %v4177
    %v4194 = vadd.f32 %v4154, %v4178
    %v4195 = vadd.f32 %v4155, %v4179
    %v4196 = vmul.f32 %v4188, 0.0010283801
    %v4197 = vmul.f32 %v4189, 0.0010283801
    %v4198 = vmul.f32 %v4190, 0.0010283801
    %v4199 = vmul.f32 %v4191, 0.0010283801
    %v4200 = vmul.f32 %v4192, 0.0010283801
    %v4201 = vmul.f32 %v4193, 0.0010283801
    %v4202 = vmul.f32 %v4194, 0.0010283801
    %v4203 = vmul.f32 %v4195, 0.0010283801
    %v4204 = vmul.f32 %v4188, 0.007598758
    %v4205 = vmul.f32 %v4189, 0.007598758
    %v4206 = vmul.f32 %v4190, 0.007598758
    %v4207 = vmul.f32 %v4191, 0.007598758
    %v4208 = vmul.f32 %v4192, 0.007598758
    %v4209 = vmul.f32 %v4193, 0.007598758
    %v4210 = vmul.f32 %v4194, 0.007598758
    %v4211 = vmul.f32 %v4195, 0.007598758
    %4220 = vrot.lane.b32.xlu0 %v4204, 127
    %v4221 = vpop.permute.xlu0 %4220
    %4222 = vrot.lane.b32.xlu0 %v4205, 127
    %v4223 = vpop.permute.xlu0 %4222
    %4224 = vrot.lane.b32.xlu0 %v4206, 127
    %v4225 = vpop.permute.xlu0 %4224
    %4226 = vrot.lane.b32.xlu0 %v4207, 127
    %v4227 = vpop.permute.xlu0 %4226
    %4228 = vrot.lane.b32.xlu0 %v4208, 127
    %v4229 = vpop.permute.xlu0 %4228
    %4230 = vrot.lane.b32.xlu0 %v4209, 127
    %v4231 = vpop.permute.xlu0 %4230
    %4232 = vrot.lane.b32.xlu0 %v4210, 127
    %v4233 = vpop.permute.xlu0 %4232
    %4234 = vrot.lane.b32.xlu0 %v4211, 127
    %v4235 = vpop.permute.xlu0 %4234
    %v4244 = vadd.f32 %v4196, %v4221
    %v4245 = vadd.f32 %v4197, %v4223
    %v4246 = vadd.f32 %v4198, %v4225
    %v4247 = vadd.f32 %v4199, %v4227
    %v4248 = vadd.f32 %v4200, %v4229
    %v4249 = vadd.f32 %v4201, %v4231
    %v4250 = vadd.f32 %v4202, %v4233
    %v4251 = vadd.f32 %v4203, %v4235
    %v4252 = vmul.f32 %v4188, 0.036000773
    %v4253 = vmul.f32 %v4189, 0.036000773
    %v4254 = vmul.f32 %v4190, 0.036000773
    %v4255 = vmul.f32 %v4191, 0.036000773
    %v4256 = vmul.f32 %v4192, 0.036000773
    %v4257 = vmul.f32 %v4193, 0.036000773
    %v4258 = vmul.f32 %v4194, 0.036000773
    %v4259 = vmul.f32 %v4195, 0.036000773
    %4268 = vrot.lane.b32.xlu0 %v4252, 126
    %v4269 = vpop.permute.xlu0 %4268
    %4270 = vrot.lane.b32.xlu0 %v4253, 126
    %v4271 = vpop.permute.xlu0 %4270
    %4272 = vrot.lane.b32.xlu0 %v4254, 126
    %v4273 = vpop.permute.xlu0 %4272
    %4274 = vrot.lane.b32.xlu0 %v4255, 126
    %v4275 = vpop.permute.xlu0 %4274
    %4276 = vrot.lane.b32.xlu0 %v4256, 126
    %v4277 = vpop.permute.xlu0 %4276
    %4278 = vrot.lane.b32.xlu0 %v4257, 126
    %v4279 = vpop.permute.xlu0 %4278
    %4280 = vrot.lane.b32.xlu0 %v4258, 126
    %v4281 = vpop.permute.xlu0 %4280
    %4282 = vrot.lane.b32.xlu0 %v4259, 126
    %v4283 = vpop.permute.xlu0 %4282
    %v4292 = vadd.f32 %v4244, %v4269
    %v4293 = vadd.f32 %v4245, %v4271
    %v4294 = vadd.f32 %v4246, %v4273
    %v4295 = vadd.f32 %v4247, %v4275
    %v4296 = vadd.f32 %v4248, %v4277
    %v4297 = vadd.f32 %v4249, %v4279
    %v4298 = vadd.f32 %v4250, %v4281
    %v4299 = vadd.f32 %v4251, %v4283
    %v4300 = vmul.f32 %v4188, 0.10936069
    %v4301 = vmul.f32 %v4189, 0.10936069
    %v4302 = vmul.f32 %v4190, 0.10936069
    %v4303 = vmul.f32 %v4191, 0.10936069
    %v4304 = vmul.f32 %v4192, 0.10936069
    %v4305 = vmul.f32 %v4193, 0.10936069
    %v4306 = vmul.f32 %v4194, 0.10936069
    %v4307 = vmul.f32 %v4195, 0.10936069
    %4316 = vrot.lane.b32.xlu0 %v4300, 125
    %v4317 = vpop.permute.xlu0 %4316
    %4318 = vrot.lane.b32.xlu0 %v4301, 125
    %v4319 = vpop.permute.xlu0 %4318
    %4320 = vrot.lane.b32.xlu0 %v4302, 125
    %v4321 = vpop.permute.xlu0 %4320
    %4322 = vrot.lane.b32.xlu0 %v4303, 125
    %v4323 = vpop.permute.xlu0 %4322
    %4324 = vrot.lane.b32.xlu0 %v4304, 125
    %v4325 = vpop.permute.xlu0 %4324
    %4326 = vrot.lane.b32.xlu0 %v4305, 125
    %v4327 = vpop.permute.xlu0 %4326
    %4328 = vrot.lane.b32.xlu0 %v4306, 125
    %v4329 = vpop.permute.xlu0 %4328
    %4330 = vrot.lane.b32.xlu0 %v4307, 125
    %v4331 = vpop.permute.xlu0 %4330
    %v4340 = vadd.f32 %v4292, %v4317
    %v4341 = vadd.f32 %v4293, %v4319
    %v4342 = vadd.f32 %v4294, %v4321
    %v4343 = vadd.f32 %v4295, %v4323
    %v4344 = vadd.f32 %v4296, %v4325
    %v4345 = vadd.f32 %v4297, %v4327
    %v4346 = vadd.f32 %v4298, %v4329
    %v4347 = vadd.f32 %v4299, %v4331
    %v4348 = vmul.f32 %v4188, 0.21300554
    %v4349 = vmul.f32 %v4189, 0.21300554
    %v4350 = vmul.f32 %v4190, 0.21300554
    %v4351 = vmul.f32 %v4191, 0.21300554
    %v4352 = vmul.f32 %v4192, 0.21300554
    %v4353 = vmul.f32 %v4193, 0.21300554
    %v4354 = vmul.f32 %v4194, 0.21300554
    %v4355 = vmul.f32 %v4195, 0.21300554
    %4364 = vrot.lane.b32.xlu0 %v4348, 124
    %v4365 = vpop.permute.xlu0 %4364
    %4366 = vrot.lane.b32.xlu0 %v4349, 124
    %v4367 = vpop.permute.xlu0 %4366
    %4368 = vrot.lane.b32.xlu0 %v4350, 124
    %v4369 = vpop.permute.xlu0 %4368
    %4370 = vrot.lane.b32.xlu0 %v4351, 124
    %v4371 = vpop.permute.xlu0 %4370
    %4372 = vrot.lane.b32.xlu0 %v4352, 124
    %v4373 = vpop.permute.xlu0 %4372
    %4374 = vrot.lane.b32.xlu0 %v4353, 124
    %v4375 = vpop.permute.xlu0 %4374
    %4376 = vrot.lane.b32.xlu0 %v4354, 124
    %v4377 = vpop.permute.xlu0 %4376
    %4378 = vrot.lane.b32.xlu0 %v4355, 124
    %v4379 = vpop.permute.xlu0 %4378
    %v4388 = vadd.f32 %v4340, %v4365
    %v4389 = vadd.f32 %v4341, %v4367
    %v4390 = vadd.f32 %v4342, %v4369
    %v4391 = vadd.f32 %v4343, %v4371
    %v4392 = vadd.f32 %v4344, %v4373
    %v4393 = vadd.f32 %v4345, %v4375
    %v4394 = vadd.f32 %v4346, %v4377
    %v4395 = vadd.f32 %v4347, %v4379
    %v4396 = vmul.f32 %v4188, 0.26601171
    %v4397 = vmul.f32 %v4189, 0.26601171
    %v4398 = vmul.f32 %v4190, 0.26601171
    %v4399 = vmul.f32 %v4191, 0.26601171
    %v4400 = vmul.f32 %v4192, 0.26601171
    %v4401 = vmul.f32 %v4193, 0.26601171
    %v4402 = vmul.f32 %v4194, 0.26601171
    %v4403 = vmul.f32 %v4195, 0.26601171
    %4412 = vrot.lane.b32.xlu0 %v4396, 123
    %v4413 = vpop.permute.xlu0 %4412
    %4414 = vrot.lane.b32.xlu0 %v4397, 123
    %v4415 = vpop.permute.xlu0 %4414
    %4416 = vrot.lane.b32.xlu0 %v4398, 123
    %v4417 = vpop.permute.xlu0 %4416
    %4418 = vrot.lane.b32.xlu0 %v4399, 123
    %v4419 = vpop.permute.xlu0 %4418
    %4420 = vrot.lane.b32.xlu0 %v4400, 123
    %v4421 = vpop.permute.xlu0 %4420
    %4422 = vrot.lane.b32.xlu0 %v4401, 123
    %v4423 = vpop.permute.xlu0 %4422
    %4424 = vrot.lane.b32.xlu0 %v4402, 123
    %v4425 = vpop.permute.xlu0 %4424
    %4426 = vrot.lane.b32.xlu0 %v4403, 123
    %v4427 = vpop.permute.xlu0 %4426
    %v4436 = vadd.f32 %v4388, %v4413
    %v4437 = vadd.f32 %v4389, %v4415
    %v4438 = vadd.f32 %v4390, %v4417
    %v4439 = vadd.f32 %v4391, %v4419
    %v4440 = vadd.f32 %v4392, %v4421
    %v4441 = vadd.f32 %v4393, %v4423
    %v4442 = vadd.f32 %v4394, %v4425
    %v4443 = vadd.f32 %v4395, %v4427
    %4444 = vrot.lane.b32.xlu0 %v4348, 122
    %v4445 = vpop.permute.xlu0 %4444
    %4446 = vrot.lane.b32.xlu0 %v4349, 122
    %v4447 = vpop.permute.xlu0 %4446
    %4448 = vrot.lane.b32.xlu0 %v4350, 122
    %v4449 = vpop.permute.xlu0 %4448
    %4450 = vrot.lane.b32.xlu0 %v4351, 122
    %v4451 = vpop.permute.xlu0 %4450
    %4452 = vrot.lane.b32.xlu0 %v4352, 122
    %v4453 = vpop.permute.xlu0 %4452
    %4454 = vrot.lane.b32.xlu0 %v4353, 122
    %v4455 = vpop.permute.xlu0 %4454
    %4456 = vrot.lane.b32.xlu0 %v4354, 122
    %v4457 = vpop.permute.xlu0 %4456
    %4458 = vrot.lane.b32.xlu0 %v4355, 122
    %v4459 = vpop.permute.xlu0 %4458
    %v4468 = vadd.f32 %v4436, %v4445
    %v4469 = vadd.f32 %v4437, %v4447
    %v4470 = vadd.f32 %v4438, %v4449
    %v4471 = vadd.f32 %v4439, %v4451
    %v4472 = vadd.f32 %v4440, %v4453
    %v4473 = vadd.f32 %v4441, %v4455
    %v4474 = vadd.f32 %v4442, %v4457
    %v4475 = vadd.f32 %v4443, %v4459
    %4476 = vrot.lane.b32.xlu0 %v4300, 121
    %v4477 = vpop.permute.xlu0 %4476
    %4478 = vrot.lane.b32.xlu0 %v4301, 121
    %v4479 = vpop.permute.xlu0 %4478
    %4480 = vrot.lane.b32.xlu0 %v4302, 121
    %v4481 = vpop.permute.xlu0 %4480
    %4482 = vrot.lane.b32.xlu0 %v4303, 121
    %v4483 = vpop.permute.xlu0 %4482
    %4484 = vrot.lane.b32.xlu0 %v4304, 121
    %v4485 = vpop.permute.xlu0 %4484
    %4486 = vrot.lane.b32.xlu0 %v4305, 121
    %v4487 = vpop.permute.xlu0 %4486
    %4488 = vrot.lane.b32.xlu0 %v4306, 121
    %v4489 = vpop.permute.xlu0 %4488
    %4490 = vrot.lane.b32.xlu0 %v4307, 121
    %v4491 = vpop.permute.xlu0 %4490
    %v4500 = vadd.f32 %v4468, %v4477
    %v4501 = vadd.f32 %v4469, %v4479
    %v4502 = vadd.f32 %v4470, %v4481
    %v4503 = vadd.f32 %v4471, %v4483
    %v4504 = vadd.f32 %v4472, %v4485
    %v4505 = vadd.f32 %v4473, %v4487
    %v4506 = vadd.f32 %v4474, %v4489
    %v4507 = vadd.f32 %v4475, %v4491
    %4508 = vrot.lane.b32.xlu0 %v4252, 120
    %v4509 = vpop.permute.xlu0 %4508
    %4510 = vrot.lane.b32.xlu0 %v4253, 120
    %v4511 = vpop.permute.xlu0 %4510
    %4512 = vrot.lane.b32.xlu0 %v4254, 120
    %v4513 = vpop.permute.xlu0 %4512
    %4514 = vrot.lane.b32.xlu0 %v4255, 120
    %v4515 = vpop.permute.xlu0 %4514
    %4516 = vrot.lane.b32.xlu0 %v4256, 120
    %v4517 = vpop.permute.xlu0 %4516
    %4518 = vrot.lane.b32.xlu0 %v4257, 120
    %v4519 = vpop.permute.xlu0 %4518
    %4520 = vrot.lane.b32.xlu0 %v4258, 120
    %v4521 = vpop.permute.xlu0 %4520
    %4522 = vrot.lane.b32.xlu0 %v4259, 120
    %v4523 = vpop.permute.xlu0 %4522
    %v4532 = vadd.f32 %v4500, %v4509
    %v4533 = vadd.f32 %v4501, %v4511
    %v4534 = vadd.f32 %v4502, %v4513
    %v4535 = vadd.f32 %v4503, %v4515
    %v4536 = vadd.f32 %v4504, %v4517
    %v4537 = vadd.f32 %v4505, %v4519
    %v4538 = vadd.f32 %v4506, %v4521
    %v4539 = vadd.f32 %v4507, %v4523
    %4540 = vrot.lane.b32.xlu0 %v4204, 119
    %v4541 = vpop.permute.xlu0 %4540
    %4542 = vrot.lane.b32.xlu0 %v4205, 119
    %v4543 = vpop.permute.xlu0 %4542
    %4544 = vrot.lane.b32.xlu0 %v4206, 119
    %v4545 = vpop.permute.xlu0 %4544
    %4546 = vrot.lane.b32.xlu0 %v4207, 119
    %v4547 = vpop.permute.xlu0 %4546
    %4548 = vrot.lane.b32.xlu0 %v4208, 119
    %v4549 = vpop.permute.xlu0 %4548
    %4550 = vrot.lane.b32.xlu0 %v4209, 119
    %v4551 = vpop.permute.xlu0 %4550
    %4552 = vrot.lane.b32.xlu0 %v4210, 119
    %v4553 = vpop.permute.xlu0 %4552
    %4554 = vrot.lane.b32.xlu0 %v4211, 119
    %v4555 = vpop.permute.xlu0 %4554
    %v4564 = vadd.f32 %v4532, %v4541
    %v4565 = vadd.f32 %v4533, %v4543
    %v4566 = vadd.f32 %v4534, %v4545
    %v4567 = vadd.f32 %v4535, %v4547
    %v4568 = vadd.f32 %v4536, %v4549
    %v4569 = vadd.f32 %v4537, %v4551
    %v4570 = vadd.f32 %v4538, %v4553
    %v4571 = vadd.f32 %v4539, %v4555
    %4580 = vrot.lane.b32.xlu0 %v4196, 118
    %v4581 = vpop.permute.xlu0 %4580
    %4582 = vrot.lane.b32.xlu0 %v4197, 118
    %v4583 = vpop.permute.xlu0 %4582
    %4584 = vrot.lane.b32.xlu0 %v4198, 118
    %v4585 = vpop.permute.xlu0 %4584
    %4586 = vrot.lane.b32.xlu0 %v4199, 118
    %v4587 = vpop.permute.xlu0 %4586
    %4588 = vrot.lane.b32.xlu0 %v4200, 118
    %v4589 = vpop.permute.xlu0 %4588
    %4590 = vrot.lane.b32.xlu0 %v4201, 118
    %v4591 = vpop.permute.xlu0 %4590
    %4592 = vrot.lane.b32.xlu0 %v4202, 118
    %v4593 = vpop.permute.xlu0 %4592
    %4594 = vrot.lane.b32.xlu0 %v4203, 118
    %v4595 = vpop.permute.xlu0 %4594
    %v4604 = vadd.f32 %v4564, %v4581
    %v4605 = vadd.f32 %v4565, %v4583
    %v4606 = vadd.f32 %v4566, %v4585
    %v4607 = vadd.f32 %v4567, %v4587
    %v4608 = vadd.f32 %v4568, %v4589
    %v4609 = vadd.f32 %v4569, %v4591
    %v4610 = vadd.f32 %v4570, %v4593
    %v4611 = vadd.f32 %v4571, %v4595
    %v4612 = vmul.f32 %v1020, %v1020
    %v4613 = vmul.f32 %v1021, %v1021
    %v4614 = vmul.f32 %v1022, %v1022
    %v4615 = vmul.f32 %v1023, %v1023
    %v4616 = vmul.f32 %v1024, %v1024
    %v4617 = vmul.f32 %v1025, %v1025
    %v4618 = vmul.f32 %v1026, %v1026
    %v4619 = vmul.f32 %v1027, %v1027
    %v4620 = vmul.f32 %v1916, %v1916
    %v4621 = vmul.f32 %v1917, %v1917
    %v4622 = vmul.f32 %v1918, %v1918
    %v4623 = vmul.f32 %v1919, %v1919
    %v4624 = vmul.f32 %v1920, %v1920
    %v4625 = vmul.f32 %v1921, %v1921
    %v4626 = vmul.f32 %v1922, %v1922
    %v4627 = vmul.f32 %v1923, %v1923
    %v4628 = vmul.f32 %v1020, %v1916
    %v4629 = vmul.f32 %v1021, %v1917
    %v4630 = vmul.f32 %v1022, %v1918
    %v4631 = vmul.f32 %v1023, %v1919
    %v4632 = vmul.f32 %v1024, %v1920
    %v4633 = vmul.f32 %v1025, %v1921
    %v4634 = vmul.f32 %v1026, %v1922
    %v4635 = vmul.f32 %v1027, %v1923
    %v4636 = vsub.f32 %v2812, %v4612
    %v4637 = vsub.f32 %v2813, %v4613
    %v4638 = vsub.f32 %v2814, %v4614
    %v4639 = vsub.f32 %v2815, %v4615
    %v4640 = vsub.f32 %v2816, %v4616
    %v4641 = vsub.f32 %v2817, %v4617
    %v4642 = vsub.f32 %v2818, %v4618
    %v4643 = vsub.f32 %v2819, %v4619
    %v4644 = vsub.f32 %v3708, %v4620
    %v4645 = vsub.f32 %v3709, %v4621
    %v4646 = vsub.f32 %v3710, %v4622
    %v4647 = vsub.f32 %v3711, %v4623
    %v4648 = vsub.f32 %v3712, %v4624
    %v4649 = vsub.f32 %v3713, %v4625
    %v4650 = vsub.f32 %v3714, %v4626
    %v4651 = vsub.f32 %v3715, %v4627
    %v4652 = vsub.f32 %v4604, %v4628
    %v4653 = vsub.f32 %v4605, %v4629
    %v4654 = vsub.f32 %v4606, %v4630
    %v4655 = vsub.f32 %v4607, %v4631
    %v4656 = vsub.f32 %v4608, %v4632
    %v4657 = vsub.f32 %v4609, %v4633
    %v4658 = vsub.f32 %v4610, %v4634
    %v4659 = vsub.f32 %v4611, %v4635
    %v4660 = vmul.f32 %v4652, 2.0
    %v4661 = vmul.f32 %v4653, 2.0
    %v4662 = vmul.f32 %v4654, 2.0
    %v4663 = vmul.f32 %v4655, 2.0
    %v4664 = vmul.f32 %v4656, 2.0
    %v4665 = vmul.f32 %v4657, 2.0
    %v4666 = vmul.f32 %v4658, 2.0
    %v4667 = vmul.f32 %v4659, 2.0
    %v4668 = vstv %s78
    %v4669 = vadd.f32 %v4660, %v4668
    %v4670 = vadd.f32 %v4661, %v4668
    %v4671 = vadd.f32 %v4662, %v4668
    %v4672 = vadd.f32 %v4663, %v4668
    %v4673 = vadd.f32 %v4664, %v4668
    %v4674 = vadd.f32 %v4665, %v4668
    %v4675 = vadd.f32 %v4666, %v4668
    %v4676 = vadd.f32 %v4667, %v4668
    %v4677 = vadd.f32 %v4636, %v4644
    %v4678 = vadd.f32 %v4637, %v4645
    %v4679 = vadd.f32 %v4638, %v4646
    %v4680 = vadd.f32 %v4639, %v4647
    %v4681 = vadd.f32 %v4640, %v4648
    %v4682 = vadd.f32 %v4641, %v4649
    %v4683 = vadd.f32 %v4642, %v4650
    %v4684 = vadd.f32 %v4643, %v4651
    %v4685 = vadd.f32 %v4677, %v4668
    %v4686 = vadd.f32 %v4678, %v4668
    %v4687 = vadd.f32 %v4679, %v4668
    %v4688 = vadd.f32 %v4680, %v4668
    %v4689 = vadd.f32 %v4681, %v4668
    %v4690 = vadd.f32 %v4682, %v4668
    %v4691 = vadd.f32 %v4683, %v4668
    %v4692 = vadd.f32 %v4684, %v4668
    %v4693 = vmul.f32 %v4628, 2.0
    %v4694 = vmul.f32 %v4629, 2.0
    %v4695 = vmul.f32 %v4630, 2.0
    %v4696 = vmul.f32 %v4631, 2.0
    %v4697 = vmul.f32 %v4632, 2.0
    %v4698 = vmul.f32 %v4633, 2.0
    %v4699 = vmul.f32 %v4634, 2.0
    %v4700 = vmul.f32 %v4635, 2.0
    %v4701 = vstv %s77
    %v4702 = vadd.f32 %v4693, %v4701
    %v4703 = vadd.f32 %v4694, %v4701
    %v4704 = vadd.f32 %v4695, %v4701
    %v4705 = vadd.f32 %v4696, %v4701
    %v4706 = vadd.f32 %v4697, %v4701
    %v4707 = vadd.f32 %v4698, %v4701
    %v4708 = vadd.f32 %v4699, %v4701
    %v4709 = vadd.f32 %v4700, %v4701
    %v4710 = vmul.f32 %v4702, %v4669
    %v4711 = vmul.f32 %v4703, %v4670
    %v4712 = vmul.f32 %v4704, %v4671
    %v4713 = vmul.f32 %v4705, %v4672
    %v4714 = vmul.f32 %v4706, %v4673
    %v4715 = vmul.f32 %v4707, %v4674
    %v4716 = vmul.f32 %v4708, %v4675
    %v4717 = vmul.f32 %v4709, %v4676
    %v4718 = vadd.f32 %v4612, %v4620
    %v4719 = vadd.f32 %v4613, %v4621
    %v4720 = vadd.f32 %v4614, %v4622
    %v4721 = vadd.f32 %v4615, %v4623
    %v4722 = vadd.f32 %v4616, %v4624
    %v4723 = vadd.f32 %v4617, %v4625
    %v4724 = vadd.f32 %v4618, %v4626
    %v4725 = vadd.f32 %v4619, %v4627
    %v4726 = vadd.f32 %v4718, %v4701
    %v4727 = vadd.f32 %v4719, %v4701
    %v4728 = vadd.f32 %v4720, %v4701
    %v4729 = vadd.f32 %v4721, %v4701
    %v4730 = vadd.f32 %v4722, %v4701
    %v4731 = vadd.f32 %v4723, %v4701
    %v4732 = vadd.f32 %v4724, %v4701
    %v4733 = vadd.f32 %v4725, %v4701
    %v4734 = vmul.f32 %v4726, %v4685
    %v4735 = vmul.f32 %v4727, %v4686
    %v4736 = vmul.f32 %v4728, %v4687
    %v4737 = vmul.f32 %v4729, %v4688
    %v4738 = vmul.f32 %v4730, %v4689
    %v4739 = vmul.f32 %v4731, %v4690
    %v4740 = vmul.f32 %v4732, %v4691
    %v4741 = vmul.f32 %v4733, %v4692
    %v4742 = vrcp.pop %v4734
    %v4743 = vmul.f32 %v4710, %v4742
    %v4744 = vrcp.pop %v4735
    %v4745 = vmul.f32 %v4711, %v4744
    %v4746 = vrcp.pop %v4736
    %v4747 = vmul.f32 %v4712, %v4746
    %v4748 = vrcp.pop %v4737
    %v4749 = vmul.f32 %v4713, %v4748
    %v4750 = vrcp.pop %v4738
    %v4751 = vmul.f32 %v4714, %v4750
    %v4752 = vrcp.pop %v4739
    %v4753 = vmul.f32 %v4715, %v4752
    %v4754 = vrcp.pop %v4740
    %v4755 = vmul.f32 %v4716, %v4754
    %v4756 = vrcp.pop %v4741
    %v4757 = vmul.f32 %v4717, %v4756
    %s4758 = smul.u32 0, 8
    %v4759 = vstv %s4758
    %v4760 = vadd.s32 %v4759, 1
    %v4761 = vadd.s32 %v4759, 2
    %v4762 = vadd.s32 %v4759, 3
    %v4763 = vadd.s32 %v4759, 4
    %v4764 = vadd.s32 %v4759, 5
    %v4765 = vadd.s32 %v4759, 6
    %v4766 = vadd.s32 %v4759, 7
    %vm4767 = vcmp.lt.s32.totalorder %v4759, 8
    %vm4768 = vcmp.lt.s32.totalorder %v4760, 8
    %vm4769 = vcmp.lt.s32.totalorder %v4761, 8
    %vm4770 = vcmp.lt.s32.totalorder %v4762, 8
    %vm4771 = vcmp.lt.s32.totalorder %v4763, 8
    %vm4772 = vcmp.lt.s32.totalorder %v4764, 8
    %vm4773 = vcmp.lt.s32.totalorder %v4765, 8
    %vm4774 = vcmp.lt.s32.totalorder %v4766, 8
    %v4775 = vsel %vm4767, 1, 0
    %v4776 = vsel %vm4768, 1, 0
    %v4777 = vsel %vm4769, 1, 0
    %v4778 = vsel %vm4770, 1, 0
    %v4779 = vsel %vm4771, 1, 0
    %v4780 = vsel %vm4772, 1, 0
    %v4781 = vsel %vm4773, 1, 0
    %v4782 = vsel %vm4774, 1, 0
    %v4783 = vcvt.s32.f32 %v4775
    %v4784 = vcvt.s32.f32 %v4776
    %v4785 = vcvt.s32.f32 %v4777
    %v4786 = vcvt.s32.f32 %v4778
    %v4787 = vcvt.s32.f32 %v4779
    %v4788 = vcvt.s32.f32 %v4780
    %v4789 = vcvt.s32.f32 %v4781
    %v4790 = vcvt.s32.f32 %v4782
    %v4791 = vmul.f32 %v4743, %v4783
    %v4792 = vmul.f32 %v4745, %v4784
    %v4793 = vmul.f32 %v4747, %v4785
    %v4794 = vmul.f32 %v4749, %v4786
    %v4795 = vmul.f32 %v4751, %v4787
    %v4796 = vmul.f32 %v4753, %v4788
    %v4797 = vmul.f32 %v4755, %v4789
    %v4798 = vmul.f32 %v4757, %v4790
    %vm4799 = vcmask 46080
    %v4800 = vsel %vm4799, %v4791, 0.0
    %v4801 = vsel %vm4799, %v4792, 0.0
    %v4802 = vadd.f32 %v4800, %v4801
    %v4803 = vsel %vm4799, %v4793, 0.0
    %v4804 = vadd.f32 %v4802, %v4803
    %v4805 = vsel %vm4799, %v4794, 0.0
    %v4806 = vadd.f32 %v4804, %v4805
    %v4807 = vsel %vm4799, %v4795, 0.0
    %v4808 = vadd.f32 %v4806, %v4807
    %v4809 = vsel %vm4799, %v4796, 0.0
    %v4810 = vadd.f32 %v4808, %v4809
    %v4811 = vsel %vm4799, %v4797, 0.0
    %v4812 = vadd.f32 %v4810, %v4811
    %v4813 = vsel %vm4799, %v4798, 0.0
    %v4814 = vadd.f32 %v4812, %v4813
    %4815 = vadd.xlane.f32.xlu0 %v4814
    %v4816 = vpop.xlane.xlu0 %4815
    %v4817 = vrot.slane %v4816, 4
    %v4818 = vadd.f32 %v4816, %v4817
    %v4819 = vrot.slane %v4818, 2
    %v4820 = vadd.f32 %v4818, %v4819
    %v4821 = vrot.slane %v4820, 1
    %v4822 = vadd.f32 %v4820, %v4821
    %s4823 = vtos %v4822
    %v4824 = vstv %s4823
    %4825 = vst [vmem:[#allocation9] sm:$0xff] %v4824
    // Predicated region
    $region18: #{tpu_custom_call.1} parent=1 // pred_check
      _
    $region19: #{tpu_custom_call.1} parent=1 // pred_check_branch
      %4827 = sbr.rel (0) target = $region21
    $region20: #{tpu_custom_call.1} parent=1 // pred_region
      %s4829 = ssub.s32 128, 128
      %4830 = vsyncadd [#allocation6], %s4829
      %s4832 = sshll.u32 [#allocation9], 4
      %s4833 = int_to_ptr.vmem [resolvable:$true] %s4832
      %4835 = dma.vmem_to_hbm [thread:$0]  %s4833, 128, %s3, [#allocation6]
    $region21: #{tpu_custom_call.1} parent=1 // pred_fallthru
      _
    // Predicated region
    $region22: #{tpu_custom_call.1} parent=1 // pred_check
      _
    $region23: #{tpu_custom_call.1} parent=1 // pred_check_branch
      %4837 = sbr.rel (0) target = $region25
    $region24: #{tpu_custom_call.1} parent=1 // pred_region
      %4838 = dma.done [#allocation6], 128
    $region25: #{tpu_custom_call.1} parent=1 // pred_fallthru
      _
    %4839 = vsyncpa [#allocation5], 1
    %4840 = vsyncpa [#allocation8], 1
    %4841 = vsyncpa [#allocation6], 1

</llo_original>
